<compile_context>
chip_gen: v7x
topology: tpu7x:2x2x1
jax: 0.10.0
libtpu: 0.0.40
codegen_flags: <defaults>
</compile_context>

<pallas_src>
import functools

import jax
import jax.numpy as jnp
from jax import lax
from jax.experimental import pallas as pl
from jax.experimental.pallas import tpu as pltpu

BN_EPS = 1e-5


def _vmem_limit_bytes():
    # v5e/v6e: 128 MiB physical VMEM, v7x: 64 MiB.  Ask for ~3/4 of whatever
    # this chip has (capped), leaving headroom for double buffers / scratch.
    try:
        cap = pltpu.get_tpu_info().vmem_capacity_bytes
    except Exception:
        cap = 64 << 20
    return int(min(cap * 3 // 4, 96 << 20))


# --------------------------- Pass 1: conv + stats ---------------------------

def _conv_stats_kernel(img_w, x_ref, w_ref, mask_ref, y_ref, sum_ref, ssq_ref):
    """One batch element per grid step.

    x_ref:    (1, Cin, Hv*W)  image; channels on sublanes, flat spatial on lanes
    w_ref:    (9, Cout, Cin)  tap-major weights, w_ref[i*3+j][co, ci]
    mask_ref: (1, Ho*W)       1.0 where the flat column is a valid output col
    y_ref:    (1, Cout, Ho*W) conv output (cols wo >= valid width are don't-care)
    sum_ref, ssq_ref: (Cout, 1) per-channel running sum / sum of squares
    """
    x = x_ref[0]                                  # (Cin, Hv*W)
    hw = x.shape[-1]
    cout = y_ref.shape[1]
    how = y_ref.shape[-1]

    # 3x3 taps: a left rotation of the flat spatial axis by s = i*W + j turns
    # x[ci, ho*W + wo] into x[ci, (ho+i)*W + (wo+j)].  Wrapped / out-of-range
    # values only ever land in don't-care columns (wo >= valid width), which
    # are masked out of the statistics and never read by later valid outputs.
    y = jnp.zeros((cout, hw), dtype=jnp.float32)
    for t in range(9):
        i, j = divmod(t, 3)
        s = i * img_w + j
        if s == 0:
            xs = x
        else:
            xs = jnp.concatenate([x[:, s:], x[:, :s]], axis=1)
        y = y + jnp.dot(w_ref[t], xs, preferred_element_type=jnp.float32)

    yv = y[:, :how]                               # keep rows ho < Ho
    y_ref[0] = yv

    # BatchNorm (training-mode) statistics, accumulated across the batch grid.
    yz = yv * mask_ref[...]
    s1 = jnp.sum(yz, axis=1, keepdims=True)       # (Cout, 1)
    s2 = jnp.sum(yz * yz, axis=1, keepdims=True)  # (Cout, 1)

    @pl.when(pl.program_id(0) == 0)
    def _init():
        sum_ref[...] = jnp.zeros_like(sum_ref)
        ssq_ref[...] = jnp.zeros_like(ssq_ref)

    sum_ref[...] += s1
    ssq_ref[...] += s2


# ------------------- Pass 2: fold BN + normalize + ReLU ---------------------

def _bn_fold_relu_kernel(inv_count, y_ref, sum_ref, ssq_ref, gamma_ref,
                         beta_ref, o_ref):
    """out = max(y * scale + shift, 0) with scale/shift folded from the
    accumulated batch statistics (tiny per-channel math, EUP rsqrt)."""
    mean = sum_ref[...] * inv_count                               # (Cout, 1)
    var = jnp.maximum(ssq_ref[...] * inv_count - mean * mean, 0.0)
    scale = gamma_ref[...] * lax.rsqrt(var + BN_EPS)              # (Cout, 1)
    shift = beta_ref[...] - mean * scale                          # (Cout, 1)
    o_ref[0] = jnp.maximum(y_ref[0] * scale + shift, 0.0)


# --------------------------------- Wrapper ----------------------------------

def block_forward_flat(x_flat, img_w, hv, wv, conv_w, conv_b, gamma, beta):
    """One Block on flat activations.

    x_flat: (N, Cin, hv*img_w); columns with (col % img_w) >= wv are garbage.
    conv_w: (Cout, Cin, 3, 3).  conv_b is accepted but unused: under
    training-mode BatchNorm the conv bias cancels exactly.
    Returns (y_flat, hv-2, wv-2) with y_flat: (N, Cout, (hv-2)*img_w).
    """
    del conv_b  # exact identity: BN(conv(x) + b) == BN(conv(x)) in train mode
    N, Cin, _ = x_flat.shape
    Cout = conv_w.shape[0]
    ho, wo = hv - 2, wv - 2
    hw, how = hv * img_w, ho * img_w
    vmem = _vmem_limit_bytes()

    w_taps = jnp.transpose(conv_w, (2, 3, 0, 1)).reshape(9, Cout, Cin).astype(
        jnp.float32)
    mask = (jnp.arange(how, dtype=jnp.int32) % img_w < wo).astype(
        jnp.float32).reshape(1, how)

    kern1 = functools.partial(_conv_stats_kernel, img_w)
    y, csum, cssq = pl.pallas_call(
        kern1,
        grid=(N,),
        in_specs=[
            pl.BlockSpec((1, Cin, hw), lambda n: (n, 0, 0)),
            pl.BlockSpec((9, Cout, Cin), lambda n: (0, 0, 0)),
            pl.BlockSpec((1, how), lambda n: (0, 0)),
        ],
        out_specs=[
            pl.BlockSpec((1, Cout, how), lambda n: (n, 0, 0)),
            pl.BlockSpec((Cout, 1), lambda n: (0, 0)),
            pl.BlockSpec((Cout, 1), lambda n: (0, 0)),
        ],
        out_shape=[
            jax.ShapeDtypeStruct((N, Cout, how), jnp.float32),
            jax.ShapeDtypeStruct((Cout, 1), jnp.float32),
            jax.ShapeDtypeStruct((Cout, 1), jnp.float32),
        ],
        compiler_params=pltpu.CompilerParams(
            dimension_semantics=("arbitrary",),   # batch axis carries BN reduction
            vmem_limit_bytes=vmem),
    )(x_flat, w_taps, mask)

    inv_count = 1.0 / float(N * ho * wo)
    g2 = gamma.reshape(Cout, 1).astype(jnp.float32)
    b2 = beta.reshape(Cout, 1).astype(jnp.float32)

    kern2 = functools.partial(_bn_fold_relu_kernel, inv_count)
    out_flat = pl.pallas_call(
        kern2,
        grid=(N,),
        in_specs=[
            pl.BlockSpec((1, Cout, how), lambda n: (n, 0, 0)),
            pl.BlockSpec((Cout, 1), lambda n: (0, 0)),
            pl.BlockSpec((Cout, 1), lambda n: (0, 0)),
            pl.BlockSpec((Cout, 1), lambda n: (0, 0)),
            pl.BlockSpec((Cout, 1), lambda n: (0, 0)),
        ],
        out_specs=pl.BlockSpec((1, Cout, how), lambda n: (n, 0, 0)),
        out_shape=jax.ShapeDtypeStruct((N, Cout, how), jnp.float32),
        compiler_params=pltpu.CompilerParams(
            dimension_semantics=("parallel",),    # pure elementwise pass
            vmem_limit_bytes=vmem),
    )(y, csum, cssq, g2, b2)

    return out_flat, ho, wo


def layer_forward(x, blocks):
    """x: (N, Cin, H, W) NCHW; blocks: list of param dicts.  Activations stay
    in the flat channel-major layout (row stride = original W) across blocks;
    the padded columns are sliced off exactly once at the end."""
    N, C, H, W = x.shape
    x_flat = x.reshape(N, C, H * W)
    hv, wv = H, W
    for p in blocks:
        x_flat, hv, wv = block_forward_flat(
            x_flat, W, hv, wv, p["conv_w"], p["conv_b"], p["gamma"], p["beta"])
    cout = blocks[-1]["conv_w"].shape[0]
    return x_flat.reshape(N, cout, hv, W)[:, :, :, :wv]


# -------------------------------- Reference ---------------------------------

def block_reference(x, conv_w, conv_b, gamma, beta):
    y = lax.conv_general_dilated(
        x, conv_w, window_strides=(1, 1), padding="VALID",
        dimension_numbers=("NCHW", "OIHW", "NCHW"))
    y = y + conv_b.reshape(1, -1, 1, 1)
    mean = jnp.mean(y, axis=(0, 2, 3), keepdims=True)
    var = jnp.mean((y - mean) ** 2, axis=(0, 2, 3), keepdims=True)  # biased
    y_hat = (y - mean) * lax.rsqrt(var + BN_EPS)
    out = y_hat * gamma.reshape(1, -1, 1, 1) + beta.reshape(1, -1, 1, 1)
    return jnp.maximum(out, 0.0)


def layer_reference(x, blocks):
    for p in blocks:
        x = block_reference(x, p["conv_w"], p["conv_b"], p["gamma"], p["beta"])
    return x


# ---------------------------------- Main -------------------------------------

if __name__ == "__main__":
    key = jax.random.PRNGKey(0)
    N, in_channels, H, W = 2, 4, 16, 16
    layer_list = [8, 16]          # Layer(4, [8, 16], 'vgg'): Block(4->8), Block(8->16)

    keys = jax.random.split(key, 1 + 4 * len(layer_list))
    x = jax.random.normal(keys[0], (N, in_channels, H, W), dtype=jnp.float32)

    blocks = []
    cin = in_channels
    for li, cout in enumerate(layer_list):
        kw_, kb_, kg_, kbe_ = keys[1 + 4 * li: 1 + 4 * (li + 1)]
        blocks.append(dict(
            conv_w=0.1 * jax.random.normal(kw_, (cout, cin, 3, 3), dtype=jnp.float32),
            conv_b=0.1 * jax.random.normal(kb_, (cout,), dtype=jnp.float32),
            gamma=1.0 + 0.1 * jax.random.normal(kg_, (cout,), dtype=jnp.float32),
            beta=0.1 * jax.random.normal(kbe_, (cout,), dtype=jnp.float32),
        ))
        cin = cout

    fwd = jax.jit(layer_forward)
    out = jax.block_until_ready(fwd(x, blocks))

    ref = layer_reference(x, blocks)
    exp_shape = (N, layer_list[-1], H - 2 * len(layer_list), W - 2 * len(layer_list))
    assert out.shape == exp_shape, out.shape
    max_err = float(jnp.max(jnp.abs(out - ref)))
    assert jnp.allclose(out, ref, atol=1e-3, rtol=1e-3), max_err
    print("KERNEL_OK")
</pallas_src>

<mosaic_0001>
module attributes {stable_mosaic.version = 11 : i64} {
  func.func @_bn_fold_relu_kernel(%arg0: i32, %arg1: memref<1x8x224xf32, #tpu.memory_space<vmem>>, %arg2: memref<8x1xf32, #tpu.memory_space<vmem>>, %arg3: memref<8x1xf32, #tpu.memory_space<vmem>>, %arg4: memref<8x1xf32, #tpu.memory_space<vmem>>, %arg5: memref<8x1xf32, #tpu.memory_space<vmem>>, %arg6: memref<1x8x224xf32, #tpu.memory_space<vmem>>) attributes {dimension_semantics = [#tpu.dimension_semantics<parallel>], iteration_bounds = array<i64: 2>, scalar_prefetch = 0 : i64, scratch_operands = 0 : i64, tpu.core_type = #tpu.core_type<tc>, window_params = [{transform_indices = @transform_0, window_bounds = array<i64: 1, 8, 224>}, {pipeline_mode = #tpu.pipeline_mode<synchronous>, transform_indices = @transform_1, window_bounds = array<i64: 8, 1>}, {pipeline_mode = #tpu.pipeline_mode<synchronous>, transform_indices = @transform_2, window_bounds = array<i64: 8, 1>}, {pipeline_mode = #tpu.pipeline_mode<synchronous>, transform_indices = @transform_3, window_bounds = array<i64: 8, 1>}, {pipeline_mode = #tpu.pipeline_mode<synchronous>, transform_indices = @transform_4, window_bounds = array<i64: 8, 1>}, {transform_indices = @transform_5, window_bounds = array<i64: 1, 8, 224>}]} {
    %c0 = arith.constant 0 : index
    %c0_0 = arith.constant 0 : index
    %0 = vector.load %arg2[%c0, %c0_0] : memref<8x1xf32, #tpu.memory_space<vmem>>, vector<8x1xf32>
    %cst = arith.constant 0.00255102036 : f32
    %1 = vector.broadcast %cst : f32 to vector<8x1xf32>
    %2 = arith.mulf %0, %1 : vector<8x1xf32>
    %c0_1 = arith.constant 0 : index
    %c0_2 = arith.constant 0 : index
    %3 = vector.load %arg3[%c0_1, %c0_2] : memref<8x1xf32, #tpu.memory_space<vmem>>, vector<8x1xf32>
    %cst_3 = arith.constant 0.00255102036 : f32
    %4 = vector.broadcast %cst_3 : f32 to vector<8x1xf32>
    %5 = arith.mulf %3, %4 : vector<8x1xf32>
    %6 = arith.mulf %2, %2 : vector<8x1xf32>
    %7 = arith.subf %5, %6 : vector<8x1xf32>
    %cst_4 = arith.constant 0.000000e+00 : f32
    %8 = vector.broadcast %cst_4 : f32 to vector<8x1xf32>
    %9 = arith.maximumf %7, %8 : vector<8x1xf32>
    %c0_5 = arith.constant 0 : index
    %c0_6 = arith.constant 0 : index
    %10 = vector.load %arg4[%c0_5, %c0_6] : memref<8x1xf32, #tpu.memory_space<vmem>>, vector<8x1xf32>
    %cst_7 = arith.constant 9.99999974E-6 : f32
    %11 = vector.broadcast %cst_7 : f32 to vector<8x1xf32>
    %12 = arith.addf %9, %11 : vector<8x1xf32>
    %13 = math.rsqrt %12 : vector<8x1xf32>
    %14 = arith.mulf %10, %13 : vector<8x1xf32>
    %c0_8 = arith.constant 0 : index
    %c0_9 = arith.constant 0 : index
    %15 = vector.load %arg5[%c0_8, %c0_9] : memref<8x1xf32, #tpu.memory_space<vmem>>, vector<8x1xf32>
    %16 = arith.mulf %2, %14 : vector<8x1xf32>
    %17 = arith.subf %15, %16 : vector<8x1xf32>
    %c0_10 = arith.constant 0 : index
    %c0_11 = arith.constant 0 : index
    %c0_12 = arith.constant 0 : index
    %18 = vector.load %arg1[%c0_10, %c0_11, %c0_12] : memref<1x8x224xf32, #tpu.memory_space<vmem>>, vector<1x8x224xf32>
    %19 = vector.shape_cast %18 : vector<1x8x224xf32> to vector<8x224xf32>
    %20 = vector.broadcast %14 : vector<8x1xf32> to vector<8x224xf32>
    %21 = arith.mulf %19, %20 : vector<8x224xf32>
    %22 = vector.broadcast %17 : vector<8x1xf32> to vector<8x224xf32>
    %23 = arith.addf %21, %22 : vector<8x224xf32>
    %cst_13 = arith.constant 0.000000e+00 : f32
    %24 = vector.broadcast %cst_13 : f32 to vector<8x224xf32>
    %25 = arith.maximumf %23, %24 : vector<8x224xf32>
    %c0_14 = arith.constant 0 : index
    %c0_15 = arith.constant 0 : index
    %c0_16 = arith.constant 0 : index
    %26 = vector.load %arg6[%c0_14, %c0_15, %c0_16] : memref<1x8x224xf32, #tpu.memory_space<vmem>>, vector<1x8x224xf32>
    %27 = vector.shape_cast %26 : vector<1x8x224xf32> to vector<8x224xf32>
    %28 = vector.shape_cast %25 : vector<8x224xf32> to vector<1x8x224xf32>
    tpu.vector_store %arg6[%c0_14, %c0_15, %c0_16], %28 {strides = array<i32>} : memref<1x8x224xf32, #tpu.memory_space<vmem>>, vector<1x8x224xf32>,
    return
  }
  func.func @transform_0(%arg0: i32) -> (i32, i32, i32) {
    %c0_i32 = arith.constant 0 : i32
    %c0_i32_0 = arith.constant 0 : i32
    %c0_i32_1 = arith.constant 0 : i32
    return %arg0, %c0_i32, %c0_i32_0 : i32, i32, i32
  }
  func.func @transform_1(%arg0: i32) -> (i32, i32) {
    %c0_i32 = arith.constant 0 : i32
    %c0_i32_0 = arith.constant 0 : i32
    %c0_i32_1 = arith.constant 0 : i32
    return %c0_i32, %c0_i32_0 : i32, i32
  }
  func.func @transform_2(%arg0: i32) -> (i32, i32) {
    %c0_i32 = arith.constant 0 : i32
    %c0_i32_0 = arith.constant 0 : i32
    %c0_i32_1 = arith.constant 0 : i32
    return %c0_i32, %c0_i32_0 : i32, i32
  }
  func.func @transform_3(%arg0: i32) -> (i32, i32) {
    %c0_i32 = arith.constant 0 : i32
    %c0_i32_0 = arith.constant 0 : i32
    %c0_i32_1 = arith.constant 0 : i32
    return %c0_i32, %c0_i32_0 : i32, i32
  }
  func.func @transform_4(%arg0: i32) -> (i32, i32) {
    %c0_i32 = arith.constant 0 : i32
    %c0_i32_0 = arith.constant 0 : i32
    %c0_i32_1 = arith.constant 0 : i32
    return %c0_i32, %c0_i32_0 : i32, i32
  }
  func.func @transform_5(%arg0: i32) -> (i32, i32, i32) {
    %c0_i32 = arith.constant 0 : i32
    %c0_i32_0 = arith.constant 0 : i32
    %c0_i32_1 = arith.constant 0 : i32
    return %arg0, %c0_i32, %c0_i32_0 : i32, i32, i32
  }
}

module attributes {stable_mosaic.version = 11 : i64} {
  func.func @_conv_stats_kernel(%arg0: i32, %arg1: memref<1x4x256xf32, #tpu.memory_space<vmem>>, %arg2: memref<9x8x4xf32, #tpu.memory_space<vmem>>, %arg3: memref<1x224xf32, #tpu.memory_space<vmem>>, %arg4: memref<1x8x224xf32, #tpu.memory_space<vmem>>, %arg5: memref<8x1xf32, #tpu.memory_space<vmem>>, %arg6: memref<8x1xf32, #tpu.memory_space<vmem>>) attributes {dimension_semantics = [#tpu.dimension_semantics<arbitrary>], iteration_bounds = array<i64: 2>, scalar_prefetch = 0 : i64, scratch_operands = 0 : i64, tpu.core_type = #tpu.core_type<tc>, window_params = [{transform_indices = @transform_0, window_bounds = array<i64: 1, 4, 256>}, {pipeline_mode = #tpu.pipeline_mode<synchronous>, transform_indices = @transform_1, window_bounds = array<i64: 9, 8, 4>}, {pipeline_mode = #tpu.pipeline_mode<synchronous>, transform_indices = @transform_2, window_bounds = array<i64: 1, 224>}, {transform_indices = @transform_3, window_bounds = array<i64: 1, 8, 224>}, {pipeline_mode = #tpu.pipeline_mode<synchronous>, transform_indices = @transform_4, window_bounds = array<i64: 8, 1>}, {pipeline_mode = #tpu.pipeline_mode<synchronous>, transform_indices = @transform_5, window_bounds = array<i64: 8, 1>}]} {
    %c0 = arith.constant 0 : index
    %c0_0 = arith.constant 0 : index
    %c0_1 = arith.constant 0 : index
    %0 = vector.load %arg1[%c0, %c0_0, %c0_1] : memref<1x4x256xf32, #tpu.memory_space<vmem>>, vector<1x4x256xf32>
    %1 = vector.shape_cast %0 : vector<1x4x256xf32> to vector<4x256xf32>
    %cst = arith.constant 0.000000e+00 : f32
    %2 = vector.broadcast %cst : f32 to vector<8x256xf32>
    %c0_2 = arith.constant 0 : index
    %c0_3 = arith.constant 0 : index
    %c0_4 = arith.constant 0 : index
    %3 = vector.load %arg2[%c0_2, %c0_3, %c0_4] : memref<9x8x4xf32, #tpu.memory_space<vmem>>, vector<1x8x4xf32>
    %4 = vector.shape_cast %3 : vector<1x8x4xf32> to vector<8x4xf32>
    %cst_5 = arith.constant dense<0.000000e+00> : vector<8x256xf32>
    %5 = tpu.matmul %4, %1, %cst_5 {dimension_numbers = #tpu.dot_dimension_numbers<[1], [0], [0], [1], [0, 0, 1, 1], [], []>} : vector<8x4xf32>, vector<4x256xf32>, vector<8x256xf32> -> vector<8x256xf32>
    %6 = arith.addf %2, %5 : vector<8x256xf32>
    %7 = vector.extract_strided_slice %1 {offsets = [0, 1], sizes = [4, 255], strides = [1, 1]} : vector<4x256xf32> to vector<4x255xf32>
    %8 = vector.extract_strided_slice %1 {offsets = [0, 0], sizes = [4, 1], strides = [1, 1]} : vector<4x256xf32> to vector<4x1xf32>
    %9 = tpu.concatenate %7, %8 in 1 : vector<4x255xf32>, vector<4x1xf32> -> vector<4x256xf32>
    %c1 = arith.constant 1 : index
    %c0_6 = arith.constant 0 : index
    %c0_7 = arith.constant 0 : index
    %10 = vector.load %arg2[%c1, %c0_6, %c0_7] : memref<9x8x4xf32, #tpu.memory_space<vmem>>, vector<1x8x4xf32>
    %11 = vector.shape_cast %10 : vector<1x8x4xf32> to vector<8x4xf32>
    %cst_8 = arith.constant dense<0.000000e+00> : vector<8x256xf32>
    %12 = tpu.matmul %11, %9, %cst_8 {dimension_numbers = #tpu.dot_dimension_numbers<[1], [0], [0], [1], [0, 0, 1, 1], [], []>} : vector<8x4xf32>, vector<4x256xf32>, vector<8x256xf32> -> vector<8x256xf32>
    %13 = arith.addf %6, %12 : vector<8x256xf32>
    %14 = vector.extract_strided_slice %1 {offsets = [0, 2], sizes = [4, 254], strides = [1, 1]} : vector<4x256xf32> to vector<4x254xf32>
    %15 = vector.extract_strided_slice %1 {offsets = [0, 0], sizes = [4, 2], strides = [1, 1]} : vector<4x256xf32> to vector<4x2xf32>
    %16 = tpu.concatenate %14, %15 in 1 : vector<4x254xf32>, vector<4x2xf32> -> vector<4x256xf32>
    %c2 = arith.constant 2 : index
    %c0_9 = arith.constant 0 : index
    %c0_10 = arith.constant 0 : index
    %17 = vector.load %arg2[%c2, %c0_9, %c0_10] : memref<9x8x4xf32, #tpu.memory_space<vmem>>, vector<1x8x4xf32>
    %18 = vector.shape_cast %17 : vector<1x8x4xf32> to vector<8x4xf32>
    %cst_11 = arith.constant dense<0.000000e+00> : vector<8x256xf32>
    %19 = tpu.matmul %18, %16, %cst_11 {dimension_numbers = #tpu.dot_dimension_numbers<[1], [0], [0], [1], [0, 0, 1, 1], [], []>} : vector<8x4xf32>, vector<4x256xf32>, vector<8x256xf32> -> vector<8x256xf32>
    %20 = arith.addf %13, %19 : vector<8x256xf32>
    %21 = vector.extract_strided_slice %1 {offsets = [0, 16], sizes = [4, 240], strides = [1, 1]} : vector<4x256xf32> to vector<4x240xf32>
    %22 = vector.extract_strided_slice %1 {offsets = [0, 0], sizes = [4, 16], strides = [1, 1]} : vector<4x256xf32> to vector<4x16xf32>
    %23 = tpu.concatenate %21, %22 in 1 : vector<4x240xf32>, vector<4x16xf32> -> vector<4x256xf32>
    %c3 = arith.constant 3 : index
    %c0_12 = arith.constant 0 : index
    %c0_13 = arith.constant 0 : index
    %24 = vector.load %arg2[%c3, %c0_12, %c0_13] : memref<9x8x4xf32, #tpu.memory_space<vmem>>, vector<1x8x4xf32>
    %25 = vector.shape_cast %24 : vector<1x8x4xf32> to vector<8x4xf32>
    %cst_14 = arith.constant dense<0.000000e+00> : vector<8x256xf32>
    %26 = tpu.matmul %25, %23, %cst_14 {dimension_numbers = #tpu.dot_dimension_numbers<[1], [0], [0], [1], [0, 0, 1, 1], [], []>} : vector<8x4xf32>, vector<4x256xf32>, vector<8x256xf32> -> vector<8x256xf32>
    %27 = arith.addf %20, %26 : vector<8x256xf32>
    %28 = vector.extract_strided_slice %1 {offsets = [0, 17], sizes = [4, 239], strides = [1, 1]} : vector<4x256xf32> to vector<4x239xf32>
    %29 = vector.extract_strided_slice %1 {offsets = [0, 0], sizes = [4, 17], strides = [1, 1]} : vector<4x256xf32> to vector<4x17xf32>
    %30 = tpu.concatenate %28, %29 in 1 : vector<4x239xf32>, vector<4x17xf32> -> vector<4x256xf32>
    %c4 = arith.constant 4 : index
    %c0_15 = arith.constant 0 : index
    %c0_16 = arith.constant 0 : index
    %31 = vector.load %arg2[%c4, %c0_15, %c0_16] : memref<9x8x4xf32, #tpu.memory_space<vmem>>, vector<1x8x4xf32>
    %32 = vector.shape_cast %31 : vector<1x8x4xf32> to vector<8x4xf32>
    %cst_17 = arith.constant dense<0.000000e+00> : vector<8x256xf32>
    %33 = tpu.matmul %32, %30, %cst_17 {dimension_numbers = #tpu.dot_dimension_numbers<[1], [0], [0], [1], [0, 0, 1, 1], [], []>} : vector<8x4xf32>, vector<4x256xf32>, vector<8x256xf32> -> vector<8x256xf32>
    %34 = arith.addf %27, %33 : vector<8x256xf32>
    %35 = vector.extract_strided_slice %1 {offsets = [0, 18], sizes = [4, 238], strides = [1, 1]} : vector<4x256xf32> to vector<4x238xf32>
    %36 = vector.extract_strided_slice %1 {offsets = [0, 0], sizes = [4, 18], strides = [1, 1]} : vector<4x256xf32> to vector<4x18xf32>
    %37 = tpu.concatenate %35, %36 in 1 : vector<4x238xf32>, vector<4x18xf32> -> vector<4x256xf32>
    %c5 = arith.constant 5 : index
    %c0_18 = arith.constant 0 : index
    %c0_19 = arith.constant 0 : index
    %38 = vector.load %arg2[%c5, %c0_18, %c0_19] : memref<9x8x4xf32, #tpu.memory_space<vmem>>, vector<1x8x4xf32>
    %39 = vector.shape_cast %38 : vector<1x8x4xf32> to vector<8x4xf32>
    %cst_20 = arith.constant dense<0.000000e+00> : vector<8x256xf32>
    %40 = tpu.matmul %39, %37, %cst_20 {dimension_numbers = #tpu.dot_dimension_numbers<[1], [0], [0], [1], [0, 0, 1, 1], [], []>} : vector<8x4xf32>, vector<4x256xf32>, vector<8x256xf32> -> vector<8x256xf32>
    %41 = arith.addf %34, %40 : vector<8x256xf32>
    %42 = vector.extract_strided_slice %1 {offsets = [0, 32], sizes = [4, 224], strides = [1, 1]} : vector<4x256xf32> to vector<4x224xf32>
    %43 = vector.extract_strided_slice %1 {offsets = [0, 0], sizes = [4, 32], strides = [1, 1]} : vector<4x256xf32> to vector<4x32xf32>
    %44 = tpu.concatenate %42, %43 in 1 : vector<4x224xf32>, vector<4x32xf32> -> vector<4x256xf32>
    %c6 = arith.constant 6 : index
    %c0_21 = arith.constant 0 : index
    %c0_22 = arith.constant 0 : index
    %45 = vector.load %arg2[%c6, %c0_21, %c0_22] : memref<9x8x4xf32, #tpu.memory_space<vmem>>, vector<1x8x4xf32>
    %46 = vector.shape_cast %45 : vector<1x8x4xf32> to vector<8x4xf32>
    %cst_23 = arith.constant dense<0.000000e+00> : vector<8x256xf32>
    %47 = tpu.matmul %46, %44, %cst_23 {dimension_numbers = #tpu.dot_dimension_numbers<[1], [0], [0], [1], [0, 0, 1, 1], [], []>} : vector<8x4xf32>, vector<4x256xf32>, vector<8x256xf32> -> vector<8x256xf32>
    %48 = arith.addf %41, %47 : vector<8x256xf32>
    %49 = vector.extract_strided_slice %1 {offsets = [0, 33], sizes = [4, 223], strides = [1, 1]} : vector<4x256xf32> to vector<4x223xf32>
    %50 = vector.extract_strided_slice %1 {offsets = [0, 0], sizes = [4, 33], strides = [1, 1]} : vector<4x256xf32> to vector<4x33xf32>
    %51 = tpu.concatenate %49, %50 in 1 : vector<4x223xf32>, vector<4x33xf32> -> vector<4x256xf32>
    %c7 = arith.constant 7 : index
    %c0_24 = arith.constant 0 : index
    %c0_25 = arith.constant 0 : index
    %52 = vector.load %arg2[%c7, %c0_24, %c0_25] : memref<9x8x4xf32, #tpu.memory_space<vmem>>, vector<1x8x4xf32>
    %53 = vector.shape_cast %52 : vector<1x8x4xf32> to vector<8x4xf32>
    %cst_26 = arith.constant dense<0.000000e+00> : vector<8x256xf32>
    %54 = tpu.matmul %53, %51, %cst_26 {dimension_numbers = #tpu.dot_dimension_numbers<[1], [0], [0], [1], [0, 0, 1, 1], [], []>} : vector<8x4xf32>, vector<4x256xf32>, vector<8x256xf32> -> vector<8x256xf32>
    %55 = arith.addf %48, %54 : vector<8x256xf32>
    %56 = vector.extract_strided_slice %1 {offsets = [0, 34], sizes = [4, 222], strides = [1, 1]} : vector<4x256xf32> to vector<4x222xf32>
    %57 = vector.extract_strided_slice %1 {offsets = [0, 0], sizes = [4, 34], strides = [1, 1]} : vector<4x256xf32> to vector<4x34xf32>
    %58 = tpu.concatenate %56, %57 in 1 : vector<4x222xf32>, vector<4x34xf32> -> vector<4x256xf32>
    %c8 = arith.constant 8 : index
    %c0_27 = arith.constant 0 : index
    %c0_28 = arith.constant 0 : index
    %59 = vector.load %arg2[%c8, %c0_27, %c0_28] : memref<9x8x4xf32, #tpu.memory_space<vmem>>, vector<1x8x4xf32>
    %60 = vector.shape_cast %59 : vector<1x8x4xf32> to vector<8x4xf32>
    %cst_29 = arith.constant dense<0.000000e+00> : vector<8x256xf32>
    %61 = tpu.matmul %60, %58, %cst_29 {dimension_numbers = #tpu.dot_dimension_numbers<[1], [0], [0], [1], [0, 0, 1, 1], [], []>} : vector<8x4xf32>, vector<4x256xf32>, vector<8x256xf32> -> vector<8x256xf32>
    %62 = arith.addf %55, %61 : vector<8x256xf32>
    %63 = vector.extract_strided_slice %62 {offsets = [0, 0], sizes = [8, 224], strides = [1, 1]} : vector<8x256xf32> to vector<8x224xf32>
    %c0_30 = arith.constant 0 : index
    %c0_31 = arith.constant 0 : index
    %c0_32 = arith.constant 0 : index
    %64 = vector.load %arg4[%c0_30, %c0_31, %c0_32] : memref<1x8x224xf32, #tpu.memory_space<vmem>>, vector<1x8x224xf32>
    %65 = vector.shape_cast %64 : vector<1x8x224xf32> to vector<8x224xf32>
    %66 = vector.shape_cast %63 : vector<8x224xf32> to vector<1x8x224xf32>
    tpu.vector_store %arg4[%c0_30, %c0_31, %c0_32], %66 {strides = array<i32>} : memref<1x8x224xf32, #tpu.memory_space<vmem>>, vector<1x8x224xf32>,
    %c0_33 = arith.constant 0 : index
    %c0_34 = arith.constant 0 : index
    %67 = vector.load %arg3[%c0_33, %c0_34] : memref<1x224xf32, #tpu.memory_space<vmem>>, vector<1x224xf32>
    %68 = vector.broadcast %67 : vector<1x224xf32> to vector<8x224xf32>
    %69 = arith.mulf %63, %68 : vector<8x224xf32>
    %cst_35 = arith.constant dense<0.000000e+00> : vector<8xf32>
    %70 = vector.multi_reduction <add>, %69, %cst_35 [1] : vector<8x224xf32> to vector<8xf32>
    %71 = vector.shape_cast %70 : vector<8xf32> to vector<8x1xf32>
    %72 = arith.mulf %69, %69 : vector<8x224xf32>
    %cst_36 = arith.constant dense<0.000000e+00> : vector<8xf32>
    %73 = vector.multi_reduction <add>, %72, %cst_36 [1] : vector<8x224xf32> to vector<8xf32>
    %74 = vector.shape_cast %73 : vector<8xf32> to vector<8x1xf32>
    %c0_i32 = arith.constant 0 : i32
    %75 = arith.cmpi eq, %arg0, %c0_i32 : i32
    %76 = arith.extui %75 : i1 to i32
    %c0_i32_37 = arith.constant 0 : i32
    %77 = arith.cmpi ne, %76, %c0_i32_37 : i32
    scf.if %77 {
      %cst_46 = arith.constant 0.000000e+00 : f32
      %84 = vector.broadcast %cst_46 : f32 to vector<8x1xf32>
      %c0_47 = arith.constant 0 : index
      %c0_48 = arith.constant 0 : index
      %85 = vector.load %arg5[%c0_47, %c0_48] : memref<8x1xf32, #tpu.memory_space<vmem>>, vector<8x1xf32>
      tpu.vector_store %arg5[%c0_47, %c0_48], %84 {strides = array<i32>} : memref<8x1xf32, #tpu.memory_space<vmem>>, vector<8x1xf32>,
      %cst_49 = arith.constant 0.000000e+00 : f32
      %86 = vector.broadcast %cst_49 : f32 to vector<8x1xf32>
      %c0_50 = arith.constant 0 : index
      %c0_51 = arith.constant 0 : index
      %87 = vector.load %arg6[%c0_50, %c0_51] : memref<8x1xf32, #tpu.memory_space<vmem>>, vector<8x1xf32>
      tpu.vector_store %arg6[%c0_50, %c0_51], %86 {strides = array<i32>} : memref<8x1xf32, #tpu.memory_space<vmem>>, vector<8x1xf32>,
    } else {
    }
    %c0_38 = arith.constant 0 : index
    %c0_39 = arith.constant 0 : index
    %78 = vector.load %arg5[%c0_38, %c0_39] : memref<8x1xf32, #tpu.memory_space<vmem>>, vector<8x1xf32>
    %79 = arith.addf %78, %71 : vector<8x1xf32>
    %c0_40 = arith.constant 0 : index
    %c0_41 = arith.constant 0 : index
    %80 = vector.load %arg5[%c0_40, %c0_41] : memref<8x1xf32, #tpu.memory_space<vmem>>, vector<8x1xf32>
    tpu.vector_store %arg5[%c0_40, %c0_41], %79 {strides = array<i32>} : memref<8x1xf32, #tpu.memory_space<vmem>>, vector<8x1xf32>,
    %c0_42 = arith.constant 0 : index
    %c0_43 = arith.constant 0 : index
    %81 = vector.load %arg6[%c0_42, %c0_43] : memref<8x1xf32, #tpu.memory_space<vmem>>, vector<8x1xf32>
    %82 = arith.addf %81, %74 : vector<8x1xf32>
    %c0_44 = arith.constant 0 : index
    %c0_45 = arith.constant 0 : index
    %83 = vector.load %arg6[%c0_44, %c0_45] : memref<8x1xf32, #tpu.memory_space<vmem>>, vector<8x1xf32>
    tpu.vector_store %arg6[%c0_44, %c0_45], %82 {strides = array<i32>} : memref<8x1xf32, #tpu.memory_space<vmem>>, vector<8x1xf32>,
    return
  }
  func.func @transform_0(%arg0: i32) -> (i32, i32, i32) {
    %c0_i32 = arith.constant 0 : i32
    %c0_i32_0 = arith.constant 0 : i32
    %c0_i32_1 = arith.constant 0 : i32
    return %arg0, %c0_i32, %c0_i32_0 : i32, i32, i32
  }
  func.func @transform_1(%arg0: i32) -> (i32, i32, i32) {
    %c0_i32 = arith.constant 0 : i32
    %c0_i32_0 = arith.constant 0 : i32
    %c0_i32_1 = arith.constant 0 : i32
    %c0_i32_2 = arith.constant 0 : i32
    return %c0_i32, %c0_i32_0, %c0_i32_1 : i32, i32, i32
  }
  func.func @transform_2(%arg0: i32) -> (i32, i32) {
    %c0_i32 = arith.constant 0 : i32
    %c0_i32_0 = arith.constant 0 : i32
    %c0_i32_1 = arith.constant 0 : i32
    return %c0_i32, %c0_i32_0 : i32, i32
  }
  func.func @transform_3(%arg0: i32) -> (i32, i32, i32) {
    %c0_i32 = arith.constant 0 : i32
    %c0_i32_0 = arith.constant 0 : i32
    %c0_i32_1 = arith.constant 0 : i32
    return %arg0, %c0_i32, %c0_i32_0 : i32, i32, i32
  }
  func.func @transform_4(%arg0: i32) -> (i32, i32) {
    %c0_i32 = arith.constant 0 : i32
    %c0_i32_0 = arith.constant 0 : i32
    %c0_i32_1 = arith.constant 0 : i32
    return %c0_i32, %c0_i32_0 : i32, i32
  }
  func.func @transform_5(%arg0: i32) -> (i32, i32) {
    %c0_i32 = arith.constant 0 : i32
    %c0_i32_0 = arith.constant 0 : i32
    %c0_i32_1 = arith.constant 0 : i32
    return %c0_i32, %c0_i32_0 : i32, i32
  }
}

module attributes {stable_mosaic.version = 11 : i64} {
  func.func @_bn_fold_relu_kernel(%arg0: i32, %arg1: memref<1x16x192xf32, #tpu.memory_space<vmem>>, %arg2: memref<16x1xf32, #tpu.memory_space<vmem>>, %arg3: memref<16x1xf32, #tpu.memory_space<vmem>>, %arg4: memref<16x1xf32, #tpu.memory_space<vmem>>, %arg5: memref<16x1xf32, #tpu.memory_space<vmem>>, %arg6: memref<1x16x192xf32, #tpu.memory_space<vmem>>) attributes {dimension_semantics = [#tpu.dimension_semantics<parallel>], iteration_bounds = array<i64: 2>, scalar_prefetch = 0 : i64, scratch_operands = 0 : i64, tpu.core_type = #tpu.core_type<tc>, window_params = [{transform_indices = @transform_0, window_bounds = array<i64: 1, 16, 192>}, {pipeline_mode = #tpu.pipeline_mode<synchronous>, transform_indices = @transform_1, window_bounds = array<i64: 16, 1>}, {pipeline_mode = #tpu.pipeline_mode<synchronous>, transform_indices = @transform_2, window_bounds = array<i64: 16, 1>}, {pipeline_mode = #tpu.pipeline_mode<synchronous>, transform_indices = @transform_3, window_bounds = array<i64: 16, 1>}, {pipeline_mode = #tpu.pipeline_mode<synchronous>, transform_indices = @transform_4, window_bounds = array<i64: 16, 1>}, {transform_indices = @transform_5, window_bounds = array<i64: 1, 16, 192>}]} {
    %c0 = arith.constant 0 : index
    %c0_0 = arith.constant 0 : index
    %0 = vector.load %arg2[%c0, %c0_0] : memref<16x1xf32, #tpu.memory_space<vmem>>, vector<16x1xf32>
    %cst = arith.constant 0.00347222225 : f32
    %1 = vector.broadcast %cst : f32 to vector<16x1xf32>
    %2 = arith.mulf %0, %1 : vector<16x1xf32>
    %c0_1 = arith.constant 0 : index
    %c0_2 = arith.constant 0 : index
    %3 = vector.load %arg3[%c0_1, %c0_2] : memref<16x1xf32, #tpu.memory_space<vmem>>, vector<16x1xf32>
    %cst_3 = arith.constant 0.00347222225 : f32
    %4 = vector.broadcast %cst_3 : f32 to vector<16x1xf32>
    %5 = arith.mulf %3, %4 : vector<16x1xf32>
    %6 = arith.mulf %2, %2 : vector<16x1xf32>
    %7 = arith.subf %5, %6 : vector<16x1xf32>
    %cst_4 = arith.constant 0.000000e+00 : f32
    %8 = vector.broadcast %cst_4 : f32 to vector<16x1xf32>
    %9 = arith.maximumf %7, %8 : vector<16x1xf32>
    %c0_5 = arith.constant 0 : index
    %c0_6 = arith.constant 0 : index
    %10 = vector.load %arg4[%c0_5, %c0_6] : memref<16x1xf32, #tpu.memory_space<vmem>>, vector<16x1xf32>
    %cst_7 = arith.constant 9.99999974E-6 : f32
    %11 = vector.broadcast %cst_7 : f32 to vector<16x1xf32>
    %12 = arith.addf %9, %11 : vector<16x1xf32>
    %13 = math.rsqrt %12 : vector<16x1xf32>
    %14 = arith.mulf %10, %13 : vector<16x1xf32>
    %c0_8 = arith.constant 0 : index
    %c0_9 = arith.constant 0 : index
    %15 = vector.load %arg5[%c0_8, %c0_9] : memref<16x1xf32, #tpu.memory_space<vmem>>, vector<16x1xf32>
    %16 = arith.mulf %2, %14 : vector<16x1xf32>
    %17 = arith.subf %15, %16 : vector<16x1xf32>
    %c0_10 = arith.constant 0 : index
    %c0_11 = arith.constant 0 : index
    %c0_12 = arith.constant 0 : index
    %18 = vector.load %arg1[%c0_10, %c0_11, %c0_12] : memref<1x16x192xf32, #tpu.memory_space<vmem>>, vector<1x16x192xf32>
    %19 = vector.shape_cast %18 : vector<1x16x192xf32> to vector<16x192xf32>
    %20 = vector.broadcast %14 : vector<16x1xf32> to vector<16x192xf32>
    %21 = arith.mulf %19, %20 : vector<16x192xf32>
    %22 = vector.broadcast %17 : vector<16x1xf32> to vector<16x192xf32>
    %23 = arith.addf %21, %22 : vector<16x192xf32>
    %cst_13 = arith.constant 0.000000e+00 : f32
    %24 = vector.broadcast %cst_13 : f32 to vector<16x192xf32>
    %25 = arith.maximumf %23, %24 : vector<16x192xf32>
    %c0_14 = arith.constant 0 : index
    %c0_15 = arith.constant 0 : index
    %c0_16 = arith.constant 0 : index
    %26 = vector.load %arg6[%c0_14, %c0_15, %c0_16] : memref<1x16x192xf32, #tpu.memory_space<vmem>>, vector<1x16x192xf32>
    %27 = vector.shape_cast %26 : vector<1x16x192xf32> to vector<16x192xf32>
    %28 = vector.shape_cast %25 : vector<16x192xf32> to vector<1x16x192xf32>
    tpu.vector_store %arg6[%c0_14, %c0_15, %c0_16], %28 {strides = array<i32>} : memref<1x16x192xf32, #tpu.memory_space<vmem>>, vector<1x16x192xf32>,
    return
  }
  func.func @transform_0(%arg0: i32) -> (i32, i32, i32) {
    %c0_i32 = arith.constant 0 : i32
    %c0_i32_0 = arith.constant 0 : i32
    %c0_i32_1 = arith.constant 0 : i32
    return %arg0, %c0_i32, %c0_i32_0 : i32, i32, i32
  }
  func.func @transform_1(%arg0: i32) -> (i32, i32) {
    %c0_i32 = arith.constant 0 : i32
    %c0_i32_0 = arith.constant 0 : i32
    %c0_i32_1 = arith.constant 0 : i32
    return %c0_i32, %c0_i32_0 : i32, i32
  }
  func.func @transform_2(%arg0: i32) -> (i32, i32) {
    %c0_i32 = arith.constant 0 : i32
    %c0_i32_0 = arith.constant 0 : i32
    %c0_i32_1 = arith.constant 0 : i32
    return %c0_i32, %c0_i32_0 : i32, i32
  }
  func.func @transform_3(%arg0: i32) -> (i32, i32) {
    %c0_i32 = arith.constant 0 : i32
    %c0_i32_0 = arith.constant 0 : i32
    %c0_i32_1 = arith.constant 0 : i32
    return %c0_i32, %c0_i32_0 : i32, i32
  }
  func.func @transform_4(%arg0: i32) -> (i32, i32) {
    %c0_i32 = arith.constant 0 : i32
    %c0_i32_0 = arith.constant 0 : i32
    %c0_i32_1 = arith.constant 0 : i32
    return %c0_i32, %c0_i32_0 : i32, i32
  }
  func.func @transform_5(%arg0: i32) -> (i32, i32, i32) {
    %c0_i32 = arith.constant 0 : i32
    %c0_i32_0 = arith.constant 0 : i32
    %c0_i32_1 = arith.constant 0 : i32
    return %arg0, %c0_i32, %c0_i32_0 : i32, i32, i32
  }
}

module attributes {stable_mosaic.version = 11 : i64} {
  func.func @_conv_stats_kernel(%arg0: i32, %arg1: memref<1x8x224xf32, #tpu.memory_space<vmem>>, %arg2: memref<9x16x8xf32, #tpu.memory_space<vmem>>, %arg3: memref<1x192xf32, #tpu.memory_space<vmem>>, %arg4: memref<1x16x192xf32, #tpu.memory_space<vmem>>, %arg5: memref<16x1xf32, #tpu.memory_space<vmem>>, %arg6: memref<16x1xf32, #tpu.memory_space<vmem>>) attributes {dimension_semantics = [#tpu.dimension_semantics<arbitrary>], iteration_bounds = array<i64: 2>, scalar_prefetch = 0 : i64, scratch_operands = 0 : i64, tpu.core_type = #tpu.core_type<tc>, window_params = [{transform_indices = @transform_0, window_bounds = array<i64: 1, 8, 224>}, {pipeline_mode = #tpu.pipeline_mode<synchronous>, transform_indices = @transform_1, window_bounds = array<i64: 9, 16, 8>}, {pipeline_mode = #tpu.pipeline_mode<synchronous>, transform_indices = @transform_2, window_bounds = array<i64: 1, 192>}, {transform_indices = @transform_3, window_bounds = array<i64: 1, 16, 192>}, {pipeline_mode = #tpu.pipeline_mode<synchronous>, transform_indices = @transform_4, window_bounds = array<i64: 16, 1>}, {pipeline_mode = #tpu.pipeline_mode<synchronous>, transform_indices = @transform_5, window_bounds = array<i64: 16, 1>}]} {
    %c0 = arith.constant 0 : index
    %c0_0 = arith.constant 0 : index
    %c0_1 = arith.constant 0 : index
    %0 = vector.load %arg1[%c0, %c0_0, %c0_1] : memref<1x8x224xf32, #tpu.memory_space<vmem>>, vector<1x8x224xf32>
    %1 = vector.shape_cast %0 : vector<1x8x224xf32> to vector<8x224xf32>
    %cst = arith.constant 0.000000e+00 : f32
    %2 = vector.broadcast %cst : f32 to vector<16x224xf32>
    %c0_2 = arith.constant 0 : index
    %c0_3 = arith.constant 0 : index
    %c0_4 = arith.constant 0 : index
    %3 = vector.load %arg2[%c0_2, %c0_3, %c0_4] : memref<9x16x8xf32, #tpu.memory_space<vmem>>, vector<1x16x8xf32>
    %4 = vector.shape_cast %3 : vector<1x16x8xf32> to vector<16x8xf32>
    %cst_5 = arith.constant dense<0.000000e+00> : vector<16x224xf32>
    %5 = tpu.matmul %4, %1, %cst_5 {dimension_numbers = #tpu.dot_dimension_numbers<[1], [0], [0], [1], [0, 0, 1, 1], [], []>} : vector<16x8xf32>, vector<8x224xf32>, vector<16x224xf32> -> vector<16x224xf32>
    %6 = arith.addf %2, %5 : vector<16x224xf32>
    %7 = vector.extract_strided_slice %1 {offsets = [0, 1], sizes = [8, 223], strides = [1, 1]} : vector<8x224xf32> to vector<8x223xf32>
    %8 = vector.extract_strided_slice %1 {offsets = [0, 0], sizes = [8, 1], strides = [1, 1]} : vector<8x224xf32> to vector<8x1xf32>
    %9 = tpu.concatenate %7, %8 in 1 : vector<8x223xf32>, vector<8x1xf32> -> vector<8x224xf32>
    %c1 = arith.constant 1 : index
    %c0_6 = arith.constant 0 : index
    %c0_7 = arith.constant 0 : index
    %10 = vector.load %arg2[%c1, %c0_6, %c0_7] : memref<9x16x8xf32, #tpu.memory_space<vmem>>, vector<1x16x8xf32>
    %11 = vector.shape_cast %10 : vector<1x16x8xf32> to vector<16x8xf32>
    %cst_8 = arith.constant dense<0.000000e+00> : vector<16x224xf32>
    %12 = tpu.matmul %11, %9, %cst_8 {dimension_numbers = #tpu.dot_dimension_numbers<[1], [0], [0], [1], [0, 0, 1, 1], [], []>} : vector<16x8xf32>, vector<8x224xf32>, vector<16x224xf32> -> vector<16x224xf32>
    %13 = arith.addf %6, %12 : vector<16x224xf32>
    %14 = vector.extract_strided_slice %1 {offsets = [0, 2], sizes = [8, 222], strides = [1, 1]} : vector<8x224xf32> to vector<8x222xf32>
    %15 = vector.extract_strided_slice %1 {offsets = [0, 0], sizes = [8, 2], strides = [1, 1]} : vector<8x224xf32> to vector<8x2xf32>
    %16 = tpu.concatenate %14, %15 in 1 : vector<8x222xf32>, vector<8x2xf32> -> vector<8x224xf32>
    %c2 = arith.constant 2 : index
    %c0_9 = arith.constant 0 : index
    %c0_10 = arith.constant 0 : index
    %17 = vector.load %arg2[%c2, %c0_9, %c0_10] : memref<9x16x8xf32, #tpu.memory_space<vmem>>, vector<1x16x8xf32>
    %18 = vector.shape_cast %17 : vector<1x16x8xf32> to vector<16x8xf32>
    %cst_11 = arith.constant dense<0.000000e+00> : vector<16x224xf32>
    %19 = tpu.matmul %18, %16, %cst_11 {dimension_numbers = #tpu.dot_dimension_numbers<[1], [0], [0], [1], [0, 0, 1, 1], [], []>} : vector<16x8xf32>, vector<8x224xf32>, vector<16x224xf32> -> vector<16x224xf32>
    %20 = arith.addf %13, %19 : vector<16x224xf32>
    %21 = vector.extract_strided_slice %1 {offsets = [0, 16], sizes = [8, 208], strides = [1, 1]} : vector<8x224xf32> to vector<8x208xf32>
    %22 = vector.extract_strided_slice %1 {offsets = [0, 0], sizes = [8, 16], strides = [1, 1]} : vector<8x224xf32> to vector<8x16xf32>
    %23 = tpu.concatenate %21, %22 in 1 : vector<8x208xf32>, vector<8x16xf32> -> vector<8x224xf32>
    %c3 = arith.constant 3 : index
    %c0_12 = arith.constant 0 : index
    %c0_13 = arith.constant 0 : index
    %24 = vector.load %arg2[%c3, %c0_12, %c0_13] : memref<9x16x8xf32, #tpu.memory_space<vmem>>, vector<1x16x8xf32>
    %25 = vector.shape_cast %24 : vector<1x16x8xf32> to vector<16x8xf32>
    %cst_14 = arith.constant dense<0.000000e+00> : vector<16x224xf32>
    %26 = tpu.matmul %25, %23, %cst_14 {dimension_numbers = #tpu.dot_dimension_numbers<[1], [0], [0], [1], [0, 0, 1, 1], [], []>} : vector<16x8xf32>, vector<8x224xf32>, vector<16x224xf32> -> vector<16x224xf32>
    %27 = arith.addf %20, %26 : vector<16x224xf32>
    %28 = vector.extract_strided_slice %1 {offsets = [0, 17], sizes = [8, 207], strides = [1, 1]} : vector<8x224xf32> to vector<8x207xf32>
    %29 = vector.extract_strided_slice %1 {offsets = [0, 0], sizes = [8, 17], strides = [1, 1]} : vector<8x224xf32> to vector<8x17xf32>
    %30 = tpu.concatenate %28, %29 in 1 : vector<8x207xf32>, vector<8x17xf32> -> vector<8x224xf32>
    %c4 = arith.constant 4 : index
    %c0_15 = arith.constant 0 : index
    %c0_16 = arith.constant 0 : index
    %31 = vector.load %arg2[%c4, %c0_15, %c0_16] : memref<9x16x8xf32, #tpu.memory_space<vmem>>, vector<1x16x8xf32>
    %32 = vector.shape_cast %31 : vector<1x16x8xf32> to vector<16x8xf32>
    %cst_17 = arith.constant dense<0.000000e+00> : vector<16x224xf32>
    %33 = tpu.matmul %32, %30, %cst_17 {dimension_numbers = #tpu.dot_dimension_numbers<[1], [0], [0], [1], [0, 0, 1, 1], [], []>} : vector<16x8xf32>, vector<8x224xf32>, vector<16x224xf32> -> vector<16x224xf32>
    %34 = arith.addf %27, %33 : vector<16x224xf32>
    %35 = vector.extract_strided_slice %1 {offsets = [0, 18], sizes = [8, 206], strides = [1, 1]} : vector<8x224xf32> to vector<8x206xf32>
    %36 = vector.extract_strided_slice %1 {offsets = [0, 0], sizes = [8, 18], strides = [1, 1]} : vector<8x224xf32> to vector<8x18xf32>
    %37 = tpu.concatenate %35, %36 in 1 : vector<8x206xf32>, vector<8x18xf32> -> vector<8x224xf32>
    %c5 = arith.constant 5 : index
    %c0_18 = arith.constant 0 : index
    %c0_19 = arith.constant 0 : index
    %38 = vector.load %arg2[%c5, %c0_18, %c0_19] : memref<9x16x8xf32, #tpu.memory_space<vmem>>, vector<1x16x8xf32>
    %39 = vector.shape_cast %38 : vector<1x16x8xf32> to vector<16x8xf32>
    %cst_20 = arith.constant dense<0.000000e+00> : vector<16x224xf32>
    %40 = tpu.matmul %39, %37, %cst_20 {dimension_numbers = #tpu.dot_dimension_numbers<[1], [0], [0], [1], [0, 0, 1, 1], [], []>} : vector<16x8xf32>, vector<8x224xf32>, vector<16x224xf32> -> vector<16x224xf32>
    %41 = arith.addf %34, %40 : vector<16x224xf32>
    %42 = vector.extract_strided_slice %1 {offsets = [0, 32], sizes = [8, 192], strides = [1, 1]} : vector<8x224xf32> to vector<8x192xf32>
    %43 = vector.extract_strided_slice %1 {offsets = [0, 0], sizes = [8, 32], strides = [1, 1]} : vector<8x224xf32> to vector<8x32xf32>
    %44 = tpu.concatenate %42, %43 in 1 : vector<8x192xf32>, vector<8x32xf32> -> vector<8x224xf32>
    %c6 = arith.constant 6 : index
    %c0_21 = arith.constant 0 : index
    %c0_22 = arith.constant 0 : index
    %45 = vector.load %arg2[%c6, %c0_21, %c0_22] : memref<9x16x8xf32, #tpu.memory_space<vmem>>, vector<1x16x8xf32>
    %46 = vector.shape_cast %45 : vector<1x16x8xf32> to vector<16x8xf32>
    %cst_23 = arith.constant dense<0.000000e+00> : vector<16x224xf32>
    %47 = tpu.matmul %46, %44, %cst_23 {dimension_numbers = #tpu.dot_dimension_numbers<[1], [0], [0], [1], [0, 0, 1, 1], [], []>} : vector<16x8xf32>, vector<8x224xf32>, vector<16x224xf32> -> vector<16x224xf32>
    %48 = arith.addf %41, %47 : vector<16x224xf32>
    %49 = vector.extract_strided_slice %1 {offsets = [0, 33], sizes = [8, 191], strides = [1, 1]} : vector<8x224xf32> to vector<8x191xf32>
    %50 = vector.extract_strided_slice %1 {offsets = [0, 0], sizes = [8, 33], strides = [1, 1]} : vector<8x224xf32> to vector<8x33xf32>
    %51 = tpu.concatenate %49, %50 in 1 : vector<8x191xf32>, vector<8x33xf32> -> vector<8x224xf32>
    %c7 = arith.constant 7 : index
    %c0_24 = arith.constant 0 : index
    %c0_25 = arith.constant 0 : index
    %52 = vector.load %arg2[%c7, %c0_24, %c0_25] : memref<9x16x8xf32, #tpu.memory_space<vmem>>, vector<1x16x8xf32>
    %53 = vector.shape_cast %52 : vector<1x16x8xf32> to vector<16x8xf32>
    %cst_26 = arith.constant dense<0.000000e+00> : vector<16x224xf32>
    %54 = tpu.matmul %53, %51, %cst_26 {dimension_numbers = #tpu.dot_dimension_numbers<[1], [0], [0], [1], [0, 0, 1, 1], [], []>} : vector<16x8xf32>, vector<8x224xf32>, vector<16x224xf32> -> vector<16x224xf32>
    %55 = arith.addf %48, %54 : vector<16x224xf32>
    %56 = vector.extract_strided_slice %1 {offsets = [0, 34], sizes = [8, 190], strides = [1, 1]} : vector<8x224xf32> to vector<8x190xf32>
    %57 = vector.extract_strided_slice %1 {offsets = [0, 0], sizes = [8, 34], strides = [1, 1]} : vector<8x224xf32> to vector<8x34xf32>
    %58 = tpu.concatenate %56, %57 in 1 : vector<8x190xf32>, vector<8x34xf32> -> vector<8x224xf32>
    %c8 = arith.constant 8 : index
    %c0_27 = arith.constant 0 : index
    %c0_28 = arith.constant 0 : index
    %59 = vector.load %arg2[%c8, %c0_27, %c0_28] : memref<9x16x8xf32, #tpu.memory_space<vmem>>, vector<1x16x8xf32>
    %60 = vector.shape_cast %59 : vector<1x16x8xf32> to vector<16x8xf32>
    %cst_29 = arith.constant dense<0.000000e+00> : vector<16x224xf32>
    %61 = tpu.matmul %60, %58, %cst_29 {dimension_numbers = #tpu.dot_dimension_numbers<[1], [0], [0], [1], [0, 0, 1, 1], [], []>} : vector<16x8xf32>, vector<8x224xf32>, vector<16x224xf32> -> vector<16x224xf32>
    %62 = arith.addf %55, %61 : vector<16x224xf32>
    %63 = vector.extract_strided_slice %62 {offsets = [0, 0], sizes = [16, 192], strides = [1, 1]} : vector<16x224xf32> to vector<16x192xf32>
    %c0_30 = arith.constant 0 : index
    %c0_31 = arith.constant 0 : index
    %c0_32 = arith.constant 0 : index
    %64 = vector.load %arg4[%c0_30, %c0_31, %c0_32] : memref<1x16x192xf32, #tpu.memory_space<vmem>>, vector<1x16x192xf32>
    %65 = vector.shape_cast %64 : vector<1x16x192xf32> to vector<16x192xf32>
    %66 = vector.shape_cast %63 : vector<16x192xf32> to vector<1x16x192xf32>
    tpu.vector_store %arg4[%c0_30, %c0_31, %c0_32], %66 {strides = array<i32>} : memref<1x16x192xf32, #tpu.memory_space<vmem>>, vector<1x16x192xf32>,
    %c0_33 = arith.constant 0 : index
    %c0_34 = arith.constant 0 : index
    %67 = vector.load %arg3[%c0_33, %c0_34] : memref<1x192xf32, #tpu.memory_space<vmem>>, vector<1x192xf32>
    %68 = vector.broadcast %67 : vector<1x192xf32> to vector<16x192xf32>
    %69 = arith.mulf %63, %68 : vector<16x192xf32>
    %cst_35 = arith.constant dense<0.000000e+00> : vector<16xf32>
    %70 = vector.multi_reduction <add>, %69, %cst_35 [1] : vector<16x192xf32> to vector<16xf32>
    %71 = vector.shape_cast %70 : vector<16xf32> to vector<16x1xf32>
    %72 = arith.mulf %69, %69 : vector<16x192xf32>
    %cst_36 = arith.constant dense<0.000000e+00> : vector<16xf32>
    %73 = vector.multi_reduction <add>, %72, %cst_36 [1] : vector<16x192xf32> to vector<16xf32>
    %74 = vector.shape_cast %73 : vector<16xf32> to vector<16x1xf32>
    %c0_i32 = arith.constant 0 : i32
    %75 = arith.cmpi eq, %arg0, %c0_i32 : i32
    %76 = arith.extui %75 : i1 to i32
    %c0_i32_37 = arith.constant 0 : i32
    %77 = arith.cmpi ne, %76, %c0_i32_37 : i32
    scf.if %77 {
      %cst_46 = arith.constant 0.000000e+00 : f32
      %84 = vector.broadcast %cst_46 : f32 to vector<16x1xf32>
      %c0_47 = arith.constant 0 : index
      %c0_48 = arith.constant 0 : index
      %85 = vector.load %arg5[%c0_47, %c0_48] : memref<16x1xf32, #tpu.memory_space<vmem>>, vector<16x1xf32>
      tpu.vector_store %arg5[%c0_47, %c0_48], %84 {strides = array<i32>} : memref<16x1xf32, #tpu.memory_space<vmem>>, vector<16x1xf32>,
      %cst_49 = arith.constant 0.000000e+00 : f32
      %86 = vector.broadcast %cst_49 : f32 to vector<16x1xf32>
      %c0_50 = arith.constant 0 : index
      %c0_51 = arith.constant 0 : index
      %87 = vector.load %arg6[%c0_50, %c0_51] : memref<16x1xf32, #tpu.memory_space<vmem>>, vector<16x1xf32>
      tpu.vector_store %arg6[%c0_50, %c0_51], %86 {strides = array<i32>} : memref<16x1xf32, #tpu.memory_space<vmem>>, vector<16x1xf32>,
    } else {
    }
    %c0_38 = arith.constant 0 : index
    %c0_39 = arith.constant 0 : index
    %78 = vector.load %arg5[%c0_38, %c0_39] : memref<16x1xf32, #tpu.memory_space<vmem>>, vector<16x1xf32>
    %79 = arith.addf %78, %71 : vector<16x1xf32>
    %c0_40 = arith.constant 0 : index
    %c0_41 = arith.constant 0 : index
    %80 = vector.load %arg5[%c0_40, %c0_41] : memref<16x1xf32, #tpu.memory_space<vmem>>, vector<16x1xf32>
    tpu.vector_store %arg5[%c0_40, %c0_41], %79 {strides = array<i32>} : memref<16x1xf32, #tpu.memory_space<vmem>>, vector<16x1xf32>,
    %c0_42 = arith.constant 0 : index
    %c0_43 = arith.constant 0 : index
    %81 = vector.load %arg6[%c0_42, %c0_43] : memref<16x1xf32, #tpu.memory_space<vmem>>, vector<16x1xf32>
    %82 = arith.addf %81, %74 : vector<16x1xf32>
    %c0_44 = arith.constant 0 : index
    %c0_45 = arith.constant 0 : index
    %83 = vector.load %arg6[%c0_44, %c0_45] : memref<16x1xf32, #tpu.memory_space<vmem>>, vector<16x1xf32>
    tpu.vector_store %arg6[%c0_44, %c0_45], %82 {strides = array<i32>} : memref<16x1xf32, #tpu.memory_space<vmem>>, vector<16x1xf32>,
    return
  }
  func.func @transform_0(%arg0: i32) -> (i32, i32, i32) {
    %c0_i32 = arith.constant 0 : i32
    %c0_i32_0 = arith.constant 0 : i32
    %c0_i32_1 = arith.constant 0 : i32
    return %arg0, %c0_i32, %c0_i32_0 : i32, i32, i32
  }
  func.func @transform_1(%arg0: i32) -> (i32, i32, i32) {
    %c0_i32 = arith.constant 0 : i32
    %c0_i32_0 = arith.constant 0 : i32
    %c0_i32_1 = arith.constant 0 : i32
    %c0_i32_2 = arith.constant 0 : i32
    return %c0_i32, %c0_i32_0, %c0_i32_1 : i32, i32, i32
  }
  func.func @transform_2(%arg0: i32) -> (i32, i32) {
    %c0_i32 = arith.constant 0 : i32
    %c0_i32_0 = arith.constant 0 : i32
    %c0_i32_1 = arith.constant 0 : i32
    return %c0_i32, %c0_i32_0 : i32, i32
  }
  func.func @transform_3(%arg0: i32) -> (i32, i32, i32) {
    %c0_i32 = arith.constant 0 : i32
    %c0_i32_0 = arith.constant 0 : i32
    %c0_i32_1 = arith.constant 0 : i32
    return %arg0, %c0_i32, %c0_i32_0 : i32, i32, i32
  }
  func.func @transform_4(%arg0: i32) -> (i32, i32) {
    %c0_i32 = arith.constant 0 : i32
    %c0_i32_0 = arith.constant 0 : i32
    %c0_i32_1 = arith.constant 0 : i32
    return %c0_i32, %c0_i32_0 : i32, i32
  }
  func.func @transform_5(%arg0: i32) -> (i32, i32) {
    %c0_i32 = arith.constant 0 : i32
    %c0_i32_0 = arith.constant 0 : i32
    %c0_i32_1 = arith.constant 0 : i32
    return %c0_i32, %c0_i32_0 : i32, i32
  }
}

</mosaic_0001>

<llo_original>
// kernel: layer_forward.7
$region0: #{layer_forward.7}
  #allocation0 [shape = 'u32[]', space=smem, size = 0x4, offset = 0x4, fixed_abs, tag = 'smem constant byte address 0x4 - core index']
  #allocation1 [shape = 'u32[144,128]{1,0:T(1,128)}', space=vmem, size = 0x12000, scoped, tag = 'internal scratch']
  %s0 = inlined_call_operand.vmem [shape: f32[2,16,192], index: 0, kind: input, shape index: {}]
  %s1 = inlined_call_operand.vmem [shape: f32[16,1], index: 1, kind: input, shape index: {}]
  %s2 = inlined_call_operand.vmem [shape: f32[16,1], index: 2, kind: input, shape index: {}]
  %s3 = inlined_call_operand.vmem [shape: f32[16,1], index: 3, kind: input, shape index: {}]
  %s4 = inlined_call_operand.vmem [shape: f32[16,1], index: 4, kind: input, shape index: {}]
  %s5 = inlined_call_operand.vmem [shape: f32[2,16,192], index: 5, kind: output, shape index: {}]
  %s6 = sld [smem:[#allocation0]]
  $region53: #{layer_forward.7} parent=0
    _
  %s8 = ssub.s32 1, %s6
  %s9 = scalar_select 0, %s8, %s6
  loop: start=0, step=1, limit=4
  $region2: #{layer_forward.7} parent=0 // loop_pre_header
    _
  $region3: #{layer_forward.7} parent=0 // loop_header
    %s11 = sphi 0, %s15
    %p12 = scmp.ge.s32.totalorder %s11, 4
    %s21 = sphi 0, %s23
    %s24 = sphi 0, %s21
    %s25 = sphi 0, %s24
    %s41 = sphi 0, %s25
    %s45 = sphi 0, %s45
    %s47 = sphi 0, %s45
    %s48 = sphi 0, %s47
    %s62 = sphi 0, %s48
    %s66 = sphi 0, %s66
    %s68 = sphi 0, %s66
    %s69 = sphi 0, %s68
    %s83 = sphi 0, %s69
    %s87 = sphi 0, %s87
    %s89 = sphi 0, %s87
    %s90 = sphi 0, %s89
    %s104 = sphi 0, %s90
    %s108 = sphi 0, %s108
    %s110 = sphi 0, %s108
    %s111 = sphi 0, %s110
    %s125 = sphi 0, %s111
    %s131 = sphi 0, %s133
    %s134 = sphi 0, %s131
    %s135 = sphi 0, %s134
    %s151 = sphi 0, %s135
  $region4: #{layer_forward.7} parent=0 // loop_header_branch
    %14 = sbr.rel (%p12) target = $region8
  $region5: #{layer_forward.7} parent=0 // loop_body
    %s16 = ssub.s32 %s11, 1
    %s17 = ssub.s32 %s11, 2
    %s18 = sadd.s32 %s11, 1
    %s19 = ssub.s32 %s11, %s18
    %p20 = scmp.eq.s32.totalorder %s19, 0
    %s22 = sadd.s32 %s21, 1
    %s23 = scalar_select %p20, %s21, %s22
    %p26 = pneg %p20
    %p27 = scmp.eq.s32.totalorder %s11, 1
    %p28 = por %p26, %p27
    %p29 = scmp.ne.s32.totalorder %s21, %s24
    %p30 = scmp.eq.s32.totalorder %s11, 0
    %p31 = por %p29, %p30
    %p32 = scmp.ne.s32.totalorder %s21, %s24
    %p33 = scmp.eq.s32.totalorder %s16, 1
    %p34 = por %p32, %p33
    %p35 = scmp.ne.s32.totalorder %s24, %s25
    %p36 = scmp.eq.s32.totalorder %s16, 0
    %p37 = por %p35, %p36
    %p38 = scmp.ne.s32.totalorder %s24, %s25
    %p39 = scmp.eq.s32.totalorder %s17, 1
    %p40 = por %p38, %p39
    %p42 = scmp.ne.s32.totalorder %s25, %s41
    %p43 = scmp.eq.s32.totalorder %s17, 0
    %p44 = por %p42, %p43
    %s46 = sadd.s32 %s45, 1
    %p49 = scmp.eq.s32.totalorder %s11, 1
    %p50 = scmp.ne.s32.totalorder %s45, %s47
    %p51 = scmp.eq.s32.totalorder %s11, 0
    %p52 = por %p50, %p51
    %p53 = scmp.ne.s32.totalorder %s45, %s47
    %p54 = scmp.eq.s32.totalorder %s16, 1
    %p55 = por %p53, %p54
    %p56 = scmp.ne.s32.totalorder %s47, %s48
    %p57 = scmp.eq.s32.totalorder %s16, 0
    %p58 = por %p56, %p57
    %p59 = scmp.ne.s32.totalorder %s47, %s48
    %p60 = scmp.eq.s32.totalorder %s17, 1
    %p61 = por %p59, %p60
    %p63 = scmp.ne.s32.totalorder %s48, %s62
    %p64 = scmp.eq.s32.totalorder %s17, 0
    %p65 = por %p63, %p64
    %s67 = sadd.s32 %s66, 1
    %p70 = scmp.eq.s32.totalorder %s11, 1
    %p71 = scmp.ne.s32.totalorder %s66, %s68
    %p72 = scmp.eq.s32.totalorder %s11, 0
    %p73 = por %p71, %p72
    %p74 = scmp.ne.s32.totalorder %s66, %s68
    %p75 = scmp.eq.s32.totalorder %s16, 1
    %p76 = por %p74, %p75
    %p77 = scmp.ne.s32.totalorder %s68, %s69
    %p78 = scmp.eq.s32.totalorder %s16, 0
    %p79 = por %p77, %p78
    %p80 = scmp.ne.s32.totalorder %s68, %s69
    %p81 = scmp.eq.s32.totalorder %s17, 1
    %p82 = por %p80, %p81
    %p84 = scmp.ne.s32.totalorder %s69, %s83
    %p85 = scmp.eq.s32.totalorder %s17, 0
    %p86 = por %p84, %p85
    %s88 = sadd.s32 %s87, 1
    %p91 = scmp.eq.s32.totalorder %s11, 1
    %p92 = scmp.ne.s32.totalorder %s87, %s89
    %p93 = scmp.eq.s32.totalorder %s11, 0
    %p94 = por %p92, %p93
    %p95 = scmp.ne.s32.totalorder %s87, %s89
    %p96 = scmp.eq.s32.totalorder %s16, 1
    %p97 = por %p95, %p96
    %p98 = scmp.ne.s32.totalorder %s89, %s90
    %p99 = scmp.eq.s32.totalorder %s16, 0
    %p100 = por %p98, %p99
    %p101 = scmp.ne.s32.totalorder %s89, %s90
    %p102 = scmp.eq.s32.totalorder %s17, 1
    %p103 = por %p101, %p102
    %p105 = scmp.ne.s32.totalorder %s90, %s104
    %p106 = scmp.eq.s32.totalorder %s17, 0
    %p107 = por %p105, %p106
    %s109 = sadd.s32 %s108, 1
    %p112 = scmp.eq.s32.totalorder %s11, 1
    %p113 = scmp.ne.s32.totalorder %s108, %s110
    %p114 = scmp.eq.s32.totalorder %s11, 0
    %p115 = por %p113, %p114
    %p116 = scmp.ne.s32.totalorder %s108, %s110
    %p117 = scmp.eq.s32.totalorder %s16, 1
    %p118 = por %p116, %p117
    %p119 = scmp.ne.s32.totalorder %s110, %s111
    %p120 = scmp.eq.s32.totalorder %s16, 0
    %p121 = por %p119, %p120
    %p122 = scmp.ne.s32.totalorder %s110, %s111
    %p123 = scmp.eq.s32.totalorder %s17, 1
    %p124 = por %p122, %p123
    %p126 = scmp.ne.s32.totalorder %s111, %s125
    %p127 = scmp.eq.s32.totalorder %s17, 0
    %p128 = por %p126, %p127
    %s129 = ssub.s32 %s11, %s18
    %p130 = scmp.eq.s32.totalorder %s129, 0
    %s132 = sadd.s32 %s131, 1
    %s133 = scalar_select %p130, %s131, %s132
    %p136 = pneg %p130
    %p137 = scmp.eq.s32.totalorder %s11, 1
    %p138 = por %p136, %p137
    %p139 = scmp.ne.s32.totalorder %s131, %s134
    %p140 = scmp.eq.s32.totalorder %s11, 0
    %p141 = por %p139, %p140
    %p142 = scmp.ne.s32.totalorder %s131, %s134
    %p143 = scmp.eq.s32.totalorder %s16, 1
    %p144 = por %p142, %p143
    %p145 = scmp.ne.s32.totalorder %s134, %s135
    %p146 = scmp.eq.s32.totalorder %s16, 0
    %p147 = por %p145, %p146
    %p148 = scmp.ne.s32.totalorder %s134, %s135
    %p149 = scmp.eq.s32.totalorder %s17, 1
    %p150 = por %p148, %p149
    %p152 = scmp.ne.s32.totalorder %s135, %s151
    %p153 = scmp.eq.s32.totalorder %s17, 0
    %p154 = por %p152, %p153
    %p155 = scmp.le.s32.totalorder 1, %s11
    %p156 = scmp.lt.s32.totalorder %s11, 3
    %p157 = pnand %p155, %p156
    %p158 = pneg %p157
    // Predicated region
    $region9: #{layer_forward.7} parent=5 // pred_check
      _
    $region10: #{layer_forward.7} parent=5 // pred_check_branch
      %160 = sbr.rel (%p157) target = $region12
    $region11: #{layer_forward.7} parent=5 // pred_region
      %s161 = ssub.s32 %s11, 1
      // Predicated region
      $region13: #{layer_forward.7} parent=11 // pred_check
        %p162 = pneg %p58
      $region14: #{layer_forward.7} parent=11 // pred_check_branch
        %164 = sbr.rel (%p162) target = $region16
      $region15: #{layer_forward.7} parent=11 // pred_region
        _
      $region16: #{layer_forward.7} parent=11 // pred_fallthru
        _
      // Predicated region
      $region17: #{layer_forward.7} parent=11 // pred_check
        %p165 = pneg %p79
      $region18: #{layer_forward.7} parent=11 // pred_check_branch
        %167 = sbr.rel (%p165) target = $region20
      $region19: #{layer_forward.7} parent=11 // pred_region
        _
      $region20: #{layer_forward.7} parent=11 // pred_fallthru
        _
      // Predicated region
      $region21: #{layer_forward.7} parent=11 // pred_check
        %p168 = pneg %p100
      $region22: #{layer_forward.7} parent=11 // pred_check_branch
        %170 = sbr.rel (%p168) target = $region24
      $region23: #{layer_forward.7} parent=11 // pred_region
        _
      $region24: #{layer_forward.7} parent=11 // pred_fallthru
        _
      // Predicated region
      $region25: #{layer_forward.7} parent=11 // pred_check
        %p171 = pneg %p121
      $region26: #{layer_forward.7} parent=11 // pred_check_branch
        %173 = sbr.rel (%p171) target = $region28
      $region27: #{layer_forward.7} parent=11 // pred_region
        _
      $region28: #{layer_forward.7} parent=11 // pred_fallthru
        _
    $region12: #{layer_forward.7} parent=5 // pred_fallthru
      _
    %p174 = scmp.lt.s32.totalorder %s11, 2
    // Predicated region
    $region29: #{layer_forward.7} parent=5 // pred_check
      %p175 = pneg %p174
    $region30: #{layer_forward.7} parent=5 // pred_check_branch
      %177 = sbr.rel (%p175) target = $region32
    $region31: #{layer_forward.7} parent=5 // pred_region
      // Predicated region
      $region33: #{layer_forward.7} parent=31 // pred_check
        %p178 = pneg %p31
      $region34: #{layer_forward.7} parent=31 // pred_check_branch
        %180 = sbr.rel (%p178) target = $region36
      $region35: #{layer_forward.7} parent=31 // pred_region
        %p181 = scmp.lt.s32.totalorder %s11, 1
        %s182 = scalar_select %p181, %s11, 1
        %s183 = smul.addr %s182, 4
        %s184 = smul.addr %s183, 8
        %s185 = scalar_lea.vmem %s0, %s184
      $region36: #{layer_forward.7} parent=31 // pred_fallthru
        _
    $region32: #{layer_forward.7} parent=5 // pred_fallthru
      _
    %p186 = scmp.le.s32.totalorder 1, %s11
    %p187 = scmp.lt.s32.totalorder %s11, 3
    %p188 = pnand %p186, %p187
    %p189 = pneg %p188
    // Predicated region
    $region37: #{layer_forward.7} parent=5 // pred_check
      _
    $region38: #{layer_forward.7} parent=5 // pred_check_branch
      %191 = sbr.rel (%p188) target = $region40
    $region39: #{layer_forward.7} parent=5 // pred_region
      %s192 = ssub.s32 %s11, 1
      %p193 = scmp.lt.s32.totalorder %s16, 1
      %s194 = scalar_select %p193, %s16, 1
      %s195 = smul.addr %s194, 4
      %s196 = smul.addr %s195, 8
      %s197 = scalar_lea.vmem %s0, %s196
      %p198 = pneg %p37
      %p199 = pneg %p34
      %p200 = pneg %p58
      %p201 = pneg %p55
      %p202 = pneg %p79
      %p203 = pneg %p76
      %p204 = pneg %p100
      %p205 = pneg %p97
      %p206 = pneg %p121
      %p207 = pneg %p118
      %p208 = pneg %p147
      %p209 = pneg %p144
      %p210 = scmp.lt.s32.totalorder %s16, 1
      %s211 = scalar_select %p210, %s16, 1
      %s212 = smul.addr %s211, 4
      %s213 = smul.addr %s212, 8
      %s214 = scalar_lea.vmem %s5, %s213
      %p215 = scmp.lt.s32.totalorder %s16, 1
      %s216 = scalar_select %p215, %s16, 1
      %s217 = smul.addr %s216, 4
      %s218 = smul.addr %s217, 8
      %s219 = scalar_lea.vmem %s0, %s218
      %p220 = scmp.lt.s32.totalorder %s16, 1
      %s221 = scalar_select %p220, %s16, 1
      %s222 = smul.addr %s221, 4
      %s223 = smul.addr %s222, 8
      %s224 = scalar_lea.vmem %s5, %s223
      %v225 = vld [vmem:[%s1] sm:$0xff]
      %v226 = vld [vmem:[%s1 + $0x8] sm:$0xff]
      %v227 = vmul.f32 %v225, 0.0034722222
      %v228 = vmul.f32 %v226, 0.0034722222
      %v229 = vld [vmem:[%s2] sm:$0xff]
      %v230 = vld [vmem:[%s2 + $0x8] sm:$0xff]
      %v231 = vmul.f32 %v229, 0.0034722222
      %v232 = vmul.f32 %v230, 0.0034722222
      %v233 = vmul.f32 %v227, %v227
      %v234 = vmul.f32 %v228, %v228
      %v235 = vsub.f32 %v231, %v233
      %v236 = vsub.f32 %v232, %v234
      %v237 = vmax.f32 %v235, 0.0
      %v238 = vmax.f32 %v236, 0.0
      %v239 = vld [vmem:[%s3] sm:$0xff]
      %v240 = vld [vmem:[%s3 + $0x8] sm:$0xff]
      %v241 = vadd.f32 %v237, 1e-05
      %v242 = vadd.f32 %v238, 1e-05
      %v243 = vrsqrt.pop %v241
      %v244 = vrsqrt.pop %v242
      %v245 = vmul.f32 %v239, %v243
      %v246 = vmul.f32 %v240, %v244
      %v247 = vld [vmem:[%s4] sm:$0xff]
      %v248 = vld [vmem:[%s4 + $0x8] sm:$0xff]
      %v249 = vmul.f32 %v227, %v245
      %v250 = vmul.f32 %v228, %v246
      %v251 = vsub.f32 %v247, %v249
      %v252 = vsub.f32 %v248, %v250
      %v253 = vld [vmem:[%s219] sm:$0xff]
      %v254 = vld [vmem:[%s219 + $0x8] sm:$0xff]
      %v255 = vld [vmem:[%s219 + $0x10] sm:$0xff]
      %v256 = vld [vmem:[%s219 + $0x18] sm:$0xff]
      %258 = vset.pattern.permute.xlu0 0
      %259 = vperm.xlu0 %258, %v245
      %v260 = vpop.permute.xlu0 %259
      %263 = vset.pattern.permute.xlu0 0
      %264 = vperm.xlu0 %263, %v246
      %v265 = vpop.permute.xlu0 %264
      %v267 = vmul.f32 %v253, %v260
      %v268 = vmul.f32 %v254, %v260
      %v269 = vmul.f32 %v255, %v265
      %v270 = vmul.f32 %v256, %v265
      %272 = vset.pattern.permute.xlu0 0
      %273 = vperm.xlu0 %272, %v251
      %v274 = vpop.permute.xlu0 %273
      %277 = vset.pattern.permute.xlu0 0
      %278 = vperm.xlu0 %277, %v252
      %v279 = vpop.permute.xlu0 %278
      %v281 = vadd.f32 %v267, %v274
      %v282 = vadd.f32 %v268, %v274
      %v283 = vadd.f32 %v269, %v279
      %v284 = vadd.f32 %v270, %v279
      %v285 = vmax.f32 %v281, 0.0
      %v286 = vmax.f32 %v282, 0.0
      %v287 = vmax.f32 %v283, 0.0
      %v288 = vmax.f32 %v284, 0.0
      %289 = vst [vmem:[%s224] sm:$0xff] %v285
      %vm290 = vcmask 523264
      %291 = vst.msk [vmem:[%s224 + $0x8] sm:$0xff] %vm290, %v286
      %292 = vst [vmem:[%s224 + $0x10] sm:$0xff] %v287
      %293 = vst.msk [vmem:[%s224 + $0x18] sm:$0xff] %vm290, %v288
      %p294 = scmp.lt.s32.totalorder %s16, 1
      %s295 = scalar_select %p294, %s16, 1
      %s296 = smul.addr %s295, 4
      %s297 = smul.addr %s296, 8
      %s298 = scalar_lea.vmem %s5, %s297
      // Predicated region
      $region41: #{layer_forward.7} parent=39 // pred_check
        %p299 = pneg %p144
      $region42: #{layer_forward.7} parent=39 // pred_check_branch
        %301 = sbr.rel (%p299) target = $region44
      $region43: #{layer_forward.7} parent=39 // pred_region
        _
      $region44: #{layer_forward.7} parent=39 // pred_fallthru
        _
    $region40: #{layer_forward.7} parent=5 // pred_fallthru
      _
    %p302 = scmp.le.s32.totalorder 2, %s11
    // Predicated region
    $region45: #{layer_forward.7} parent=5 // pred_check
      %p303 = pneg %p302
    $region46: #{layer_forward.7} parent=5 // pred_check_branch
      %305 = sbr.rel (%p303) target = $region48
    $region47: #{layer_forward.7} parent=5 // pred_region
      %s306 = ssub.s32 %s11, 2
      // Predicated region
      $region49: #{layer_forward.7} parent=47 // pred_check
        %p307 = pneg %p150
      $region50: #{layer_forward.7} parent=47 // pred_check_branch
        %309 = sbr.rel (%p307) target = $region52
      $region51: #{layer_forward.7} parent=47 // pred_region
        %p310 = scmp.lt.s32.totalorder %s17, 1
        %s311 = scalar_select %p310, %s17, 1
        %s312 = smul.addr %s311, 4
        %s313 = smul.addr %s312, 8
        %s314 = scalar_lea.vmem %s5, %s313
      $region52: #{layer_forward.7} parent=47 // pred_fallthru
        _
    $region48: #{layer_forward.7} parent=5 // pred_fallthru
      _
  $region6: #{layer_forward.7} parent=0 // loop_footer
    %s15 = sadd.s32 1, %s11
  $region7: #{layer_forward.7} parent=0 // loop_footer_branch
    %10 = sbr.rel target = $region3
  $region8: #{layer_forward.7} parent=0 // loop_exit
    _

// kernel: layer_forward.5
$region0: #{layer_forward.5}
  #allocation0 [shape = 'u32[]', space=smem, size = 0x4, offset = 0x4, fixed_abs, tag = 'smem constant byte address 0x4 - core index']
  #allocation1 [shape = 'u32[144,128]{1,0:T(1,128)}', space=vmem, size = 0x12000, scoped, tag = 'internal scratch']
  %s0 = inlined_call_operand.vmem [shape: f32[2,8,224], index: 0, kind: input, shape index: {}]
  %s1 = inlined_call_operand.vmem [shape: f32[8,1], index: 1, kind: input, shape index: {}]
  %s2 = inlined_call_operand.vmem [shape: f32[8,1], index: 2, kind: input, shape index: {}]
  %s3 = inlined_call_operand.vmem [shape: f32[8,1], index: 3, kind: input, shape index: {}]
  %s4 = inlined_call_operand.vmem [shape: f32[8,1], index: 4, kind: input, shape index: {}]
  %s5 = inlined_call_operand.vmem [shape: f32[2,8,224], index: 5, kind: output, shape index: {}]
  %s6 = sld [smem:[#allocation0]]
  $region53: #{layer_forward.5} parent=0
    _
  %s8 = ssub.s32 1, %s6
  %s9 = scalar_select 0, %s8, %s6
  loop: start=0, step=1, limit=4
  $region2: #{layer_forward.5} parent=0 // loop_pre_header
    _
  $region3: #{layer_forward.5} parent=0 // loop_header
    %s11 = sphi 0, %s15
    %p12 = scmp.ge.s32.totalorder %s11, 4
    %s21 = sphi 0, %s23
    %s24 = sphi 0, %s21
    %s25 = sphi 0, %s24
    %s41 = sphi 0, %s25
    %s45 = sphi 0, %s45
    %s47 = sphi 0, %s45
    %s48 = sphi 0, %s47
    %s62 = sphi 0, %s48
    %s66 = sphi 0, %s66
    %s68 = sphi 0, %s66
    %s69 = sphi 0, %s68
    %s83 = sphi 0, %s69
    %s87 = sphi 0, %s87
    %s89 = sphi 0, %s87
    %s90 = sphi 0, %s89
    %s104 = sphi 0, %s90
    %s108 = sphi 0, %s108
    %s110 = sphi 0, %s108
    %s111 = sphi 0, %s110
    %s125 = sphi 0, %s111
    %s131 = sphi 0, %s133
    %s134 = sphi 0, %s131
    %s135 = sphi 0, %s134
    %s151 = sphi 0, %s135
  $region4: #{layer_forward.5} parent=0 // loop_header_branch
    %14 = sbr.rel (%p12) target = $region8
  $region5: #{layer_forward.5} parent=0 // loop_body
    %s16 = ssub.s32 %s11, 1
    %s17 = ssub.s32 %s11, 2
    %s18 = sadd.s32 %s11, 1
    %s19 = ssub.s32 %s11, %s18
    %p20 = scmp.eq.s32.totalorder %s19, 0
    %s22 = sadd.s32 %s21, 1
    %s23 = scalar_select %p20, %s21, %s22
    %p26 = pneg %p20
    %p27 = scmp.eq.s32.totalorder %s11, 1
    %p28 = por %p26, %p27
    %p29 = scmp.ne.s32.totalorder %s21, %s24
    %p30 = scmp.eq.s32.totalorder %s11, 0
    %p31 = por %p29, %p30
    %p32 = scmp.ne.s32.totalorder %s21, %s24
    %p33 = scmp.eq.s32.totalorder %s16, 1
    %p34 = por %p32, %p33
    %p35 = scmp.ne.s32.totalorder %s24, %s25
    %p36 = scmp.eq.s32.totalorder %s16, 0
    %p37 = por %p35, %p36
    %p38 = scmp.ne.s32.totalorder %s24, %s25
    %p39 = scmp.eq.s32.totalorder %s17, 1
    %p40 = por %p38, %p39
    %p42 = scmp.ne.s32.totalorder %s25, %s41
    %p43 = scmp.eq.s32.totalorder %s17, 0
    %p44 = por %p42, %p43
    %s46 = sadd.s32 %s45, 1
    %p49 = scmp.eq.s32.totalorder %s11, 1
    %p50 = scmp.ne.s32.totalorder %s45, %s47
    %p51 = scmp.eq.s32.totalorder %s11, 0
    %p52 = por %p50, %p51
    %p53 = scmp.ne.s32.totalorder %s45, %s47
    %p54 = scmp.eq.s32.totalorder %s16, 1
    %p55 = por %p53, %p54
    %p56 = scmp.ne.s32.totalorder %s47, %s48
    %p57 = scmp.eq.s32.totalorder %s16, 0
    %p58 = por %p56, %p57
    %p59 = scmp.ne.s32.totalorder %s47, %s48
    %p60 = scmp.eq.s32.totalorder %s17, 1
    %p61 = por %p59, %p60
    %p63 = scmp.ne.s32.totalorder %s48, %s62
    %p64 = scmp.eq.s32.totalorder %s17, 0
    %p65 = por %p63, %p64
    %s67 = sadd.s32 %s66, 1
    %p70 = scmp.eq.s32.totalorder %s11, 1
    %p71 = scmp.ne.s32.totalorder %s66, %s68
    %p72 = scmp.eq.s32.totalorder %s11, 0
    %p73 = por %p71, %p72
    %p74 = scmp.ne.s32.totalorder %s66, %s68
    %p75 = scmp.eq.s32.totalorder %s16, 1
    %p76 = por %p74, %p75
    %p77 = scmp.ne.s32.totalorder %s68, %s69
    %p78 = scmp.eq.s32.totalorder %s16, 0
    %p79 = por %p77, %p78
    %p80 = scmp.ne.s32.totalorder %s68, %s69
    %p81 = scmp.eq.s32.totalorder %s17, 1
    %p82 = por %p80, %p81
    %p84 = scmp.ne.s32.totalorder %s69, %s83
    %p85 = scmp.eq.s32.totalorder %s17, 0
    %p86 = por %p84, %p85
    %s88 = sadd.s32 %s87, 1
    %p91 = scmp.eq.s32.totalorder %s11, 1
    %p92 = scmp.ne.s32.totalorder %s87, %s89
    %p93 = scmp.eq.s32.totalorder %s11, 0
    %p94 = por %p92, %p93
    %p95 = scmp.ne.s32.totalorder %s87, %s89
    %p96 = scmp.eq.s32.totalorder %s16, 1
    %p97 = por %p95, %p96
    %p98 = scmp.ne.s32.totalorder %s89, %s90
    %p99 = scmp.eq.s32.totalorder %s16, 0
    %p100 = por %p98, %p99
    %p101 = scmp.ne.s32.totalorder %s89, %s90
    %p102 = scmp.eq.s32.totalorder %s17, 1
    %p103 = por %p101, %p102
    %p105 = scmp.ne.s32.totalorder %s90, %s104
    %p106 = scmp.eq.s32.totalorder %s17, 0
    %p107 = por %p105, %p106
    %s109 = sadd.s32 %s108, 1
    %p112 = scmp.eq.s32.totalorder %s11, 1
    %p113 = scmp.ne.s32.totalorder %s108, %s110
    %p114 = scmp.eq.s32.totalorder %s11, 0
    %p115 = por %p113, %p114
    %p116 = scmp.ne.s32.totalorder %s108, %s110
    %p117 = scmp.eq.s32.totalorder %s16, 1
    %p118 = por %p116, %p117
    %p119 = scmp.ne.s32.totalorder %s110, %s111
    %p120 = scmp.eq.s32.totalorder %s16, 0
    %p121 = por %p119, %p120
    %p122 = scmp.ne.s32.totalorder %s110, %s111
    %p123 = scmp.eq.s32.totalorder %s17, 1
    %p124 = por %p122, %p123
    %p126 = scmp.ne.s32.totalorder %s111, %s125
    %p127 = scmp.eq.s32.totalorder %s17, 0
    %p128 = por %p126, %p127
    %s129 = ssub.s32 %s11, %s18
    %p130 = scmp.eq.s32.totalorder %s129, 0
    %s132 = sadd.s32 %s131, 1
    %s133 = scalar_select %p130, %s131, %s132
    %p136 = pneg %p130
    %p137 = scmp.eq.s32.totalorder %s11, 1
    %p138 = por %p136, %p137
    %p139 = scmp.ne.s32.totalorder %s131, %s134
    %p140 = scmp.eq.s32.totalorder %s11, 0
    %p141 = por %p139, %p140
    %p142 = scmp.ne.s32.totalorder %s131, %s134
    %p143 = scmp.eq.s32.totalorder %s16, 1
    %p144 = por %p142, %p143
    %p145 = scmp.ne.s32.totalorder %s134, %s135
    %p146 = scmp.eq.s32.totalorder %s16, 0
    %p147 = por %p145, %p146
    %p148 = scmp.ne.s32.totalorder %s134, %s135
    %p149 = scmp.eq.s32.totalorder %s17, 1
    %p150 = por %p148, %p149
    %p152 = scmp.ne.s32.totalorder %s135, %s151
    %p153 = scmp.eq.s32.totalorder %s17, 0
    %p154 = por %p152, %p153
    %p155 = scmp.le.s32.totalorder 1, %s11
    %p156 = scmp.lt.s32.totalorder %s11, 3
    %p157 = pnand %p155, %p156
    %p158 = pneg %p157
    // Predicated region
    $region9: #{layer_forward.5} parent=5 // pred_check
      _
    $region10: #{layer_forward.5} parent=5 // pred_check_branch
      %160 = sbr.rel (%p157) target = $region12
    $region11: #{layer_forward.5} parent=5 // pred_region
      %s161 = ssub.s32 %s11, 1
      // Predicated region
      $region13: #{layer_forward.5} parent=11 // pred_check
        %p162 = pneg %p58
      $region14: #{layer_forward.5} parent=11 // pred_check_branch
        %164 = sbr.rel (%p162) target = $region16
      $region15: #{layer_forward.5} parent=11 // pred_region
        _
      $region16: #{layer_forward.5} parent=11 // pred_fallthru
        _
      // Predicated region
      $region17: #{layer_forward.5} parent=11 // pred_check
        %p165 = pneg %p79
      $region18: #{layer_forward.5} parent=11 // pred_check_branch
        %167 = sbr.rel (%p165) target = $region20
      $region19: #{layer_forward.5} parent=11 // pred_region
        _
      $region20: #{layer_forward.5} parent=11 // pred_fallthru
        _
      // Predicated region
      $region21: #{layer_forward.5} parent=11 // pred_check
        %p168 = pneg %p100
      $region22: #{layer_forward.5} parent=11 // pred_check_branch
        %170 = sbr.rel (%p168) target = $region24
      $region23: #{layer_forward.5} parent=11 // pred_region
        _
      $region24: #{layer_forward.5} parent=11 // pred_fallthru
        _
      // Predicated region
      $region25: #{layer_forward.5} parent=11 // pred_check
        %p171 = pneg %p121
      $region26: #{layer_forward.5} parent=11 // pred_check_branch
        %173 = sbr.rel (%p171) target = $region28
      $region27: #{layer_forward.5} parent=11 // pred_region
        _
      $region28: #{layer_forward.5} parent=11 // pred_fallthru
        _
    $region12: #{layer_forward.5} parent=5 // pred_fallthru
      _
    %p174 = scmp.lt.s32.totalorder %s11, 2
    // Predicated region
    $region29: #{layer_forward.5} parent=5 // pred_check
      %p175 = pneg %p174
    $region30: #{layer_forward.5} parent=5 // pred_check_branch
      %177 = sbr.rel (%p175) target = $region32
    $region31: #{layer_forward.5} parent=5 // pred_region
      // Predicated region
      $region33: #{layer_forward.5} parent=31 // pred_check
        %p178 = pneg %p31
      $region34: #{layer_forward.5} parent=31 // pred_check_branch
        %180 = sbr.rel (%p178) target = $region36
      $region35: #{layer_forward.5} parent=31 // pred_region
        %p181 = scmp.lt.s32.totalorder %s11, 1
        %s182 = scalar_select %p181, %s11, 1
        %s183 = smul.addr %s182, 2
        %s184 = smul.addr %s183, 8
        %s185 = scalar_lea.vmem %s0, %s184
      $region36: #{layer_forward.5} parent=31 // pred_fallthru
        _
    $region32: #{layer_forward.5} parent=5 // pred_fallthru
      _
    %p186 = scmp.le.s32.totalorder 1, %s11
    %p187 = scmp.lt.s32.totalorder %s11, 3
    %p188 = pnand %p186, %p187
    %p189 = pneg %p188
    // Predicated region
    $region37: #{layer_forward.5} parent=5 // pred_check
      _
    $region38: #{layer_forward.5} parent=5 // pred_check_branch
      %191 = sbr.rel (%p188) target = $region40
    $region39: #{layer_forward.5} parent=5 // pred_region
      %s192 = ssub.s32 %s11, 1
      %p193 = scmp.lt.s32.totalorder %s16, 1
      %s194 = scalar_select %p193, %s16, 1
      %s195 = smul.addr %s194, 2
      %s196 = smul.addr %s195, 8
      %s197 = scalar_lea.vmem %s0, %s196
      %p198 = pneg %p37
      %p199 = pneg %p34
      %p200 = pneg %p58
      %p201 = pneg %p55
      %p202 = pneg %p79
      %p203 = pneg %p76
      %p204 = pneg %p100
      %p205 = pneg %p97
      %p206 = pneg %p121
      %p207 = pneg %p118
      %p208 = pneg %p147
      %p209 = pneg %p144
      %p210 = scmp.lt.s32.totalorder %s16, 1
      %s211 = scalar_select %p210, %s16, 1
      %s212 = smul.addr %s211, 2
      %s213 = smul.addr %s212, 8
      %s214 = scalar_lea.vmem %s5, %s213
      %p215 = scmp.lt.s32.totalorder %s16, 1
      %s216 = scalar_select %p215, %s16, 1
      %s217 = smul.addr %s216, 2
      %s218 = smul.addr %s217, 8
      %s219 = scalar_lea.vmem %s0, %s218
      %p220 = scmp.lt.s32.totalorder %s16, 1
      %s221 = scalar_select %p220, %s16, 1
      %s222 = smul.addr %s221, 2
      %s223 = smul.addr %s222, 8
      %s224 = scalar_lea.vmem %s5, %s223
      %v225 = vld [vmem:[%s1] sm:$0xff]
      %v226 = vmul.f32 %v225, 0.0025510204
      %v227 = vld [vmem:[%s2] sm:$0xff]
      %v228 = vmul.f32 %v227, 0.0025510204
      %v229 = vmul.f32 %v226, %v226
      %v230 = vsub.f32 %v228, %v229
      %v231 = vmax.f32 %v230, 0.0
      %v232 = vld [vmem:[%s3] sm:$0xff]
      %v233 = vadd.f32 %v231, 1e-05
      %v234 = vrsqrt.pop %v233
      %v235 = vmul.f32 %v232, %v234
      %v236 = vld [vmem:[%s4] sm:$0xff]
      %v237 = vmul.f32 %v226, %v235
      %v238 = vsub.f32 %v236, %v237
      %v239 = vld [vmem:[%s219] sm:$0xff]
      %v240 = vld [vmem:[%s219 + $0x8] sm:$0xff]
      %242 = vset.pattern.permute.xlu0 0
      %243 = vperm.xlu0 %242, %v235
      %v244 = vpop.permute.xlu0 %243
      %v246 = vmul.f32 %v239, %v244
      %v247 = vmul.f32 %v240, %v244
      %249 = vset.pattern.permute.xlu0 0
      %250 = vperm.xlu0 %249, %v238
      %v251 = vpop.permute.xlu0 %250
      %v253 = vadd.f32 %v246, %v251
      %v254 = vadd.f32 %v247, %v251
      %v255 = vmax.f32 %v253, 0.0
      %v256 = vmax.f32 %v254, 0.0
      %257 = vst [vmem:[%s224] sm:$0xff] %v255
      %vm258 = vcmask 785408
      %259 = vst.msk [vmem:[%s224 + $0x8] sm:$0xff] %vm258, %v256
      %p260 = scmp.lt.s32.totalorder %s16, 1
      %s261 = scalar_select %p260, %s16, 1
      %s262 = smul.addr %s261, 2
      %s263 = smul.addr %s262, 8
      %s264 = scalar_lea.vmem %s5, %s263
      // Predicated region
      $region41: #{layer_forward.5} parent=39 // pred_check
        %p265 = pneg %p144
      $region42: #{layer_forward.5} parent=39 // pred_check_branch
        %267 = sbr.rel (%p265) target = $region44
      $region43: #{layer_forward.5} parent=39 // pred_region
        _
      $region44: #{layer_forward.5} parent=39 // pred_fallthru
        _
    $region40: #{layer_forward.5} parent=5 // pred_fallthru
      _
    %p268 = scmp.le.s32.totalorder 2, %s11
    // Predicated region
    $region45: #{layer_forward.5} parent=5 // pred_check
      %p269 = pneg %p268
    $region46: #{layer_forward.5} parent=5 // pred_check_branch
      %271 = sbr.rel (%p269) target = $region48
    $region47: #{layer_forward.5} parent=5 // pred_region
      %s272 = ssub.s32 %s11, 2
      // Predicated region
      $region49: #{layer_forward.5} parent=47 // pred_check
        %p273 = pneg %p150
      $region50: #{layer_forward.5} parent=47 // pred_check_branch
        %275 = sbr.rel (%p273) target = $region52
      $region51: #{layer_forward.5} parent=47 // pred_region
        %p276 = scmp.lt.s32.totalorder %s17, 1
        %s277 = scalar_select %p276, %s17, 1
        %s278 = smul.addr %s277, 2
        %s279 = smul.addr %s278, 8
        %s280 = scalar_lea.vmem %s5, %s279
      $region52: #{layer_forward.5} parent=47 // pred_fallthru
        _
    $region48: #{layer_forward.5} parent=5 // pred_fallthru
      _
  $region6: #{layer_forward.5} parent=0 // loop_footer
    %s15 = sadd.s32 1, %s11
  $region7: #{layer_forward.5} parent=0 // loop_footer_branch
    %10 = sbr.rel target = $region3
  $region8: #{layer_forward.5} parent=0 // loop_exit
    _

// kernel: layer_forward.4
$region0: #{layer_forward.4}
  #allocation0 [shape = 'u32[]', space=smem, size = 0x4, offset = 0x4, fixed_abs, tag = 'smem constant byte address 0x4 - core index']
  #allocation1 [shape = 'u32[144,128]{1,0:T(1,128)}', space=vmem, size = 0x12000, scoped, tag = 'internal scratch']
  %s0 = inlined_call_operand.vmem [shape: f32[2,4,256], index: 0, kind: input, shape index: {}]
  %s1 = inlined_call_operand.vmem [shape: f32[9,8,4], index: 1, kind: input, shape index: {}]
  %s2 = inlined_call_operand.vmem [shape: f32[1,224], index: 2, kind: input, shape index: {}]
  %s3 = inlined_call_operand.vmem [shape: f32[2,8,224], index: 3, kind: output, shape index: {0}]
  %s4 = inlined_call_operand.vmem [shape: f32[8,1], index: 4, kind: output, shape index: {1}]
  %s5 = inlined_call_operand.vmem [shape: f32[8,1], index: 5, kind: output, shape index: {2}]
  %6 = xla_tuple %s3, %s4, %s5
  %s7 = sld [smem:[#allocation0]]
  $region65: #{layer_forward.4} parent=0
    _
  %s9 = ssub.s32 1, %s7
  %s10 = scalar_select 0, %s9, %s7
  loop: start=0, step=1, limit=4
  $region2: #{layer_forward.4} parent=0 // loop_pre_header
    _
  $region3: #{layer_forward.4} parent=0 // loop_header
    %s12 = sphi 0, %s16
    %p13 = scmp.ge.s32.totalorder %s12, 4
    %s22 = sphi 0, %s24
    %s25 = sphi 0, %s22
    %s26 = sphi 0, %s25
    %s42 = sphi 0, %s26
    %s46 = sphi 0, %s46
    %s48 = sphi 0, %s46
    %s49 = sphi 0, %s48
    %s63 = sphi 0, %s49
    %s67 = sphi 0, %s67
    %s69 = sphi 0, %s67
    %s70 = sphi 0, %s69
    %s84 = sphi 0, %s70
    %s90 = sphi 0, %s92
    %s93 = sphi 0, %s90
    %s94 = sphi 0, %s93
    %s110 = sphi 0, %s94
    %s114 = sphi 0, %s114
    %s116 = sphi 0, %s114
    %s117 = sphi 0, %s116
    %s131 = sphi 0, %s117
    %s135 = sphi 0, %s135
    %s137 = sphi 0, %s135
    %s138 = sphi 0, %s137
    %s152 = sphi 0, %s138
  $region4: #{layer_forward.4} parent=0 // loop_header_branch
    %15 = sbr.rel (%p13) target = $region8
  $region5: #{layer_forward.4} parent=0 // loop_body
    %s17 = ssub.s32 %s12, 1
    %s18 = ssub.s32 %s12, 2
    %s19 = sadd.s32 %s12, 1
    %s20 = ssub.s32 %s12, %s19
    %p21 = scmp.eq.s32.totalorder %s20, 0
    %s23 = sadd.s32 %s22, 1
    %s24 = scalar_select %p21, %s22, %s23
    %p27 = pneg %p21
    %p28 = scmp.eq.s32.totalorder %s12, 1
    %p29 = por %p27, %p28
    %p30 = scmp.ne.s32.totalorder %s22, %s25
    %p31 = scmp.eq.s32.totalorder %s12, 0
    %p32 = por %p30, %p31
    %p33 = scmp.ne.s32.totalorder %s22, %s25
    %p34 = scmp.eq.s32.totalorder %s17, 1
    %p35 = por %p33, %p34
    %p36 = scmp.ne.s32.totalorder %s25, %s26
    %p37 = scmp.eq.s32.totalorder %s17, 0
    %p38 = por %p36, %p37
    %p39 = scmp.ne.s32.totalorder %s25, %s26
    %p40 = scmp.eq.s32.totalorder %s18, 1
    %p41 = por %p39, %p40
    %p43 = scmp.ne.s32.totalorder %s26, %s42
    %p44 = scmp.eq.s32.totalorder %s18, 0
    %p45 = por %p43, %p44
    %s47 = sadd.s32 %s46, 1
    %p50 = scmp.eq.s32.totalorder %s12, 1
    %p51 = scmp.ne.s32.totalorder %s46, %s48
    %p52 = scmp.eq.s32.totalorder %s12, 0
    %p53 = por %p51, %p52
    %p54 = scmp.ne.s32.totalorder %s46, %s48
    %p55 = scmp.eq.s32.totalorder %s17, 1
    %p56 = por %p54, %p55
    %p57 = scmp.ne.s32.totalorder %s48, %s49
    %p58 = scmp.eq.s32.totalorder %s17, 0
    %p59 = por %p57, %p58
    %p60 = scmp.ne.s32.totalorder %s48, %s49
    %p61 = scmp.eq.s32.totalorder %s18, 1
    %p62 = por %p60, %p61
    %p64 = scmp.ne.s32.totalorder %s49, %s63
    %p65 = scmp.eq.s32.totalorder %s18, 0
    %p66 = por %p64, %p65
    %s68 = sadd.s32 %s67, 1
    %p71 = scmp.eq.s32.totalorder %s12, 1
    %p72 = scmp.ne.s32.totalorder %s67, %s69
    %p73 = scmp.eq.s32.totalorder %s12, 0
    %p74 = por %p72, %p73
    %p75 = scmp.ne.s32.totalorder %s67, %s69
    %p76 = scmp.eq.s32.totalorder %s17, 1
    %p77 = por %p75, %p76
    %p78 = scmp.ne.s32.totalorder %s69, %s70
    %p79 = scmp.eq.s32.totalorder %s17, 0
    %p80 = por %p78, %p79
    %p81 = scmp.ne.s32.totalorder %s69, %s70
    %p82 = scmp.eq.s32.totalorder %s18, 1
    %p83 = por %p81, %p82
    %p85 = scmp.ne.s32.totalorder %s70, %s84
    %p86 = scmp.eq.s32.totalorder %s18, 0
    %p87 = por %p85, %p86
    %s88 = ssub.s32 %s12, %s19
    %p89 = scmp.eq.s32.totalorder %s88, 0
    %s91 = sadd.s32 %s90, 1
    %s92 = scalar_select %p89, %s90, %s91
    %p95 = pneg %p89
    %p96 = scmp.eq.s32.totalorder %s12, 1
    %p97 = por %p95, %p96
    %p98 = scmp.ne.s32.totalorder %s90, %s93
    %p99 = scmp.eq.s32.totalorder %s12, 0
    %p100 = por %p98, %p99
    %p101 = scmp.ne.s32.totalorder %s90, %s93
    %p102 = scmp.eq.s32.totalorder %s17, 1
    %p103 = por %p101, %p102
    %p104 = scmp.ne.s32.totalorder %s93, %s94
    %p105 = scmp.eq.s32.totalorder %s17, 0
    %p106 = por %p104, %p105
    %p107 = scmp.ne.s32.totalorder %s93, %s94
    %p108 = scmp.eq.s32.totalorder %s18, 1
    %p109 = por %p107, %p108
    %p111 = scmp.ne.s32.totalorder %s94, %s110
    %p112 = scmp.eq.s32.totalorder %s18, 0
    %p113 = por %p111, %p112
    %s115 = sadd.s32 %s114, 1
    %p118 = scmp.eq.s32.totalorder %s12, 1
    %p119 = scmp.ne.s32.totalorder %s114, %s116
    %p120 = scmp.eq.s32.totalorder %s12, 0
    %p121 = por %p119, %p120
    %p122 = scmp.ne.s32.totalorder %s114, %s116
    %p123 = scmp.eq.s32.totalorder %s17, 1
    %p124 = por %p122, %p123
    %p125 = scmp.ne.s32.totalorder %s116, %s117
    %p126 = scmp.eq.s32.totalorder %s17, 0
    %p127 = por %p125, %p126
    %p128 = scmp.ne.s32.totalorder %s116, %s117
    %p129 = scmp.eq.s32.totalorder %s18, 1
    %p130 = por %p128, %p129
    %p132 = scmp.ne.s32.totalorder %s117, %s131
    %p133 = scmp.eq.s32.totalorder %s18, 0
    %p134 = por %p132, %p133
    %s136 = sadd.s32 %s135, 1
    %p139 = scmp.eq.s32.totalorder %s12, 1
    %p140 = scmp.ne.s32.totalorder %s135, %s137
    %p141 = scmp.eq.s32.totalorder %s12, 0
    %p142 = por %p140, %p141
    %p143 = scmp.ne.s32.totalorder %s135, %s137
    %p144 = scmp.eq.s32.totalorder %s17, 1
    %p145 = por %p143, %p144
    %p146 = scmp.ne.s32.totalorder %s137, %s138
    %p147 = scmp.eq.s32.totalorder %s17, 0
    %p148 = por %p146, %p147
    %p149 = scmp.ne.s32.totalorder %s137, %s138
    %p150 = scmp.eq.s32.totalorder %s18, 1
    %p151 = por %p149, %p150
    %p153 = scmp.ne.s32.totalorder %s138, %s152
    %p154 = scmp.eq.s32.totalorder %s18, 0
    %p155 = por %p153, %p154
    %p156 = scmp.le.s32.totalorder 1, %s12
    %p157 = scmp.lt.s32.totalorder %s12, 3
    %p158 = pnand %p156, %p157
    %p159 = pneg %p158
    // Predicated region
    $region9: #{layer_forward.4} parent=5 // pred_check
      _
    $region10: #{layer_forward.4} parent=5 // pred_check_branch
      %161 = sbr.rel (%p158) target = $region12
    $region11: #{layer_forward.4} parent=5 // pred_region
      %s162 = ssub.s32 %s12, 1
      // Predicated region
      $region13: #{layer_forward.4} parent=11 // pred_check
        %p163 = pneg %p59
      $region14: #{layer_forward.4} parent=11 // pred_check_branch
        %165 = sbr.rel (%p163) target = $region16
      $region15: #{layer_forward.4} parent=11 // pred_region
        _
      $region16: #{layer_forward.4} parent=11 // pred_fallthru
        _
      // Predicated region
      $region17: #{layer_forward.4} parent=11 // pred_check
        %p166 = pneg %p80
      $region18: #{layer_forward.4} parent=11 // pred_check_branch
        %168 = sbr.rel (%p166) target = $region20
      $region19: #{layer_forward.4} parent=11 // pred_region
        _
      $region20: #{layer_forward.4} parent=11 // pred_fallthru
        _
    $region12: #{layer_forward.4} parent=5 // pred_fallthru
      _
    %p169 = scmp.lt.s32.totalorder %s12, 2
    // Predicated region
    $region21: #{layer_forward.4} parent=5 // pred_check
      %p170 = pneg %p169
    $region22: #{layer_forward.4} parent=5 // pred_check_branch
      %172 = sbr.rel (%p170) target = $region24
    $region23: #{layer_forward.4} parent=5 // pred_region
      // Predicated region
      $region25: #{layer_forward.4} parent=23 // pred_check
        %p173 = pneg %p32
      $region26: #{layer_forward.4} parent=23 // pred_check_branch
        %175 = sbr.rel (%p173) target = $region28
      $region27: #{layer_forward.4} parent=23 // pred_region
        %p176 = scmp.lt.s32.totalorder %s12, 1
        %s177 = scalar_select %p176, %s12, 1
        %s178 = smul.addr %s177, 2
        %s179 = smul.addr %s178, 4
        %s180 = scalar_lea.vmem %s0, %s179
      $region28: #{layer_forward.4} parent=23 // pred_fallthru
        _
    $region24: #{layer_forward.4} parent=5 // pred_fallthru
      _
    %p181 = scmp.le.s32.totalorder 1, %s12
    %p182 = scmp.lt.s32.totalorder %s12, 3
    %p183 = pnand %p181, %p182
    %p184 = pneg %p183
    // Predicated region
    $region29: #{layer_forward.4} parent=5 // pred_check
      _
    $region30: #{layer_forward.4} parent=5 // pred_check_branch
      %186 = sbr.rel (%p183) target = $region32
    $region31: #{layer_forward.4} parent=5 // pred_region
      %s187 = ssub.s32 %s12, 1
      %p188 = scmp.lt.s32.totalorder %s17, 1
      %s189 = scalar_select %p188, %s17, 1
      %s190 = smul.addr %s189, 2
      %s191 = smul.addr %s190, 4
      %s192 = scalar_lea.vmem %s0, %s191
      %p193 = pneg %p38
      %p194 = pneg %p35
      %p195 = pneg %p59
      %p196 = pneg %p56
      %p197 = pneg %p80
      %p198 = pneg %p77
      %p199 = pneg %p106
      %p200 = pneg %p103
      %p201 = scmp.lt.s32.totalorder %s17, 1
      %s202 = scalar_select %p201, %s17, 1
      %s203 = smul.addr %s202, 2
      %s204 = smul.addr %s203, 8
      %s205 = scalar_lea.vmem %s3, %s204
      %p206 = pneg %p127
      %p207 = pneg %p124
      %p208 = pneg %p148
      %p209 = pneg %p145
      %p210 = scmp.lt.s32.totalorder %s17, 1
      %s211 = scalar_select %p210, %s17, 1
      %s212 = smul.addr %s211, 2
      %s213 = smul.addr %s212, 4
      %s214 = scalar_lea.vmem %s0, %s213
      %p215 = scmp.lt.s32.totalorder %s17, 1
      %s216 = scalar_select %p215, %s17, 1
      %s217 = smul.addr %s216, 2
      %s218 = smul.addr %s217, 8
      %s219 = scalar_lea.vmem %s3, %s218
      %v220 = vld [vmem:[%s214] sm:$0xff]
      %v221 = vld [vmem:[%s1] sm:$0xff]
      %v223 = vcombine.high %v220, %v220
      %224 = vrot.lane.b32.xlu0 %v220, 127
      %v225 = vpop.permute.xlu0 %224
      %226 = vrot.lane.b32.xlu0 %v223, 127
      %v227 = vpop.permute.xlu0 %226
      %vm228 = vcmask 1039360
      %v229 = vsel %vm228, %v225, %v227
      %v232 = vsel %vm228, %v227, %v225
      %s233 = scalar_lea.vmem %s1, 8
      %v234 = vld [vmem:[%s233] sm:$0xff]
      %vm235 = vcmask 31744
      %v237 = vsel %vm235, %v234, 0
      %vm239 = vcmask 1043456
      %v240 = vsel %vm239, %v229, 0
      %v243 = vsel %vm239, %v232, 0
      %245 = vmatprep.subr.mxu0 %v243
      %246 = vmatpush1.msra.mxu0 %v240
      %247 = vmatprep.subr.mxu0 0.0
      %248 = vmatpush1.msra.mxu0 0.0
      %249 = vmatprep.subr.mxu0 0.0
      %250 = vmatpush1.msra.mxu0 0.0
      %251 = vmatprep.subr.mxu0 0.0
      %252 = vmatpush1.msra.mxu0 0.0
      %253 = vmatprep.subr.mxu0 0.0
      %254 = vmatpush1.msra.mxu0 0.0
      %255 = vmatprep.subr.mxu0 0.0
      %256 = vmatpush1.msra.mxu0 0.0
      %257 = vmatprep.subr.mxu0 0.0
      %258 = vmatpush1.msra.mxu0 0.0
      %259 = vmatprep.subr.mxu0 0.0
      %260 = vmatpush1.msra.mxu0 0.0
      %261 = vmatprep.subr.mxu0 0.0
      %262 = vmatpush1.msra.mxu0 0.0
      %263 = vmatprep.subr.mxu0 0.0
      %264 = vmatpush1.msra.mxu0 0.0
      %265 = vmatprep.subr.mxu0 0.0
      %266 = vmatpush1.msra.mxu0 0.0
      %267 = vmatprep.subr.mxu0 0.0
      %268 = vmatpush1.msra.mxu0 0.0
      %269 = vmatprep.subr.mxu0 0.0
      %270 = vmatpush1.msra.mxu0 0.0
      %271 = vmatprep.subr.mxu0 0.0
      %272 = vmatpush1.msra.mxu0 0.0
      %273 = vmatprep.subr.mxu0 0.0
      %274 = vmatpush1.msra.mxu0 0.0
      %275 = vmatprep.subr.mxu0 0.0
      %276 = vmatpush1.msra.mxu0 0.0
      %277 = vmatprep.subr.mxu0 0.0
      %278 = vmatpush1.msra.mxu0 0.0
      %279 = vmatprep.subr.mxu0 0.0
      %280 = vmatpush1.msra.mxu0 0.0
      %281 = vmatprep.subr.mxu0 0.0
      %282 = vmatpush1.msra.mxu0 0.0
      %283 = vmatprep.subr.mxu0 0.0
      %284 = vmatpush1.msra.mxu0 0.0
      %285 = vmatprep.subr.mxu0 0.0
      %286 = vmatpush1.msra.mxu0 0.0
      %287 = vmatprep.subr.mxu0 0.0
      %288 = vmatpush1.msra.mxu0 0.0
      %289 = vmatprep.subr.mxu0 0.0
      %290 = vmatpush1.msra.mxu0 0.0
      %291 = vmatprep.subr.mxu0 0.0
      %292 = vmatpush1.msra.mxu0 0.0
      %293 = vmatprep.subr.mxu0 0.0
      %294 = vmatpush1.msra.mxu0 0.0
      %295 = vmatprep.subr.mxu0 0.0
      %296 = vmatpush1.msra.mxu0 0.0
      %297 = vmatprep.subr.mxu0 0.0
      %298 = vmatpush1.msra.mxu0 0.0
      %299 = vmatprep.subr.mxu0 0.0
      %300 = vmatpush1.msra.mxu0 0.0
      %301 = vmatprep.subr.mxu0 0.0
      %302 = vmatpush1.msra.mxu0 0.0
      %303 = vmatprep.subr.mxu0 0.0
      %304 = vmatpush1.msra.mxu0 0.0
      %305 = vmatprep.subr.mxu0 0.0
      %306 = vmatpush1.msra.mxu0 0.0
      %307 = vmatprep.subr.mxu0 0.0
      %308 = vmatpush1.msra.mxu0 0.0
      %309 = vmatprep.mubr.f32.mxu0 0.0
      %310 = vmatmul.mubr.f32.gmra.mrb[0].mxu0 %v237
      %v311 = vpop.f32.mrb[0].mxu0
      %v312 = vadd.f32 0.0, %v311
      %v313 = vpop.f32.mrb[0].mxu0
      %v314 = vadd.f32 0.0, %v313
      %315 = vdwg.mxu0
      %v317 = vsel %vm235, %v221, 0
      %v319 = vsel %vm239, %v220, 0
      %v321 = vsel %vm239, %v223, 0
      %323 = vmatprep.subr.mxu0 %v321
      %324 = vmatpush1.msra.mxu0 %v319
      %325 = vmatprep.subr.mxu0 0.0
      %326 = vmatpush1.msra.mxu0 0.0
      %327 = vmatprep.subr.mxu0 0.0
      %328 = vmatpush1.msra.mxu0 0.0
      %329 = vmatprep.subr.mxu0 0.0
      %330 = vmatpush1.msra.mxu0 0.0
      %331 = vmatprep.subr.mxu0 0.0
      %332 = vmatpush1.msra.mxu0 0.0
      %333 = vmatprep.subr.mxu0 0.0
      %334 = vmatpush1.msra.mxu0 0.0
      %335 = vmatprep.subr.mxu0 0.0
      %336 = vmatpush1.msra.mxu0 0.0
      %337 = vmatprep.subr.mxu0 0.0
      %338 = vmatpush1.msra.mxu0 0.0
      %339 = vmatprep.subr.mxu0 0.0
      %340 = vmatpush1.msra.mxu0 0.0
      %341 = vmatprep.subr.mxu0 0.0
      %342 = vmatpush1.msra.mxu0 0.0
      %343 = vmatprep.subr.mxu0 0.0
      %344 = vmatpush1.msra.mxu0 0.0
      %345 = vmatprep.subr.mxu0 0.0
      %346 = vmatpush1.msra.mxu0 0.0
      %347 = vmatprep.subr.mxu0 0.0
      %348 = vmatpush1.msra.mxu0 0.0
      %349 = vmatprep.subr.mxu0 0.0
      %350 = vmatpush1.msra.mxu0 0.0
      %351 = vmatprep.subr.mxu0 0.0
      %352 = vmatpush1.msra.mxu0 0.0
      %353 = vmatprep.subr.mxu0 0.0
      %354 = vmatpush1.msra.mxu0 0.0
      %355 = vmatprep.subr.mxu0 0.0
      %356 = vmatpush1.msra.mxu0 0.0
      %357 = vmatprep.subr.mxu0 0.0
      %358 = vmatpush1.msra.mxu0 0.0
      %359 = vmatprep.subr.mxu0 0.0
      %360 = vmatpush1.msra.mxu0 0.0
      %361 = vmatprep.subr.mxu0 0.0
      %362 = vmatpush1.msra.mxu0 0.0
      %363 = vmatprep.subr.mxu0 0.0
      %364 = vmatpush1.msra.mxu0 0.0
      %365 = vmatprep.subr.mxu0 0.0
      %366 = vmatpush1.msra.mxu0 0.0
      %367 = vmatprep.subr.mxu0 0.0
      %368 = vmatpush1.msra.mxu0 0.0
      %369 = vmatprep.subr.mxu0 0.0
      %370 = vmatpush1.msra.mxu0 0.0
      %371 = vmatprep.subr.mxu0 0.0
      %372 = vmatpush1.msra.mxu0 0.0
      %373 = vmatprep.subr.mxu0 0.0
      %374 = vmatpush1.msra.mxu0 0.0
      %375 = vmatprep.subr.mxu0 0.0
      %376 = vmatpush1.msra.mxu0 0.0
      %377 = vmatprep.subr.mxu0 0.0
      %378 = vmatpush1.msra.mxu0 0.0
      %379 = vmatprep.subr.mxu0 0.0
      %380 = vmatpush1.msra.mxu0 0.0
      %381 = vmatprep.subr.mxu0 0.0
      %382 = vmatpush1.msra.mxu0 0.0
      %383 = vmatprep.subr.mxu0 0.0
      %384 = vmatpush1.msra.mxu0 0.0
      %385 = vmatprep.subr.mxu0 0.0
      %386 = vmatpush1.msra.mxu0 0.0
      %387 = vmatprep.mubr.f32.mxu0 0.0
      %388 = vmatmul.mubr.f32.gmra.mrb[0].mxu0 %v317
      %v389 = vpop.f32.mrb[0].mxu0
      %v390 = vadd.f32 %v312, %v389
      %v391 = vpop.f32.mrb[0].mxu0
      %v392 = vadd.f32 %v314, %v391
      %393 = vdwg.mxu0
      %394 = vrot.lane.b32.xlu0 %v220, 126
      %v395 = vpop.permute.xlu0 %394
      %396 = vrot.lane.b32.xlu0 %v223, 126
      %v397 = vpop.permute.xlu0 %396
      %vm398 = vcmask 1031168
      %v399 = vsel %vm398, %v395, %v397
      %v402 = vsel %vm398, %v397, %v395
      %s403 = scalar_lea.vmem %s1, 16
      %v404 = vld [vmem:[%s403] sm:$0xff]
      %v406 = vsel %vm235, %v404, 0
      %v408 = vsel %vm239, %v399, 0
      %v411 = vsel %vm239, %v402, 0
      %413 = vmatprep.subr.mxu0 %v411
      %414 = vmatpush1.msra.mxu0 %v408
      %415 = vmatprep.subr.mxu0 0.0
      %416 = vmatpush1.msra.mxu0 0.0
      %417 = vmatprep.subr.mxu0 0.0
      %418 = vmatpush1.msra.mxu0 0.0
      %419 = vmatprep.subr.mxu0 0.0
      %420 = vmatpush1.msra.mxu0 0.0
      %421 = vmatprep.subr.mxu0 0.0
      %422 = vmatpush1.msra.mxu0 0.0
      %423 = vmatprep.subr.mxu0 0.0
      %424 = vmatpush1.msra.mxu0 0.0
      %425 = vmatprep.subr.mxu0 0.0
      %426 = vmatpush1.msra.mxu0 0.0
      %427 = vmatprep.subr.mxu0 0.0
      %428 = vmatpush1.msra.mxu0 0.0
      %429 = vmatprep.subr.mxu0 0.0
      %430 = vmatpush1.msra.mxu0 0.0
      %431 = vmatprep.subr.mxu0 0.0
      %432 = vmatpush1.msra.mxu0 0.0
      %433 = vmatprep.subr.mxu0 0.0
      %434 = vmatpush1.msra.mxu0 0.0
      %435 = vmatprep.subr.mxu0 0.0
      %436 = vmatpush1.msra.mxu0 0.0
      %437 = vmatprep.subr.mxu0 0.0
      %438 = vmatpush1.msra.mxu0 0.0
      %439 = vmatprep.subr.mxu0 0.0
      %440 = vmatpush1.msra.mxu0 0.0
      %441 = vmatprep.subr.mxu0 0.0
      %442 = vmatpush1.msra.mxu0 0.0
      %443 = vmatprep.subr.mxu0 0.0
      %444 = vmatpush1.msra.mxu0 0.0
      %445 = vmatprep.subr.mxu0 0.0
      %446 = vmatpush1.msra.mxu0 0.0
      %447 = vmatprep.subr.mxu0 0.0
      %448 = vmatpush1.msra.mxu0 0.0
      %449 = vmatprep.subr.mxu0 0.0
      %450 = vmatpush1.msra.mxu0 0.0
      %451 = vmatprep.subr.mxu0 0.0
      %452 = vmatpush1.msra.mxu0 0.0
      %453 = vmatprep.subr.mxu0 0.0
      %454 = vmatpush1.msra.mxu0 0.0
      %455 = vmatprep.subr.mxu0 0.0
      %456 = vmatpush1.msra.mxu0 0.0
      %457 = vmatprep.subr.mxu0 0.0
      %458 = vmatpush1.msra.mxu0 0.0
      %459 = vmatprep.subr.mxu0 0.0
      %460 = vmatpush1.msra.mxu0 0.0
      %461 = vmatprep.subr.mxu0 0.0
      %462 = vmatpush1.msra.mxu0 0.0
      %463 = vmatprep.subr.mxu0 0.0
      %464 = vmatpush1.msra.mxu0 0.0
      %465 = vmatprep.subr.mxu0 0.0
      %466 = vmatpush1.msra.mxu0 0.0
      %467 = vmatprep.subr.mxu0 0.0
      %468 = vmatpush1.msra.mxu0 0.0
      %469 = vmatprep.subr.mxu0 0.0
      %470 = vmatpush1.msra.mxu0 0.0
      %471 = vmatprep.subr.mxu0 0.0
      %472 = vmatpush1.msra.mxu0 0.0
      %473 = vmatprep.subr.mxu0 0.0
      %474 = vmatpush1.msra.mxu0 0.0
      %475 = vmatprep.subr.mxu0 0.0
      %476 = vmatpush1.msra.mxu0 0.0
      %477 = vmatprep.mubr.f32.mxu0 0.0
      %478 = vmatmul.mubr.f32.gmra.mrb[0].mxu0 %v406
      %v479 = vpop.f32.mrb[0].mxu0
      %v480 = vadd.f32 0.0, %v479
      %v481 = vpop.f32.mrb[0].mxu0
      %v482 = vadd.f32 0.0, %v481
      %483 = vdwg.mxu0
      %v484 = vadd.f32 %v390, %v480
      %v485 = vadd.f32 %v392, %v482
      %486 = vrot.lane.b32.xlu0 %v220, 112
      %v487 = vpop.permute.xlu0 %486
      %488 = vrot.lane.b32.xlu0 %v223, 112
      %v489 = vpop.permute.xlu0 %488
      %vm490 = vcmask 916480
      %v491 = vsel %vm490, %v487, %v489
      %v494 = vsel %vm490, %v489, %v487
      %s495 = scalar_lea.vmem %s1, 24
      %v496 = vld [vmem:[%s495] sm:$0xff]
      %v498 = vsel %vm235, %v496, 0
      %v500 = vsel %vm239, %v491, 0
      %v503 = vsel %vm239, %v494, 0
      %505 = vmatprep.subr.mxu0 %v503
      %506 = vmatpush1.msra.mxu0 %v500
      %507 = vmatprep.subr.mxu0 0.0
      %508 = vmatpush1.msra.mxu0 0.0
      %509 = vmatprep.subr.mxu0 0.0
      %510 = vmatpush1.msra.mxu0 0.0
      %511 = vmatprep.subr.mxu0 0.0
      %512 = vmatpush1.msra.mxu0 0.0
      %513 = vmatprep.subr.mxu0 0.0
      %514 = vmatpush1.msra.mxu0 0.0
      %515 = vmatprep.subr.mxu0 0.0
      %516 = vmatpush1.msra.mxu0 0.0
      %517 = vmatprep.subr.mxu0 0.0
      %518 = vmatpush1.msra.mxu0 0.0
      %519 = vmatprep.subr.mxu0 0.0
      %520 = vmatpush1.msra.mxu0 0.0
      %521 = vmatprep.subr.mxu0 0.0
      %522 = vmatpush1.msra.mxu0 0.0
      %523 = vmatprep.subr.mxu0 0.0
      %524 = vmatpush1.msra.mxu0 0.0
      %525 = vmatprep.subr.mxu0 0.0
      %526 = vmatpush1.msra.mxu0 0.0
      %527 = vmatprep.subr.mxu0 0.0
      %528 = vmatpush1.msra.mxu0 0.0
      %529 = vmatprep.subr.mxu0 0.0
      %530 = vmatpush1.msra.mxu0 0.0
      %531 = vmatprep.subr.mxu0 0.0
      %532 = vmatpush1.msra.mxu0 0.0
      %533 = vmatprep.subr.mxu0 0.0
      %534 = vmatpush1.msra.mxu0 0.0
      %535 = vmatprep.subr.mxu0 0.0
      %536 = vmatpush1.msra.mxu0 0.0
      %537 = vmatprep.subr.mxu0 0.0
      %538 = vmatpush1.msra.mxu0 0.0
      %539 = vmatprep.subr.mxu0 0.0
      %540 = vmatpush1.msra.mxu0 0.0
      %541 = vmatprep.subr.mxu0 0.0
      %542 = vmatpush1.msra.mxu0 0.0
      %543 = vmatprep.subr.mxu0 0.0
      %544 = vmatpush1.msra.mxu0 0.0
      %545 = vmatprep.subr.mxu0 0.0
      %546 = vmatpush1.msra.mxu0 0.0
      %547 = vmatprep.subr.mxu0 0.0
      %548 = vmatpush1.msra.mxu0 0.0
      %549 = vmatprep.subr.mxu0 0.0
      %550 = vmatpush1.msra.mxu0 0.0
      %551 = vmatprep.subr.mxu0 0.0
      %552 = vmatpush1.msra.mxu0 0.0
      %553 = vmatprep.subr.mxu0 0.0
      %554 = vmatpush1.msra.mxu0 0.0
      %555 = vmatprep.subr.mxu0 0.0
      %556 = vmatpush1.msra.mxu0 0.0
      %557 = vmatprep.subr.mxu0 0.0
      %558 = vmatpush1.msra.mxu0 0.0
      %559 = vmatprep.subr.mxu0 0.0
      %560 = vmatpush1.msra.mxu0 0.0
      %561 = vmatprep.subr.mxu0 0.0
      %562 = vmatpush1.msra.mxu0 0.0
      %563 = vmatprep.subr.mxu0 0.0
      %564 = vmatpush1.msra.mxu0 0.0
      %565 = vmatprep.subr.mxu0 0.0
      %566 = vmatpush1.msra.mxu0 0.0
      %567 = vmatprep.subr.mxu0 0.0
      %568 = vmatpush1.msra.mxu0 0.0
      %569 = vmatprep.mubr.f32.mxu0 0.0
      %570 = vmatmul.mubr.f32.gmra.mrb[0].mxu0 %v498
      %v571 = vpop.f32.mrb[0].mxu0
      %v572 = vadd.f32 0.0, %v571
      %v573 = vpop.f32.mrb[0].mxu0
      %v574 = vadd.f32 0.0, %v573
      %575 = vdwg.mxu0
      %v576 = vadd.f32 %v484, %v572
      %v577 = vadd.f32 %v485, %v574
      %578 = vrot.lane.b32.xlu0 %v220, 111
      %v579 = vpop.permute.xlu0 %578
      %580 = vrot.lane.b32.xlu0 %v223, 111
      %v581 = vpop.permute.xlu0 %580
      %vm582 = vcmask 908288
      %v583 = vsel %vm582, %v579, %v581
      %v586 = vsel %vm582, %v581, %v579
      %s587 = scalar_lea.vmem %s1, 32
      %v588 = vld [vmem:[%s587] sm:$0xff]
      %v590 = vsel %vm235, %v588, 0
      %v592 = vsel %vm239, %v583, 0
      %v595 = vsel %vm239, %v586, 0
      %597 = vmatprep.subr.mxu0 %v595
      %598 = vmatpush1.msra.mxu0 %v592
      %599 = vmatprep.subr.mxu0 0.0
      %600 = vmatpush1.msra.mxu0 0.0
      %601 = vmatprep.subr.mxu0 0.0
      %602 = vmatpush1.msra.mxu0 0.0
      %603 = vmatprep.subr.mxu0 0.0
      %604 = vmatpush1.msra.mxu0 0.0
      %605 = vmatprep.subr.mxu0 0.0
      %606 = vmatpush1.msra.mxu0 0.0
      %607 = vmatprep.subr.mxu0 0.0
      %608 = vmatpush1.msra.mxu0 0.0
      %609 = vmatprep.subr.mxu0 0.0
      %610 = vmatpush1.msra.mxu0 0.0
      %611 = vmatprep.subr.mxu0 0.0
      %612 = vmatpush1.msra.mxu0 0.0
      %613 = vmatprep.subr.mxu0 0.0
      %614 = vmatpush1.msra.mxu0 0.0
      %615 = vmatprep.subr.mxu0 0.0
      %616 = vmatpush1.msra.mxu0 0.0
      %617 = vmatprep.subr.mxu0 0.0
      %618 = vmatpush1.msra.mxu0 0.0
      %619 = vmatprep.subr.mxu0 0.0
      %620 = vmatpush1.msra.mxu0 0.0
      %621 = vmatprep.subr.mxu0 0.0
      %622 = vmatpush1.msra.mxu0 0.0
      %623 = vmatprep.subr.mxu0 0.0
      %624 = vmatpush1.msra.mxu0 0.0
      %625 = vmatprep.subr.mxu0 0.0
      %626 = vmatpush1.msra.mxu0 0.0
      %627 = vmatprep.subr.mxu0 0.0
      %628 = vmatpush1.msra.mxu0 0.0
      %629 = vmatprep.subr.mxu0 0.0
      %630 = vmatpush1.msra.mxu0 0.0
      %631 = vmatprep.subr.mxu0 0.0
      %632 = vmatpush1.msra.mxu0 0.0
      %633 = vmatprep.subr.mxu0 0.0
      %634 = vmatpush1.msra.mxu0 0.0
      %635 = vmatprep.subr.mxu0 0.0
      %636 = vmatpush1.msra.mxu0 0.0
      %637 = vmatprep.subr.mxu0 0.0
      %638 = vmatpush1.msra.mxu0 0.0
      %639 = vmatprep.subr.mxu0 0.0
      %640 = vmatpush1.msra.mxu0 0.0
      %641 = vmatprep.subr.mxu0 0.0
      %642 = vmatpush1.msra.mxu0 0.0
      %643 = vmatprep.subr.mxu0 0.0
      %644 = vmatpush1.msra.mxu0 0.0
      %645 = vmatprep.subr.mxu0 0.0
      %646 = vmatpush1.msra.mxu0 0.0
      %647 = vmatprep.subr.mxu0 0.0
      %648 = vmatpush1.msra.mxu0 0.0
      %649 = vmatprep.subr.mxu0 0.0
      %650 = vmatpush1.msra.mxu0 0.0
      %651 = vmatprep.subr.mxu0 0.0
      %652 = vmatpush1.msra.mxu0 0.0
      %653 = vmatprep.subr.mxu0 0.0
      %654 = vmatpush1.msra.mxu0 0.0
      %655 = vmatprep.subr.mxu0 0.0
      %656 = vmatpush1.msra.mxu0 0.0
      %657 = vmatprep.subr.mxu0 0.0
      %658 = vmatpush1.msra.mxu0 0.0
      %659 = vmatprep.subr.mxu0 0.0
      %660 = vmatpush1.msra.mxu0 0.0
      %661 = vmatprep.mubr.f32.mxu0 0.0
      %662 = vmatmul.mubr.f32.gmra.mrb[0].mxu0 %v590
      %v663 = vpop.f32.mrb[0].mxu0
      %v664 = vadd.f32 0.0, %v663
      %v665 = vpop.f32.mrb[0].mxu0
      %v666 = vadd.f32 0.0, %v665
      %667 = vdwg.mxu0
      %v668 = vadd.f32 %v576, %v664
      %v669 = vadd.f32 %v577, %v666
      %670 = vrot.lane.b32.xlu0 %v220, 110
      %v671 = vpop.permute.xlu0 %670
      %672 = vrot.lane.b32.xlu0 %v223, 110
      %v673 = vpop.permute.xlu0 %672
      %vm674 = vcmask 900096
      %v675 = vsel %vm674, %v671, %v673
      %v678 = vsel %vm674, %v673, %v671
      %s679 = scalar_lea.vmem %s1, 40
      %v680 = vld [vmem:[%s679] sm:$0xff]
      %v682 = vsel %vm235, %v680, 0
      %v684 = vsel %vm239, %v675, 0
      %v687 = vsel %vm239, %v678, 0
      %689 = vmatprep.subr.mxu0 %v687
      %690 = vmatpush1.msra.mxu0 %v684
      %691 = vmatprep.subr.mxu0 0.0
      %692 = vmatpush1.msra.mxu0 0.0
      %693 = vmatprep.subr.mxu0 0.0
      %694 = vmatpush1.msra.mxu0 0.0
      %695 = vmatprep.subr.mxu0 0.0
      %696 = vmatpush1.msra.mxu0 0.0
      %697 = vmatprep.subr.mxu0 0.0
      %698 = vmatpush1.msra.mxu0 0.0
      %699 = vmatprep.subr.mxu0 0.0
      %700 = vmatpush1.msra.mxu0 0.0
      %701 = vmatprep.subr.mxu0 0.0
      %702 = vmatpush1.msra.mxu0 0.0
      %703 = vmatprep.subr.mxu0 0.0
      %704 = vmatpush1.msra.mxu0 0.0
      %705 = vmatprep.subr.mxu0 0.0
      %706 = vmatpush1.msra.mxu0 0.0
      %707 = vmatprep.subr.mxu0 0.0
      %708 = vmatpush1.msra.mxu0 0.0
      %709 = vmatprep.subr.mxu0 0.0
      %710 = vmatpush1.msra.mxu0 0.0
      %711 = vmatprep.subr.mxu0 0.0
      %712 = vmatpush1.msra.mxu0 0.0
      %713 = vmatprep.subr.mxu0 0.0
      %714 = vmatpush1.msra.mxu0 0.0
      %715 = vmatprep.subr.mxu0 0.0
      %716 = vmatpush1.msra.mxu0 0.0
      %717 = vmatprep.subr.mxu0 0.0
      %718 = vmatpush1.msra.mxu0 0.0
      %719 = vmatprep.subr.mxu0 0.0
      %720 = vmatpush1.msra.mxu0 0.0
      %721 = vmatprep.subr.mxu0 0.0
      %722 = vmatpush1.msra.mxu0 0.0
      %723 = vmatprep.subr.mxu0 0.0
      %724 = vmatpush1.msra.mxu0 0.0
      %725 = vmatprep.subr.mxu0 0.0
      %726 = vmatpush1.msra.mxu0 0.0
      %727 = vmatprep.subr.mxu0 0.0
      %728 = vmatpush1.msra.mxu0 0.0
      %729 = vmatprep.subr.mxu0 0.0
      %730 = vmatpush1.msra.mxu0 0.0
      %731 = vmatprep.subr.mxu0 0.0
      %732 = vmatpush1.msra.mxu0 0.0
      %733 = vmatprep.subr.mxu0 0.0
      %734 = vmatpush1.msra.mxu0 0.0
      %735 = vmatprep.subr.mxu0 0.0
      %736 = vmatpush1.msra.mxu0 0.0
      %737 = vmatprep.subr.mxu0 0.0
      %738 = vmatpush1.msra.mxu0 0.0
      %739 = vmatprep.subr.mxu0 0.0
      %740 = vmatpush1.msra.mxu0 0.0
      %741 = vmatprep.subr.mxu0 0.0
      %742 = vmatpush1.msra.mxu0 0.0
      %743 = vmatprep.subr.mxu0 0.0
      %744 = vmatpush1.msra.mxu0 0.0
      %745 = vmatprep.subr.mxu0 0.0
      %746 = vmatpush1.msra.mxu0 0.0
      %747 = vmatprep.subr.mxu0 0.0
      %748 = vmatpush1.msra.mxu0 0.0
      %749 = vmatprep.subr.mxu0 0.0
      %750 = vmatpush1.msra.mxu0 0.0
      %751 = vmatprep.subr.mxu0 0.0
      %752 = vmatpush1.msra.mxu0 0.0
      %753 = vmatprep.mubr.f32.mxu0 0.0
      %754 = vmatmul.mubr.f32.gmra.mrb[0].mxu0 %v682
      %v755 = vpop.f32.mrb[0].mxu0
      %v756 = vadd.f32 0.0, %v755
      %v757 = vpop.f32.mrb[0].mxu0
      %v758 = vadd.f32 0.0, %v757
      %759 = vdwg.mxu0
      %v760 = vadd.f32 %v668, %v756
      %v761 = vadd.f32 %v669, %v758
      %762 = vrot.lane.b32.xlu0 %v220, 96
      %v763 = vpop.permute.xlu0 %762
      %764 = vrot.lane.b32.xlu0 %v223, 96
      %v765 = vpop.permute.xlu0 %764
      %vm766 = vcmask 785408
      %v767 = vsel %vm766, %v763, %v765
      %v770 = vsel %vm766, %v765, %v763
      %s771 = scalar_lea.vmem %s1, 48
      %v772 = vld [vmem:[%s771] sm:$0xff]
      %v774 = vsel %vm235, %v772, 0
      %v776 = vsel %vm239, %v767, 0
      %v779 = vsel %vm239, %v770, 0
      %781 = vmatprep.subr.mxu0 %v779
      %782 = vmatpush1.msra.mxu0 %v776
      %783 = vmatprep.subr.mxu0 0.0
      %784 = vmatpush1.msra.mxu0 0.0
      %785 = vmatprep.subr.mxu0 0.0
      %786 = vmatpush1.msra.mxu0 0.0
      %787 = vmatprep.subr.mxu0 0.0
      %788 = vmatpush1.msra.mxu0 0.0
      %789 = vmatprep.subr.mxu0 0.0
      %790 = vmatpush1.msra.mxu0 0.0
      %791 = vmatprep.subr.mxu0 0.0
      %792 = vmatpush1.msra.mxu0 0.0
      %793 = vmatprep.subr.mxu0 0.0
      %794 = vmatpush1.msra.mxu0 0.0
      %795 = vmatprep.subr.mxu0 0.0
      %796 = vmatpush1.msra.mxu0 0.0
      %797 = vmatprep.subr.mxu0 0.0
      %798 = vmatpush1.msra.mxu0 0.0
      %799 = vmatprep.subr.mxu0 0.0
      %800 = vmatpush1.msra.mxu0 0.0
      %801 = vmatprep.subr.mxu0 0.0
      %802 = vmatpush1.msra.mxu0 0.0
      %803 = vmatprep.subr.mxu0 0.0
      %804 = vmatpush1.msra.mxu0 0.0
      %805 = vmatprep.subr.mxu0 0.0
      %806 = vmatpush1.msra.mxu0 0.0
      %807 = vmatprep.subr.mxu0 0.0
      %808 = vmatpush1.msra.mxu0 0.0
      %809 = vmatprep.subr.mxu0 0.0
      %810 = vmatpush1.msra.mxu0 0.0
      %811 = vmatprep.subr.mxu0 0.0
      %812 = vmatpush1.msra.mxu0 0.0
      %813 = vmatprep.subr.mxu0 0.0
      %814 = vmatpush1.msra.mxu0 0.0
      %815 = vmatprep.subr.mxu0 0.0
      %816 = vmatpush1.msra.mxu0 0.0
      %817 = vmatprep.subr.mxu0 0.0
      %818 = vmatpush1.msra.mxu0 0.0
      %819 = vmatprep.subr.mxu0 0.0
      %820 = vmatpush1.msra.mxu0 0.0
      %821 = vmatprep.subr.mxu0 0.0
      %822 = vmatpush1.msra.mxu0 0.0
      %823 = vmatprep.subr.mxu0 0.0
      %824 = vmatpush1.msra.mxu0 0.0
      %825 = vmatprep.subr.mxu0 0.0
      %826 = vmatpush1.msra.mxu0 0.0
      %827 = vmatprep.subr.mxu0 0.0
      %828 = vmatpush1.msra.mxu0 0.0
      %829 = vmatprep.subr.mxu0 0.0
      %830 = vmatpush1.msra.mxu0 0.0
      %831 = vmatprep.subr.mxu0 0.0
      %832 = vmatpush1.msra.mxu0 0.0
      %833 = vmatprep.subr.mxu0 0.0
      %834 = vmatpush1.msra.mxu0 0.0
      %835 = vmatprep.subr.mxu0 0.0
      %836 = vmatpush1.msra.mxu0 0.0
      %837 = vmatprep.subr.mxu0 0.0
      %838 = vmatpush1.msra.mxu0 0.0
      %839 = vmatprep.subr.mxu0 0.0
      %840 = vmatpush1.msra.mxu0 0.0
      %841 = vmatprep.subr.mxu0 0.0
      %842 = vmatpush1.msra.mxu0 0.0
      %843 = vmatprep.subr.mxu0 0.0
      %844 = vmatpush1.msra.mxu0 0.0
      %845 = vmatprep.mubr.f32.mxu0 0.0
      %846 = vmatmul.mubr.f32.gmra.mrb[0].mxu0 %v774
      %v847 = vpop.f32.mrb[0].mxu0
      %v848 = vadd.f32 0.0, %v847
      %v849 = vpop.f32.mrb[0].mxu0
      %v850 = vadd.f32 0.0, %v849
      %851 = vdwg.mxu0
      %v852 = vadd.f32 %v760, %v848
      %v853 = vadd.f32 %v761, %v850
      %854 = vrot.lane.b32.xlu0 %v220, 95
      %v855 = vpop.permute.xlu0 %854
      %856 = vrot.lane.b32.xlu0 %v223, 95
      %v857 = vpop.permute.xlu0 %856
      %vm858 = vcmask 777216
      %v859 = vsel %vm858, %v855, %v857
      %v862 = vsel %vm858, %v857, %v855
      %s863 = scalar_lea.vmem %s1, 56
      %v864 = vld [vmem:[%s863] sm:$0xff]
      %v866 = vsel %vm235, %v864, 0
      %v868 = vsel %vm239, %v859, 0
      %v871 = vsel %vm239, %v862, 0
      %873 = vmatprep.subr.mxu0 %v871
      %874 = vmatpush1.msra.mxu0 %v868
      %875 = vmatprep.subr.mxu0 0.0
      %876 = vmatpush1.msra.mxu0 0.0
      %877 = vmatprep.subr.mxu0 0.0
      %878 = vmatpush1.msra.mxu0 0.0
      %879 = vmatprep.subr.mxu0 0.0
      %880 = vmatpush1.msra.mxu0 0.0
      %881 = vmatprep.subr.mxu0 0.0
      %882 = vmatpush1.msra.mxu0 0.0
      %883 = vmatprep.subr.mxu0 0.0
      %884 = vmatpush1.msra.mxu0 0.0
      %885 = vmatprep.subr.mxu0 0.0
      %886 = vmatpush1.msra.mxu0 0.0
      %887 = vmatprep.subr.mxu0 0.0
      %888 = vmatpush1.msra.mxu0 0.0
      %889 = vmatprep.subr.mxu0 0.0
      %890 = vmatpush1.msra.mxu0 0.0
      %891 = vmatprep.subr.mxu0 0.0
      %892 = vmatpush1.msra.mxu0 0.0
      %893 = vmatprep.subr.mxu0 0.0
      %894 = vmatpush1.msra.mxu0 0.0
      %895 = vmatprep.subr.mxu0 0.0
      %896 = vmatpush1.msra.mxu0 0.0
      %897 = vmatprep.subr.mxu0 0.0
      %898 = vmatpush1.msra.mxu0 0.0
      %899 = vmatprep.subr.mxu0 0.0
      %900 = vmatpush1.msra.mxu0 0.0
      %901 = vmatprep.subr.mxu0 0.0
      %902 = vmatpush1.msra.mxu0 0.0
      %903 = vmatprep.subr.mxu0 0.0
      %904 = vmatpush1.msra.mxu0 0.0
      %905 = vmatprep.subr.mxu0 0.0
      %906 = vmatpush1.msra.mxu0 0.0
      %907 = vmatprep.subr.mxu0 0.0
      %908 = vmatpush1.msra.mxu0 0.0
      %909 = vmatprep.subr.mxu0 0.0
      %910 = vmatpush1.msra.mxu0 0.0
      %911 = vmatprep.subr.mxu0 0.0
      %912 = vmatpush1.msra.mxu0 0.0
      %913 = vmatprep.subr.mxu0 0.0
      %914 = vmatpush1.msra.mxu0 0.0
      %915 = vmatprep.subr.mxu0 0.0
      %916 = vmatpush1.msra.mxu0 0.0
      %917 = vmatprep.subr.mxu0 0.0
      %918 = vmatpush1.msra.mxu0 0.0
      %919 = vmatprep.subr.mxu0 0.0
      %920 = vmatpush1.msra.mxu0 0.0
      %921 = vmatprep.subr.mxu0 0.0
      %922 = vmatpush1.msra.mxu0 0.0
      %923 = vmatprep.subr.mxu0 0.0
      %924 = vmatpush1.msra.mxu0 0.0
      %925 = vmatprep.subr.mxu0 0.0
      %926 = vmatpush1.msra.mxu0 0.0
      %927 = vmatprep.subr.mxu0 0.0
      %928 = vmatpush1.msra.mxu0 0.0
      %929 = vmatprep.subr.mxu0 0.0
      %930 = vmatpush1.msra.mxu0 0.0
      %931 = vmatprep.subr.mxu0 0.0
      %932 = vmatpush1.msra.mxu0 0.0
      %933 = vmatprep.subr.mxu0 0.0
      %934 = vmatpush1.msra.mxu0 0.0
      %935 = vmatprep.subr.mxu0 0.0
      %936 = vmatpush1.msra.mxu0 0.0
      %937 = vmatprep.mubr.f32.mxu0 0.0
      %938 = vmatmul.mubr.f32.gmra.mrb[0].mxu0 %v866
      %v939 = vpop.f32.mrb[0].mxu0
      %v940 = vadd.f32 0.0, %v939
      %v941 = vpop.f32.mrb[0].mxu0
      %v942 = vadd.f32 0.0, %v941
      %943 = vdwg.mxu0
      %v944 = vadd.f32 %v852, %v940
      %v945 = vadd.f32 %v853, %v942
      %946 = vrot.lane.b32.xlu0 %v220, 94
      %v947 = vpop.permute.xlu0 %946
      %948 = vrot.lane.b32.xlu0 %v223, 94
      %v949 = vpop.permute.xlu0 %948
      %vm950 = vcmask 769024
      %v951 = vsel %vm950, %v947, %v949
      %v954 = vsel %vm950, %v949, %v947
      %s955 = scalar_lea.vmem %s1, 64
      %v956 = vld [vmem:[%s955] sm:$0xff]
      %v958 = vsel %vm235, %v956, 0
      %v960 = vsel %vm239, %v951, 0
      %v963 = vsel %vm239, %v954, 0
      %965 = vmatprep.subr.mxu0 %v963
      %966 = vmatpush1.msra.mxu0 %v960
      %967 = vmatprep.subr.mxu0 0.0
      %968 = vmatpush1.msra.mxu0 0.0
      %969 = vmatprep.subr.mxu0 0.0
      %970 = vmatpush1.msra.mxu0 0.0
      %971 = vmatprep.subr.mxu0 0.0
      %972 = vmatpush1.msra.mxu0 0.0
      %973 = vmatprep.subr.mxu0 0.0
      %974 = vmatpush1.msra.mxu0 0.0
      %975 = vmatprep.subr.mxu0 0.0
      %976 = vmatpush1.msra.mxu0 0.0
      %977 = vmatprep.subr.mxu0 0.0
      %978 = vmatpush1.msra.mxu0 0.0
      %979 = vmatprep.subr.mxu0 0.0
      %980 = vmatpush1.msra.mxu0 0.0
      %981 = vmatprep.subr.mxu0 0.0
      %982 = vmatpush1.msra.mxu0 0.0
      %983 = vmatprep.subr.mxu0 0.0
      %984 = vmatpush1.msra.mxu0 0.0
      %985 = vmatprep.subr.mxu0 0.0
      %986 = vmatpush1.msra.mxu0 0.0
      %987 = vmatprep.subr.mxu0 0.0
      %988 = vmatpush1.msra.mxu0 0.0
      %989 = vmatprep.subr.mxu0 0.0
      %990 = vmatpush1.msra.mxu0 0.0
      %991 = vmatprep.subr.mxu0 0.0
      %992 = vmatpush1.msra.mxu0 0.0
      %993 = vmatprep.subr.mxu0 0.0
      %994 = vmatpush1.msra.mxu0 0.0
      %995 = vmatprep.subr.mxu0 0.0
      %996 = vmatpush1.msra.mxu0 0.0
      %997 = vmatprep.subr.mxu0 0.0
      %998 = vmatpush1.msra.mxu0 0.0
      %999 = vmatprep.subr.mxu0 0.0
      %1000 = vmatpush1.msra.mxu0 0.0
      %1001 = vmatprep.subr.mxu0 0.0
      %1002 = vmatpush1.msra.mxu0 0.0
      %1003 = vmatprep.subr.mxu0 0.0
      %1004 = vmatpush1.msra.mxu0 0.0
      %1005 = vmatprep.subr.mxu0 0.0
      %1006 = vmatpush1.msra.mxu0 0.0
      %1007 = vmatprep.subr.mxu0 0.0
      %1008 = vmatpush1.msra.mxu0 0.0
      %1009 = vmatprep.subr.mxu0 0.0
      %1010 = vmatpush1.msra.mxu0 0.0
      %1011 = vmatprep.subr.mxu0 0.0
      %1012 = vmatpush1.msra.mxu0 0.0
      %1013 = vmatprep.subr.mxu0 0.0
      %1014 = vmatpush1.msra.mxu0 0.0
      %1015 = vmatprep.subr.mxu0 0.0
      %1016 = vmatpush1.msra.mxu0 0.0
      %1017 = vmatprep.subr.mxu0 0.0
      %1018 = vmatpush1.msra.mxu0 0.0
      %1019 = vmatprep.subr.mxu0 0.0
      %1020 = vmatpush1.msra.mxu0 0.0
      %1021 = vmatprep.subr.mxu0 0.0
      %1022 = vmatpush1.msra.mxu0 0.0
      %1023 = vmatprep.subr.mxu0 0.0
      %1024 = vmatpush1.msra.mxu0 0.0
      %1025 = vmatprep.subr.mxu0 0.0
      %1026 = vmatpush1.msra.mxu0 0.0
      %1027 = vmatprep.subr.mxu0 0.0
      %1028 = vmatpush1.msra.mxu0 0.0
      %1029 = vmatprep.mubr.f32.mxu0 0.0
      %1030 = vmatmul.mubr.f32.gmra.mrb[0].mxu0 %v958
      %v1031 = vpop.f32.mrb[0].mxu0
      %v1032 = vadd.f32 0.0, %v1031
      %v1033 = vpop.f32.mrb[0].mxu0
      %v1034 = vadd.f32 0.0, %v1033
      %1035 = vdwg.mxu0
      %v1036 = vadd.f32 %v944, %v1032
      %v1037 = vadd.f32 %v945, %v1034
      %1038 = vst [vmem:[%s219] sm:$0xff] %v1036
      %1039 = vst.msk [vmem:[%s219 + $0x8] sm:$0xff] %vm766, %v1037
      %v1040 = vld [vmem:[%s2] sm:$0x3]
      %v1042 = vlaneseq
      %v1043 = vshrl.u32 %v1042, 7
      %v1044 = vsub.s32 0, %v1043
      %v1045 = vrot.slane %v1040, %v1044
      %v1046 = vlaneseq
      %v1047 = vshrl.u32 %v1046, 7
      %v1048 = vsub.s32 1, %v1047
      %v1049 = vrot.slane %v1040, %v1048
      %v1052 = vmul.f32 %v1036, %v1045
      %v1053 = vmul.f32 %v1037, %v1049
      %v1054 = vsel %vm766, %v1053, 0.0
      %v1055 = vadd.f32 %v1052, %v1054
      %1056 = vadd.xlane.f32.xlu0 %v1055
      %v1057 = vpop.xlane.xlu0 %1056
      %v1058 = vmul.f32 %v1052, %v1052
      %v1059 = vmul.f32 %v1053, %v1053
      %v1060 = vsel %vm766, %v1059, 0.0
      %v1061 = vadd.f32 %v1058, %v1060
      %1062 = vadd.xlane.f32.xlu0 %v1061
      %v1063 = vpop.xlane.xlu0 %1062
      %p1064 = scmp.eq.s32.totalorder %s17, 0
      // Predicated region
      $region33: #{layer_forward.4} parent=31 // pred_check
        %p1065 = pneg %p1064
      $region34: #{layer_forward.4} parent=31 // pred_check_branch
        %1067 = sbr.rel (%p1065) target = $region36
      $region35: #{layer_forward.4} parent=31 // pred_region
        %vm1068 = vcmask 7168
        %1069 = vst.msk [vmem:[%s4] sm:$0xff] %vm1068, 0.0
        %1070 = vst.msk [vmem:[%s5] sm:$0xff] %vm1068, 0.0
      $region36: #{layer_forward.4} parent=31 // pred_fallthru
        _
      %v1071 = vld [vmem:[%s4] sm:$0xff]
      %v1072 = vadd.f32 %v1071, %v1057
      %vm1073 = vcmask 7168
      %1074 = vst.msk [vmem:[%s4] sm:$0xff] %vm1073, %v1072
      %v1075 = vld [vmem:[%s5] sm:$0xff]
      %v1076 = vadd.f32 %v1075, %v1063
      %1077 = vst.msk [vmem:[%s5] sm:$0xff] %vm1073, %v1076
      %p1078 = scmp.lt.s32.totalorder %s17, 1
      %s1079 = scalar_select %p1078, %s17, 1
      %s1080 = smul.addr %s1079, 2
      %s1081 = smul.addr %s1080, 8
      %s1082 = scalar_lea.vmem %s3, %s1081
      // Predicated region
      $region37: #{layer_forward.4} parent=31 // pred_check
        %p1083 = pneg %p103
      $region38: #{layer_forward.4} parent=31 // pred_check_branch
        %1085 = sbr.rel (%p1083) target = $region40
      $region39: #{layer_forward.4} parent=31 // pred_region
        _
      $region40: #{layer_forward.4} parent=31 // pred_fallthru
        _
      // Predicated region
      $region41: #{layer_forward.4} parent=31 // pred_check
        %p1086 = pneg %p124
      $region42: #{layer_forward.4} parent=31 // pred_check_branch
        %1088 = sbr.rel (%p1086) target = $region44
      $region43: #{layer_forward.4} parent=31 // pred_region
        _
      $region44: #{layer_forward.4} parent=31 // pred_fallthru
        _
      // Predicated region
      $region45: #{layer_forward.4} parent=31 // pred_check
        %p1089 = pneg %p145
      $region46: #{layer_forward.4} parent=31 // pred_check_branch
        %1091 = sbr.rel (%p1089) target = $region48
      $region47: #{layer_forward.4} parent=31 // pred_region
        _
      $region48: #{layer_forward.4} parent=31 // pred_fallthru
        _
      // Predicated region
      $region49: #{layer_forward.4} parent=31 // pred_check
        %p1092 = pneg %p124
      $region50: #{layer_forward.4} parent=31 // pred_check_branch
        %1094 = sbr.rel (%p1092) target = $region52
      $region51: #{layer_forward.4} parent=31 // pred_region
        _
      $region52: #{layer_forward.4} parent=31 // pred_fallthru
        _
      // Predicated region
      $region53: #{layer_forward.4} parent=31 // pred_check
        %p1095 = pneg %p145
      $region54: #{layer_forward.4} parent=31 // pred_check_branch
        %1097 = sbr.rel (%p1095) target = $region56
      $region55: #{layer_forward.4} parent=31 // pred_region
        _
      $region56: #{layer_forward.4} parent=31 // pred_fallthru
        _
    $region32: #{layer_forward.4} parent=5 // pred_fallthru
      _
    %p1098 = scmp.le.s32.totalorder 2, %s12
    // Predicated region
    $region57: #{layer_forward.4} parent=5 // pred_check
      %p1099 = pneg %p1098
    $region58: #{layer_forward.4} parent=5 // pred_check_branch
      %1101 = sbr.rel (%p1099) target = $region60
    $region59: #{layer_forward.4} parent=5 // pred_region
      %s1102 = ssub.s32 %s12, 2
      // Predicated region
      $region61: #{layer_forward.4} parent=59 // pred_check
        %p1103 = pneg %p109
      $region62: #{layer_forward.4} parent=59 // pred_check_branch
        %1105 = sbr.rel (%p1103) target = $region64
      $region63: #{layer_forward.4} parent=59 // pred_region
        %p1106 = scmp.lt.s32.totalorder %s18, 1
        %s1107 = scalar_select %p1106, %s18, 1
        %s1108 = smul.addr %s1107, 2
        %s1109 = smul.addr %s1108, 8
        %s1110 = scalar_lea.vmem %s3, %s1109
      $region64: #{layer_forward.4} parent=59 // pred_fallthru
        _
    $region60: #{layer_forward.4} parent=5 // pred_fallthru
      _
  $region6: #{layer_forward.4} parent=0 // loop_footer
    %s16 = sadd.s32 1, %s12
  $region7: #{layer_forward.4} parent=0 // loop_footer_branch
    %11 = sbr.rel target = $region3
  $region8: #{layer_forward.4} parent=0 // loop_exit
    _

// kernel: layer_forward.6
$region0: #{layer_forward.6}
  #allocation0 [shape = 'u32[]', space=smem, size = 0x4, offset = 0x4, fixed_abs, tag = 'smem constant byte address 0x4 - core index']
  #allocation1 [shape = 'u32[144,128]{1,0:T(1,128)}', space=vmem, size = 0x12000, scoped, tag = 'internal scratch']
  %s0 = inlined_call_operand.vmem [shape: f32[2,8,224], index: 0, kind: input, shape index: {}]
  %s1 = inlined_call_operand.vmem [shape: f32[9,16,8], index: 1, kind: input, shape index: {}]
  %s2 = inlined_call_operand.vmem [shape: f32[1,192], index: 2, kind: input, shape index: {}]
  %s3 = inlined_call_operand.vmem [shape: f32[2,16,192], index: 3, kind: output, shape index: {0}]
  %s4 = inlined_call_operand.vmem [shape: f32[16,1], index: 4, kind: output, shape index: {1}]
  %s5 = inlined_call_operand.vmem [shape: f32[16,1], index: 5, kind: output, shape index: {2}]
  %6 = xla_tuple %s3, %s4, %s5
  %s7 = sld [smem:[#allocation0]]
  $region65: #{layer_forward.6} parent=0
    _
  %s9 = ssub.s32 1, %s7
  %s10 = scalar_select 0, %s9, %s7
  loop: start=0, step=1, limit=4
  $region2: #{layer_forward.6} parent=0 // loop_pre_header
    _
  $region3: #{layer_forward.6} parent=0 // loop_header
    %s12 = sphi 0, %s16
    %p13 = scmp.ge.s32.totalorder %s12, 4
    %s22 = sphi 0, %s24
    %s25 = sphi 0, %s22
    %s26 = sphi 0, %s25
    %s42 = sphi 0, %s26
    %s46 = sphi 0, %s46
    %s48 = sphi 0, %s46
    %s49 = sphi 0, %s48
    %s63 = sphi 0, %s49
    %s67 = sphi 0, %s67
    %s69 = sphi 0, %s67
    %s70 = sphi 0, %s69
    %s84 = sphi 0, %s70
    %s90 = sphi 0, %s92
    %s93 = sphi 0, %s90
    %s94 = sphi 0, %s93
    %s110 = sphi 0, %s94
    %s114 = sphi 0, %s114
    %s116 = sphi 0, %s114
    %s117 = sphi 0, %s116
    %s131 = sphi 0, %s117
    %s135 = sphi 0, %s135
    %s137 = sphi 0, %s135
    %s138 = sphi 0, %s137
    %s152 = sphi 0, %s138
  $region4: #{layer_forward.6} parent=0 // loop_header_branch
    %15 = sbr.rel (%p13) target = $region8
  $region5: #{layer_forward.6} parent=0 // loop_body
    %s17 = ssub.s32 %s12, 1
    %s18 = ssub.s32 %s12, 2
    %s19 = sadd.s32 %s12, 1
    %s20 = ssub.s32 %s12, %s19
    %p21 = scmp.eq.s32.totalorder %s20, 0
    %s23 = sadd.s32 %s22, 1
    %s24 = scalar_select %p21, %s22, %s23
    %p27 = pneg %p21
    %p28 = scmp.eq.s32.totalorder %s12, 1
    %p29 = por %p27, %p28
    %p30 = scmp.ne.s32.totalorder %s22, %s25
    %p31 = scmp.eq.s32.totalorder %s12, 0
    %p32 = por %p30, %p31
    %p33 = scmp.ne.s32.totalorder %s22, %s25
    %p34 = scmp.eq.s32.totalorder %s17, 1
    %p35 = por %p33, %p34
    %p36 = scmp.ne.s32.totalorder %s25, %s26
    %p37 = scmp.eq.s32.totalorder %s17, 0
    %p38 = por %p36, %p37
    %p39 = scmp.ne.s32.totalorder %s25, %s26
    %p40 = scmp.eq.s32.totalorder %s18, 1
    %p41 = por %p39, %p40
    %p43 = scmp.ne.s32.totalorder %s26, %s42
    %p44 = scmp.eq.s32.totalorder %s18, 0
    %p45 = por %p43, %p44
    %s47 = sadd.s32 %s46, 1
    %p50 = scmp.eq.s32.totalorder %s12, 1
    %p51 = scmp.ne.s32.totalorder %s46, %s48
    %p52 = scmp.eq.s32.totalorder %s12, 0
    %p53 = por %p51, %p52
    %p54 = scmp.ne.s32.totalorder %s46, %s48
    %p55 = scmp.eq.s32.totalorder %s17, 1
    %p56 = por %p54, %p55
    %p57 = scmp.ne.s32.totalorder %s48, %s49
    %p58 = scmp.eq.s32.totalorder %s17, 0
    %p59 = por %p57, %p58
    %p60 = scmp.ne.s32.totalorder %s48, %s49
    %p61 = scmp.eq.s32.totalorder %s18, 1
    %p62 = por %p60, %p61
    %p64 = scmp.ne.s32.totalorder %s49, %s63
    %p65 = scmp.eq.s32.totalorder %s18, 0
    %p66 = por %p64, %p65
    %s68 = sadd.s32 %s67, 1
    %p71 = scmp.eq.s32.totalorder %s12, 1
    %p72 = scmp.ne.s32.totalorder %s67, %s69
    %p73 = scmp.eq.s32.totalorder %s12, 0
    %p74 = por %p72, %p73
    %p75 = scmp.ne.s32.totalorder %s67, %s69
    %p76 = scmp.eq.s32.totalorder %s17, 1
    %p77 = por %p75, %p76
    %p78 = scmp.ne.s32.totalorder %s69, %s70
    %p79 = scmp.eq.s32.totalorder %s17, 0
    %p80 = por %p78, %p79
    %p81 = scmp.ne.s32.totalorder %s69, %s70
    %p82 = scmp.eq.s32.totalorder %s18, 1
    %p83 = por %p81, %p82
    %p85 = scmp.ne.s32.totalorder %s70, %s84
    %p86 = scmp.eq.s32.totalorder %s18, 0
    %p87 = por %p85, %p86
    %s88 = ssub.s32 %s12, %s19
    %p89 = scmp.eq.s32.totalorder %s88, 0
    %s91 = sadd.s32 %s90, 1
    %s92 = scalar_select %p89, %s90, %s91
    %p95 = pneg %p89
    %p96 = scmp.eq.s32.totalorder %s12, 1
    %p97 = por %p95, %p96
    %p98 = scmp.ne.s32.totalorder %s90, %s93
    %p99 = scmp.eq.s32.totalorder %s12, 0
    %p100 = por %p98, %p99
    %p101 = scmp.ne.s32.totalorder %s90, %s93
    %p102 = scmp.eq.s32.totalorder %s17, 1
    %p103 = por %p101, %p102
    %p104 = scmp.ne.s32.totalorder %s93, %s94
    %p105 = scmp.eq.s32.totalorder %s17, 0
    %p106 = por %p104, %p105
    %p107 = scmp.ne.s32.totalorder %s93, %s94
    %p108 = scmp.eq.s32.totalorder %s18, 1
    %p109 = por %p107, %p108
    %p111 = scmp.ne.s32.totalorder %s94, %s110
    %p112 = scmp.eq.s32.totalorder %s18, 0
    %p113 = por %p111, %p112
    %s115 = sadd.s32 %s114, 1
    %p118 = scmp.eq.s32.totalorder %s12, 1
    %p119 = scmp.ne.s32.totalorder %s114, %s116
    %p120 = scmp.eq.s32.totalorder %s12, 0
    %p121 = por %p119, %p120
    %p122 = scmp.ne.s32.totalorder %s114, %s116
    %p123 = scmp.eq.s32.totalorder %s17, 1
    %p124 = por %p122, %p123
    %p125 = scmp.ne.s32.totalorder %s116, %s117
    %p126 = scmp.eq.s32.totalorder %s17, 0
    %p127 = por %p125, %p126
    %p128 = scmp.ne.s32.totalorder %s116, %s117
    %p129 = scmp.eq.s32.totalorder %s18, 1
    %p130 = por %p128, %p129
    %p132 = scmp.ne.s32.totalorder %s117, %s131
    %p133 = scmp.eq.s32.totalorder %s18, 0
    %p134 = por %p132, %p133
    %s136 = sadd.s32 %s135, 1
    %p139 = scmp.eq.s32.totalorder %s12, 1
    %p140 = scmp.ne.s32.totalorder %s135, %s137
    %p141 = scmp.eq.s32.totalorder %s12, 0
    %p142 = por %p140, %p141
    %p143 = scmp.ne.s32.totalorder %s135, %s137
    %p144 = scmp.eq.s32.totalorder %s17, 1
    %p145 = por %p143, %p144
    %p146 = scmp.ne.s32.totalorder %s137, %s138
    %p147 = scmp.eq.s32.totalorder %s17, 0
    %p148 = por %p146, %p147
    %p149 = scmp.ne.s32.totalorder %s137, %s138
    %p150 = scmp.eq.s32.totalorder %s18, 1
    %p151 = por %p149, %p150
    %p153 = scmp.ne.s32.totalorder %s138, %s152
    %p154 = scmp.eq.s32.totalorder %s18, 0
    %p155 = por %p153, %p154
    %p156 = scmp.le.s32.totalorder 1, %s12
    %p157 = scmp.lt.s32.totalorder %s12, 3
    %p158 = pnand %p156, %p157
    %p159 = pneg %p158
    // Predicated region
    $region9: #{layer_forward.6} parent=5 // pred_check
      _
    $region10: #{layer_forward.6} parent=5 // pred_check_branch
      %161 = sbr.rel (%p158) target = $region12
    $region11: #{layer_forward.6} parent=5 // pred_region
      %s162 = ssub.s32 %s12, 1
      // Predicated region
      $region13: #{layer_forward.6} parent=11 // pred_check
        %p163 = pneg %p59
      $region14: #{layer_forward.6} parent=11 // pred_check_branch
        %165 = sbr.rel (%p163) target = $region16
      $region15: #{layer_forward.6} parent=11 // pred_region
        _
      $region16: #{layer_forward.6} parent=11 // pred_fallthru
        _
      // Predicated region
      $region17: #{layer_forward.6} parent=11 // pred_check
        %p166 = pneg %p80
      $region18: #{layer_forward.6} parent=11 // pred_check_branch
        %168 = sbr.rel (%p166) target = $region20
      $region19: #{layer_forward.6} parent=11 // pred_region
        _
      $region20: #{layer_forward.6} parent=11 // pred_fallthru
        _
    $region12: #{layer_forward.6} parent=5 // pred_fallthru
      _
    %p169 = scmp.lt.s32.totalorder %s12, 2
    // Predicated region
    $region21: #{layer_forward.6} parent=5 // pred_check
      %p170 = pneg %p169
    $region22: #{layer_forward.6} parent=5 // pred_check_branch
      %172 = sbr.rel (%p170) target = $region24
    $region23: #{layer_forward.6} parent=5 // pred_region
      // Predicated region
      $region25: #{layer_forward.6} parent=23 // pred_check
        %p173 = pneg %p32
      $region26: #{layer_forward.6} parent=23 // pred_check_branch
        %175 = sbr.rel (%p173) target = $region28
      $region27: #{layer_forward.6} parent=23 // pred_region
        %p176 = scmp.lt.s32.totalorder %s12, 1
        %s177 = scalar_select %p176, %s12, 1
        %s178 = smul.addr %s177, 2
        %s179 = smul.addr %s178, 8
        %s180 = scalar_lea.vmem %s0, %s179
      $region28: #{layer_forward.6} parent=23 // pred_fallthru
        _
    $region24: #{layer_forward.6} parent=5 // pred_fallthru
      _
    %p181 = scmp.le.s32.totalorder 1, %s12
    %p182 = scmp.lt.s32.totalorder %s12, 3
    %p183 = pnand %p181, %p182
    %p184 = pneg %p183
    // Predicated region
    $region29: #{layer_forward.6} parent=5 // pred_check
      _
    $region30: #{layer_forward.6} parent=5 // pred_check_branch
      %186 = sbr.rel (%p183) target = $region32
    $region31: #{layer_forward.6} parent=5 // pred_region
      %s187 = ssub.s32 %s12, 1
      %p188 = scmp.lt.s32.totalorder %s17, 1
      %s189 = scalar_select %p188, %s17, 1
      %s190 = smul.addr %s189, 2
      %s191 = smul.addr %s190, 8
      %s192 = scalar_lea.vmem %s0, %s191
      %p193 = pneg %p38
      %p194 = pneg %p35
      %p195 = pneg %p59
      %p196 = pneg %p56
      %p197 = pneg %p80
      %p198 = pneg %p77
      %p199 = pneg %p106
      %p200 = pneg %p103
      %p201 = scmp.lt.s32.totalorder %s17, 1
      %s202 = scalar_select %p201, %s17, 1
      %s203 = smul.addr %s202, 4
      %s204 = smul.addr %s203, 8
      %s205 = scalar_lea.vmem %s3, %s204
      %p206 = pneg %p127
      %p207 = pneg %p124
      %p208 = pneg %p148
      %p209 = pneg %p145
      %p210 = scmp.lt.s32.totalorder %s17, 1
      %s211 = scalar_select %p210, %s17, 1
      %s212 = smul.addr %s211, 2
      %s213 = smul.addr %s212, 8
      %s214 = scalar_lea.vmem %s0, %s213
      %p215 = scmp.lt.s32.totalorder %s17, 1
      %s216 = scalar_select %p215, %s17, 1
      %s217 = smul.addr %s216, 4
      %s218 = smul.addr %s217, 8
      %s219 = scalar_lea.vmem %s3, %s218
      %v220 = vld [vmem:[%s214] sm:$0xff]
      %v221 = vld [vmem:[%s214 + $0x8] sm:$0xff]
      %v222 = vld [vmem:[%s1] sm:$0xff]
      %v223 = vld [vmem:[%s1 + $0x8] sm:$0xff]
      %226 = vrot.lane.b32.xlu0 %v220, 127
      %v227 = vpop.permute.xlu0 %226
      %228 = vrot.lane.b32.xlu0 %v221, 127
      %v229 = vpop.permute.xlu0 %228
      %vm230 = vcmask 1039360
      %v231 = vsel %vm230, %v227, %v229
      %234 = vrot.lane.b32.xlu0 %v220, 95
      %v235 = vpop.permute.xlu0 %234
      %vm237 = vcmask 777216
      %v238 = vsel %vm237, %v229, %v235
      %s239 = scalar_lea.vmem %s1, 16
      %v240 = vld [vmem:[%s239] sm:$0xff]
      %v241 = vld [vmem:[%s239 + $0x8] sm:$0xff]
      %vm242 = vcmask 64512
      %v244 = vsel %vm242, %v240, 0
      %v247 = vsel %vm242, %v241, 0
      %249 = vmatprep.subr.mxu0 %v238
      %250 = vmatpush1.msra.mxu0 %v231
      %251 = vmatprep.subr.mxu0 0.0
      %252 = vmatpush1.msra.mxu0 0.0
      %253 = vmatprep.subr.mxu0 0.0
      %254 = vmatpush1.msra.mxu0 0.0
      %255 = vmatprep.subr.mxu0 0.0
      %256 = vmatpush1.msra.mxu0 0.0
      %257 = vmatprep.subr.mxu0 0.0
      %258 = vmatpush1.msra.mxu0 0.0
      %259 = vmatprep.subr.mxu0 0.0
      %260 = vmatpush1.msra.mxu0 0.0
      %261 = vmatprep.subr.mxu0 0.0
      %262 = vmatpush1.msra.mxu0 0.0
      %263 = vmatprep.subr.mxu0 0.0
      %264 = vmatpush1.msra.mxu0 0.0
      %265 = vmatprep.subr.mxu0 0.0
      %266 = vmatpush1.msra.mxu0 0.0
      %267 = vmatprep.subr.mxu0 0.0
      %268 = vmatpush1.msra.mxu0 0.0
      %269 = vmatprep.subr.mxu0 0.0
      %270 = vmatpush1.msra.mxu0 0.0
      %271 = vmatprep.subr.mxu0 0.0
      %272 = vmatpush1.msra.mxu0 0.0
      %273 = vmatprep.subr.mxu0 0.0
      %274 = vmatpush1.msra.mxu0 0.0
      %275 = vmatprep.subr.mxu0 0.0
      %276 = vmatpush1.msra.mxu0 0.0
      %277 = vmatprep.subr.mxu0 0.0
      %278 = vmatpush1.msra.mxu0 0.0
      %279 = vmatprep.subr.mxu0 0.0
      %280 = vmatpush1.msra.mxu0 0.0
      %281 = vmatprep.subr.mxu0 0.0
      %282 = vmatpush1.msra.mxu0 0.0
      %283 = vmatprep.subr.mxu0 0.0
      %284 = vmatpush1.msra.mxu0 0.0
      %285 = vmatprep.subr.mxu0 0.0
      %286 = vmatpush1.msra.mxu0 0.0
      %287 = vmatprep.subr.mxu0 0.0
      %288 = vmatpush1.msra.mxu0 0.0
      %289 = vmatprep.subr.mxu0 0.0
      %290 = vmatpush1.msra.mxu0 0.0
      %291 = vmatprep.subr.mxu0 0.0
      %292 = vmatpush1.msra.mxu0 0.0
      %293 = vmatprep.subr.mxu0 0.0
      %294 = vmatpush1.msra.mxu0 0.0
      %295 = vmatprep.subr.mxu0 0.0
      %296 = vmatpush1.msra.mxu0 0.0
      %297 = vmatprep.subr.mxu0 0.0
      %298 = vmatpush1.msra.mxu0 0.0
      %299 = vmatprep.subr.mxu0 0.0
      %300 = vmatpush1.msra.mxu0 0.0
      %301 = vmatprep.subr.mxu0 0.0
      %302 = vmatpush1.msra.mxu0 0.0
      %303 = vmatprep.subr.mxu0 0.0
      %304 = vmatpush1.msra.mxu0 0.0
      %305 = vmatprep.subr.mxu0 0.0
      %306 = vmatpush1.msra.mxu0 0.0
      %307 = vmatprep.subr.mxu0 0.0
      %308 = vmatpush1.msra.mxu0 0.0
      %309 = vmatprep.subr.mxu0 0.0
      %310 = vmatpush1.msra.mxu0 0.0
      %311 = vmatprep.subr.mxu0 0.0
      %312 = vmatpush1.msra.mxu0 0.0
      %313 = vmatprep.mubr.f32.mxu0 0.0
      %314 = vmatmul.mubr.f32.gmra.mrb[0].mxu0 %v244
      %v315 = vpop.f32.mrb[0].mxu0
      %v316 = vadd.f32 0.0, %v315
      %v317 = vpop.f32.mrb[0].mxu0
      %v318 = vadd.f32 0.0, %v317
      %319 = vmatprep.mubr.f32.mxu0 0.0
      %320 = vmatmul.mubr.f32.gmra.mrb[0].mxu0 %v247
      %v321 = vpop.f32.mrb[0].mxu0
      %v322 = vadd.f32 0.0, %v321
      %v323 = vpop.f32.mrb[0].mxu0
      %v324 = vadd.f32 0.0, %v323
      %325 = vdwg.mxu0
      %v327 = vsel %vm242, %v222, 0
      %v330 = vsel %vm242, %v223, 0
      %332 = vmatprep.subr.mxu0 %v221
      %333 = vmatpush1.msra.mxu0 %v220
      %334 = vmatprep.subr.mxu0 0.0
      %335 = vmatpush1.msra.mxu0 0.0
      %336 = vmatprep.subr.mxu0 0.0
      %337 = vmatpush1.msra.mxu0 0.0
      %338 = vmatprep.subr.mxu0 0.0
      %339 = vmatpush1.msra.mxu0 0.0
      %340 = vmatprep.subr.mxu0 0.0
      %341 = vmatpush1.msra.mxu0 0.0
      %342 = vmatprep.subr.mxu0 0.0
      %343 = vmatpush1.msra.mxu0 0.0
      %344 = vmatprep.subr.mxu0 0.0
      %345 = vmatpush1.msra.mxu0 0.0
      %346 = vmatprep.subr.mxu0 0.0
      %347 = vmatpush1.msra.mxu0 0.0
      %348 = vmatprep.subr.mxu0 0.0
      %349 = vmatpush1.msra.mxu0 0.0
      %350 = vmatprep.subr.mxu0 0.0
      %351 = vmatpush1.msra.mxu0 0.0
      %352 = vmatprep.subr.mxu0 0.0
      %353 = vmatpush1.msra.mxu0 0.0
      %354 = vmatprep.subr.mxu0 0.0
      %355 = vmatpush1.msra.mxu0 0.0
      %356 = vmatprep.subr.mxu0 0.0
      %357 = vmatpush1.msra.mxu0 0.0
      %358 = vmatprep.subr.mxu0 0.0
      %359 = vmatpush1.msra.mxu0 0.0
      %360 = vmatprep.subr.mxu0 0.0
      %361 = vmatpush1.msra.mxu0 0.0
      %362 = vmatprep.subr.mxu0 0.0
      %363 = vmatpush1.msra.mxu0 0.0
      %364 = vmatprep.subr.mxu0 0.0
      %365 = vmatpush1.msra.mxu0 0.0
      %366 = vmatprep.subr.mxu0 0.0
      %367 = vmatpush1.msra.mxu0 0.0
      %368 = vmatprep.subr.mxu0 0.0
      %369 = vmatpush1.msra.mxu0 0.0
      %370 = vmatprep.subr.mxu0 0.0
      %371 = vmatpush1.msra.mxu0 0.0
      %372 = vmatprep.subr.mxu0 0.0
      %373 = vmatpush1.msra.mxu0 0.0
      %374 = vmatprep.subr.mxu0 0.0
      %375 = vmatpush1.msra.mxu0 0.0
      %376 = vmatprep.subr.mxu0 0.0
      %377 = vmatpush1.msra.mxu0 0.0
      %378 = vmatprep.subr.mxu0 0.0
      %379 = vmatpush1.msra.mxu0 0.0
      %380 = vmatprep.subr.mxu0 0.0
      %381 = vmatpush1.msra.mxu0 0.0
      %382 = vmatprep.subr.mxu0 0.0
      %383 = vmatpush1.msra.mxu0 0.0
      %384 = vmatprep.subr.mxu0 0.0
      %385 = vmatpush1.msra.mxu0 0.0
      %386 = vmatprep.subr.mxu0 0.0
      %387 = vmatpush1.msra.mxu0 0.0
      %388 = vmatprep.subr.mxu0 0.0
      %389 = vmatpush1.msra.mxu0 0.0
      %390 = vmatprep.subr.mxu0 0.0
      %391 = vmatpush1.msra.mxu0 0.0
      %392 = vmatprep.subr.mxu0 0.0
      %393 = vmatpush1.msra.mxu0 0.0
      %394 = vmatprep.subr.mxu0 0.0
      %395 = vmatpush1.msra.mxu0 0.0
      %396 = vmatprep.mubr.f32.mxu0 0.0
      %397 = vmatmul.mubr.f32.gmra.mrb[0].mxu0 %v327
      %v398 = vpop.f32.mrb[0].mxu0
      %v399 = vadd.f32 %v316, %v398
      %v400 = vpop.f32.mrb[0].mxu0
      %v401 = vadd.f32 %v318, %v400
      %402 = vmatprep.mubr.f32.mxu0 0.0
      %403 = vmatmul.mubr.f32.gmra.mrb[0].mxu0 %v330
      %v404 = vpop.f32.mrb[0].mxu0
      %v405 = vadd.f32 %v322, %v404
      %v406 = vpop.f32.mrb[0].mxu0
      %v407 = vadd.f32 %v324, %v406
      %408 = vdwg.mxu0
      %409 = vrot.lane.b32.xlu0 %v220, 126
      %v410 = vpop.permute.xlu0 %409
      %411 = vrot.lane.b32.xlu0 %v221, 126
      %v412 = vpop.permute.xlu0 %411
      %vm413 = vcmask 1031168
      %v414 = vsel %vm413, %v410, %v412
      %417 = vrot.lane.b32.xlu0 %v220, 94
      %v418 = vpop.permute.xlu0 %417
      %vm420 = vcmask 769024
      %v421 = vsel %vm420, %v412, %v418
      %s422 = scalar_lea.vmem %s1, 32
      %v423 = vld [vmem:[%s422] sm:$0xff]
      %v424 = vld [vmem:[%s422 + $0x8] sm:$0xff]
      %v426 = vsel %vm242, %v423, 0
      %v429 = vsel %vm242, %v424, 0
      %431 = vmatprep.subr.mxu0 %v421
      %432 = vmatpush1.msra.mxu0 %v414
      %433 = vmatprep.subr.mxu0 0.0
      %434 = vmatpush1.msra.mxu0 0.0
      %435 = vmatprep.subr.mxu0 0.0
      %436 = vmatpush1.msra.mxu0 0.0
      %437 = vmatprep.subr.mxu0 0.0
      %438 = vmatpush1.msra.mxu0 0.0
      %439 = vmatprep.subr.mxu0 0.0
      %440 = vmatpush1.msra.mxu0 0.0
      %441 = vmatprep.subr.mxu0 0.0
      %442 = vmatpush1.msra.mxu0 0.0
      %443 = vmatprep.subr.mxu0 0.0
      %444 = vmatpush1.msra.mxu0 0.0
      %445 = vmatprep.subr.mxu0 0.0
      %446 = vmatpush1.msra.mxu0 0.0
      %447 = vmatprep.subr.mxu0 0.0
      %448 = vmatpush1.msra.mxu0 0.0
      %449 = vmatprep.subr.mxu0 0.0
      %450 = vmatpush1.msra.mxu0 0.0
      %451 = vmatprep.subr.mxu0 0.0
      %452 = vmatpush1.msra.mxu0 0.0
      %453 = vmatprep.subr.mxu0 0.0
      %454 = vmatpush1.msra.mxu0 0.0
      %455 = vmatprep.subr.mxu0 0.0
      %456 = vmatpush1.msra.mxu0 0.0
      %457 = vmatprep.subr.mxu0 0.0
      %458 = vmatpush1.msra.mxu0 0.0
      %459 = vmatprep.subr.mxu0 0.0
      %460 = vmatpush1.msra.mxu0 0.0
      %461 = vmatprep.subr.mxu0 0.0
      %462 = vmatpush1.msra.mxu0 0.0
      %463 = vmatprep.subr.mxu0 0.0
      %464 = vmatpush1.msra.mxu0 0.0
      %465 = vmatprep.subr.mxu0 0.0
      %466 = vmatpush1.msra.mxu0 0.0
      %467 = vmatprep.subr.mxu0 0.0
      %468 = vmatpush1.msra.mxu0 0.0
      %469 = vmatprep.subr.mxu0 0.0
      %470 = vmatpush1.msra.mxu0 0.0
      %471 = vmatprep.subr.mxu0 0.0
      %472 = vmatpush1.msra.mxu0 0.0
      %473 = vmatprep.subr.mxu0 0.0
      %474 = vmatpush1.msra.mxu0 0.0
      %475 = vmatprep.subr.mxu0 0.0
      %476 = vmatpush1.msra.mxu0 0.0
      %477 = vmatprep.subr.mxu0 0.0
      %478 = vmatpush1.msra.mxu0 0.0
      %479 = vmatprep.subr.mxu0 0.0
      %480 = vmatpush1.msra.mxu0 0.0
      %481 = vmatprep.subr.mxu0 0.0
      %482 = vmatpush1.msra.mxu0 0.0
      %483 = vmatprep.subr.mxu0 0.0
      %484 = vmatpush1.msra.mxu0 0.0
      %485 = vmatprep.subr.mxu0 0.0
      %486 = vmatpush1.msra.mxu0 0.0
      %487 = vmatprep.subr.mxu0 0.0
      %488 = vmatpush1.msra.mxu0 0.0
      %489 = vmatprep.subr.mxu0 0.0
      %490 = vmatpush1.msra.mxu0 0.0
      %491 = vmatprep.subr.mxu0 0.0
      %492 = vmatpush1.msra.mxu0 0.0
      %493 = vmatprep.subr.mxu0 0.0
      %494 = vmatpush1.msra.mxu0 0.0
      %495 = vmatprep.mubr.f32.mxu0 0.0
      %496 = vmatmul.mubr.f32.gmra.mrb[0].mxu0 %v426
      %v497 = vpop.f32.mrb[0].mxu0
      %v498 = vadd.f32 0.0, %v497
      %v499 = vpop.f32.mrb[0].mxu0
      %v500 = vadd.f32 0.0, %v499
      %501 = vmatprep.mubr.f32.mxu0 0.0
      %502 = vmatmul.mubr.f32.gmra.mrb[0].mxu0 %v429
      %v503 = vpop.f32.mrb[0].mxu0
      %v504 = vadd.f32 0.0, %v503
      %v505 = vpop.f32.mrb[0].mxu0
      %v506 = vadd.f32 0.0, %v505
      %507 = vdwg.mxu0
      %v508 = vadd.f32 %v399, %v498
      %v509 = vadd.f32 %v401, %v500
      %v510 = vadd.f32 %v405, %v504
      %v511 = vadd.f32 %v407, %v506
      %512 = vrot.lane.b32.xlu0 %v220, 112
      %v513 = vpop.permute.xlu0 %512
      %514 = vrot.lane.b32.xlu0 %v221, 112
      %v515 = vpop.permute.xlu0 %514
      %vm516 = vcmask 916480
      %v517 = vsel %vm516, %v513, %v515
      %520 = vrot.lane.b32.xlu0 %v220, 80
      %v521 = vpop.permute.xlu0 %520
      %vm523 = vcmask 654336
      %v524 = vsel %vm523, %v515, %v521
      %s525 = scalar_lea.vmem %s1, 48
      %v526 = vld [vmem:[%s525] sm:$0xff]
      %v527 = vld [vmem:[%s525 + $0x8] sm:$0xff]
      %v529 = vsel %vm242, %v526, 0
      %v532 = vsel %vm242, %v527, 0
      %534 = vmatprep.subr.mxu0 %v524
      %535 = vmatpush1.msra.mxu0 %v517
      %536 = vmatprep.subr.mxu0 0.0
      %537 = vmatpush1.msra.mxu0 0.0
      %538 = vmatprep.subr.mxu0 0.0
      %539 = vmatpush1.msra.mxu0 0.0
      %540 = vmatprep.subr.mxu0 0.0
      %541 = vmatpush1.msra.mxu0 0.0
      %542 = vmatprep.subr.mxu0 0.0
      %543 = vmatpush1.msra.mxu0 0.0
      %544 = vmatprep.subr.mxu0 0.0
      %545 = vmatpush1.msra.mxu0 0.0
      %546 = vmatprep.subr.mxu0 0.0
      %547 = vmatpush1.msra.mxu0 0.0
      %548 = vmatprep.subr.mxu0 0.0
      %549 = vmatpush1.msra.mxu0 0.0
      %550 = vmatprep.subr.mxu0 0.0
      %551 = vmatpush1.msra.mxu0 0.0
      %552 = vmatprep.subr.mxu0 0.0
      %553 = vmatpush1.msra.mxu0 0.0
      %554 = vmatprep.subr.mxu0 0.0
      %555 = vmatpush1.msra.mxu0 0.0
      %556 = vmatprep.subr.mxu0 0.0
      %557 = vmatpush1.msra.mxu0 0.0
      %558 = vmatprep.subr.mxu0 0.0
      %559 = vmatpush1.msra.mxu0 0.0
      %560 = vmatprep.subr.mxu0 0.0
      %561 = vmatpush1.msra.mxu0 0.0
      %562 = vmatprep.subr.mxu0 0.0
      %563 = vmatpush1.msra.mxu0 0.0
      %564 = vmatprep.subr.mxu0 0.0
      %565 = vmatpush1.msra.mxu0 0.0
      %566 = vmatprep.subr.mxu0 0.0
      %567 = vmatpush1.msra.mxu0 0.0
      %568 = vmatprep.subr.mxu0 0.0
      %569 = vmatpush1.msra.mxu0 0.0
      %570 = vmatprep.subr.mxu0 0.0
      %571 = vmatpush1.msra.mxu0 0.0
      %572 = vmatprep.subr.mxu0 0.0
      %573 = vmatpush1.msra.mxu0 0.0
      %574 = vmatprep.subr.mxu0 0.0
      %575 = vmatpush1.msra.mxu0 0.0
      %576 = vmatprep.subr.mxu0 0.0
      %577 = vmatpush1.msra.mxu0 0.0
      %578 = vmatprep.subr.mxu0 0.0
      %579 = vmatpush1.msra.mxu0 0.0
      %580 = vmatprep.subr.mxu0 0.0
      %581 = vmatpush1.msra.mxu0 0.0
      %582 = vmatprep.subr.mxu0 0.0
      %583 = vmatpush1.msra.mxu0 0.0
      %584 = vmatprep.subr.mxu0 0.0
      %585 = vmatpush1.msra.mxu0 0.0
      %586 = vmatprep.subr.mxu0 0.0
      %587 = vmatpush1.msra.mxu0 0.0
      %588 = vmatprep.subr.mxu0 0.0
      %589 = vmatpush1.msra.mxu0 0.0
      %590 = vmatprep.subr.mxu0 0.0
      %591 = vmatpush1.msra.mxu0 0.0
      %592 = vmatprep.subr.mxu0 0.0
      %593 = vmatpush1.msra.mxu0 0.0
      %594 = vmatprep.subr.mxu0 0.0
      %595 = vmatpush1.msra.mxu0 0.0
      %596 = vmatprep.subr.mxu0 0.0
      %597 = vmatpush1.msra.mxu0 0.0
      %598 = vmatprep.mubr.f32.mxu0 0.0
      %599 = vmatmul.mubr.f32.gmra.mrb[0].mxu0 %v529
      %v600 = vpop.f32.mrb[0].mxu0
      %v601 = vadd.f32 0.0, %v600
      %v602 = vpop.f32.mrb[0].mxu0
      %v603 = vadd.f32 0.0, %v602
      %604 = vmatprep.mubr.f32.mxu0 0.0
      %605 = vmatmul.mubr.f32.gmra.mrb[0].mxu0 %v532
      %v606 = vpop.f32.mrb[0].mxu0
      %v607 = vadd.f32 0.0, %v606
      %v608 = vpop.f32.mrb[0].mxu0
      %v609 = vadd.f32 0.0, %v608
      %610 = vdwg.mxu0
      %v611 = vadd.f32 %v508, %v601
      %v612 = vadd.f32 %v509, %v603
      %v613 = vadd.f32 %v510, %v607
      %v614 = vadd.f32 %v511, %v609
      %615 = vrot.lane.b32.xlu0 %v220, 111
      %v616 = vpop.permute.xlu0 %615
      %617 = vrot.lane.b32.xlu0 %v221, 111
      %v618 = vpop.permute.xlu0 %617
      %vm619 = vcmask 908288
      %v620 = vsel %vm619, %v616, %v618
      %623 = vrot.lane.b32.xlu0 %v220, 79
      %v624 = vpop.permute.xlu0 %623
      %vm626 = vcmask 646144
      %v627 = vsel %vm626, %v618, %v624
      %s628 = scalar_lea.vmem %s1, 64
      %v629 = vld [vmem:[%s628] sm:$0xff]
      %v630 = vld [vmem:[%s628 + $0x8] sm:$0xff]
      %v632 = vsel %vm242, %v629, 0
      %v635 = vsel %vm242, %v630, 0
      %637 = vmatprep.subr.mxu0 %v627
      %638 = vmatpush1.msra.mxu0 %v620
      %639 = vmatprep.subr.mxu0 0.0
      %640 = vmatpush1.msra.mxu0 0.0
      %641 = vmatprep.subr.mxu0 0.0
      %642 = vmatpush1.msra.mxu0 0.0
      %643 = vmatprep.subr.mxu0 0.0
      %644 = vmatpush1.msra.mxu0 0.0
      %645 = vmatprep.subr.mxu0 0.0
      %646 = vmatpush1.msra.mxu0 0.0
      %647 = vmatprep.subr.mxu0 0.0
      %648 = vmatpush1.msra.mxu0 0.0
      %649 = vmatprep.subr.mxu0 0.0
      %650 = vmatpush1.msra.mxu0 0.0
      %651 = vmatprep.subr.mxu0 0.0
      %652 = vmatpush1.msra.mxu0 0.0
      %653 = vmatprep.subr.mxu0 0.0
      %654 = vmatpush1.msra.mxu0 0.0
      %655 = vmatprep.subr.mxu0 0.0
      %656 = vmatpush1.msra.mxu0 0.0
      %657 = vmatprep.subr.mxu0 0.0
      %658 = vmatpush1.msra.mxu0 0.0
      %659 = vmatprep.subr.mxu0 0.0
      %660 = vmatpush1.msra.mxu0 0.0
      %661 = vmatprep.subr.mxu0 0.0
      %662 = vmatpush1.msra.mxu0 0.0
      %663 = vmatprep.subr.mxu0 0.0
      %664 = vmatpush1.msra.mxu0 0.0
      %665 = vmatprep.subr.mxu0 0.0
      %666 = vmatpush1.msra.mxu0 0.0
      %667 = vmatprep.subr.mxu0 0.0
      %668 = vmatpush1.msra.mxu0 0.0
      %669 = vmatprep.subr.mxu0 0.0
      %670 = vmatpush1.msra.mxu0 0.0
      %671 = vmatprep.subr.mxu0 0.0
      %672 = vmatpush1.msra.mxu0 0.0
      %673 = vmatprep.subr.mxu0 0.0
      %674 = vmatpush1.msra.mxu0 0.0
      %675 = vmatprep.subr.mxu0 0.0
      %676 = vmatpush1.msra.mxu0 0.0
      %677 = vmatprep.subr.mxu0 0.0
      %678 = vmatpush1.msra.mxu0 0.0
      %679 = vmatprep.subr.mxu0 0.0
      %680 = vmatpush1.msra.mxu0 0.0
      %681 = vmatprep.subr.mxu0 0.0
      %682 = vmatpush1.msra.mxu0 0.0
      %683 = vmatprep.subr.mxu0 0.0
      %684 = vmatpush1.msra.mxu0 0.0
      %685 = vmatprep.subr.mxu0 0.0
      %686 = vmatpush1.msra.mxu0 0.0
      %687 = vmatprep.subr.mxu0 0.0
      %688 = vmatpush1.msra.mxu0 0.0
      %689 = vmatprep.subr.mxu0 0.0
      %690 = vmatpush1.msra.mxu0 0.0
      %691 = vmatprep.subr.mxu0 0.0
      %692 = vmatpush1.msra.mxu0 0.0
      %693 = vmatprep.subr.mxu0 0.0
      %694 = vmatpush1.msra.mxu0 0.0
      %695 = vmatprep.subr.mxu0 0.0
      %696 = vmatpush1.msra.mxu0 0.0
      %697 = vmatprep.subr.mxu0 0.0
      %698 = vmatpush1.msra.mxu0 0.0
      %699 = vmatprep.subr.mxu0 0.0
      %700 = vmatpush1.msra.mxu0 0.0
      %701 = vmatprep.mubr.f32.mxu0 0.0
      %702 = vmatmul.mubr.f32.gmra.mrb[0].mxu0 %v632
      %v703 = vpop.f32.mrb[0].mxu0
      %v704 = vadd.f32 0.0, %v703
      %v705 = vpop.f32.mrb[0].mxu0
      %v706 = vadd.f32 0.0, %v705
      %707 = vmatprep.mubr.f32.mxu0 0.0
      %708 = vmatmul.mubr.f32.gmra.mrb[0].mxu0 %v635
      %v709 = vpop.f32.mrb[0].mxu0
      %v710 = vadd.f32 0.0, %v709
      %v711 = vpop.f32.mrb[0].mxu0
      %v712 = vadd.f32 0.0, %v711
      %713 = vdwg.mxu0
      %v714 = vadd.f32 %v611, %v704
      %v715 = vadd.f32 %v612, %v706
      %v716 = vadd.f32 %v613, %v710
      %v717 = vadd.f32 %v614, %v712
      %718 = vrot.lane.b32.xlu0 %v220, 110
      %v719 = vpop.permute.xlu0 %718
      %720 = vrot.lane.b32.xlu0 %v221, 110
      %v721 = vpop.permute.xlu0 %720
      %vm722 = vcmask 900096
      %v723 = vsel %vm722, %v719, %v721
      %726 = vrot.lane.b32.xlu0 %v220, 78
      %v727 = vpop.permute.xlu0 %726
      %vm729 = vcmask 637952
      %v730 = vsel %vm729, %v721, %v727
      %s731 = scalar_lea.vmem %s1, 80
      %v732 = vld [vmem:[%s731] sm:$0xff]
      %v733 = vld [vmem:[%s731 + $0x8] sm:$0xff]
      %v735 = vsel %vm242, %v732, 0
      %v738 = vsel %vm242, %v733, 0
      %740 = vmatprep.subr.mxu0 %v730
      %741 = vmatpush1.msra.mxu0 %v723
      %742 = vmatprep.subr.mxu0 0.0
      %743 = vmatpush1.msra.mxu0 0.0
      %744 = vmatprep.subr.mxu0 0.0
      %745 = vmatpush1.msra.mxu0 0.0
      %746 = vmatprep.subr.mxu0 0.0
      %747 = vmatpush1.msra.mxu0 0.0
      %748 = vmatprep.subr.mxu0 0.0
      %749 = vmatpush1.msra.mxu0 0.0
      %750 = vmatprep.subr.mxu0 0.0
      %751 = vmatpush1.msra.mxu0 0.0
      %752 = vmatprep.subr.mxu0 0.0
      %753 = vmatpush1.msra.mxu0 0.0
      %754 = vmatprep.subr.mxu0 0.0
      %755 = vmatpush1.msra.mxu0 0.0
      %756 = vmatprep.subr.mxu0 0.0
      %757 = vmatpush1.msra.mxu0 0.0
      %758 = vmatprep.subr.mxu0 0.0
      %759 = vmatpush1.msra.mxu0 0.0
      %760 = vmatprep.subr.mxu0 0.0
      %761 = vmatpush1.msra.mxu0 0.0
      %762 = vmatprep.subr.mxu0 0.0
      %763 = vmatpush1.msra.mxu0 0.0
      %764 = vmatprep.subr.mxu0 0.0
      %765 = vmatpush1.msra.mxu0 0.0
      %766 = vmatprep.subr.mxu0 0.0
      %767 = vmatpush1.msra.mxu0 0.0
      %768 = vmatprep.subr.mxu0 0.0
      %769 = vmatpush1.msra.mxu0 0.0
      %770 = vmatprep.subr.mxu0 0.0
      %771 = vmatpush1.msra.mxu0 0.0
      %772 = vmatprep.subr.mxu0 0.0
      %773 = vmatpush1.msra.mxu0 0.0
      %774 = vmatprep.subr.mxu0 0.0
      %775 = vmatpush1.msra.mxu0 0.0
      %776 = vmatprep.subr.mxu0 0.0
      %777 = vmatpush1.msra.mxu0 0.0
      %778 = vmatprep.subr.mxu0 0.0
      %779 = vmatpush1.msra.mxu0 0.0
      %780 = vmatprep.subr.mxu0 0.0
      %781 = vmatpush1.msra.mxu0 0.0
      %782 = vmatprep.subr.mxu0 0.0
      %783 = vmatpush1.msra.mxu0 0.0
      %784 = vmatprep.subr.mxu0 0.0
      %785 = vmatpush1.msra.mxu0 0.0
      %786 = vmatprep.subr.mxu0 0.0
      %787 = vmatpush1.msra.mxu0 0.0
      %788 = vmatprep.subr.mxu0 0.0
      %789 = vmatpush1.msra.mxu0 0.0
      %790 = vmatprep.subr.mxu0 0.0
      %791 = vmatpush1.msra.mxu0 0.0
      %792 = vmatprep.subr.mxu0 0.0
      %793 = vmatpush1.msra.mxu0 0.0
      %794 = vmatprep.subr.mxu0 0.0
      %795 = vmatpush1.msra.mxu0 0.0
      %796 = vmatprep.subr.mxu0 0.0
      %797 = vmatpush1.msra.mxu0 0.0
      %798 = vmatprep.subr.mxu0 0.0
      %799 = vmatpush1.msra.mxu0 0.0
      %800 = vmatprep.subr.mxu0 0.0
      %801 = vmatpush1.msra.mxu0 0.0
      %802 = vmatprep.subr.mxu0 0.0
      %803 = vmatpush1.msra.mxu0 0.0
      %804 = vmatprep.mubr.f32.mxu0 0.0
      %805 = vmatmul.mubr.f32.gmra.mrb[0].mxu0 %v735
      %v806 = vpop.f32.mrb[0].mxu0
      %v807 = vadd.f32 0.0, %v806
      %v808 = vpop.f32.mrb[0].mxu0
      %v809 = vadd.f32 0.0, %v808
      %810 = vmatprep.mubr.f32.mxu0 0.0
      %811 = vmatmul.mubr.f32.gmra.mrb[0].mxu0 %v738
      %v812 = vpop.f32.mrb[0].mxu0
      %v813 = vadd.f32 0.0, %v812
      %v814 = vpop.f32.mrb[0].mxu0
      %v815 = vadd.f32 0.0, %v814
      %816 = vdwg.mxu0
      %v817 = vadd.f32 %v714, %v807
      %v818 = vadd.f32 %v715, %v809
      %v819 = vadd.f32 %v716, %v813
      %v820 = vadd.f32 %v717, %v815
      %821 = vrot.lane.b32.xlu0 %v220, 96
      %v822 = vpop.permute.xlu0 %821
      %823 = vrot.lane.b32.xlu0 %v221, 96
      %v824 = vpop.permute.xlu0 %823
      %vm825 = vcmask 785408
      %v826 = vsel %vm825, %v822, %v824
      %829 = vrot.lane.b32.xlu0 %v220, 64
      %v830 = vpop.permute.xlu0 %829
      %vm832 = vcmask 523264
      %v833 = vsel %vm832, %v824, %v830
      %s834 = scalar_lea.vmem %s1, 96
      %v835 = vld [vmem:[%s834] sm:$0xff]
      %v836 = vld [vmem:[%s834 + $0x8] sm:$0xff]
      %v838 = vsel %vm242, %v835, 0
      %v841 = vsel %vm242, %v836, 0
      %843 = vmatprep.subr.mxu0 %v833
      %844 = vmatpush1.msra.mxu0 %v826
      %845 = vmatprep.subr.mxu0 0.0
      %846 = vmatpush1.msra.mxu0 0.0
      %847 = vmatprep.subr.mxu0 0.0
      %848 = vmatpush1.msra.mxu0 0.0
      %849 = vmatprep.subr.mxu0 0.0
      %850 = vmatpush1.msra.mxu0 0.0
      %851 = vmatprep.subr.mxu0 0.0
      %852 = vmatpush1.msra.mxu0 0.0
      %853 = vmatprep.subr.mxu0 0.0
      %854 = vmatpush1.msra.mxu0 0.0
      %855 = vmatprep.subr.mxu0 0.0
      %856 = vmatpush1.msra.mxu0 0.0
      %857 = vmatprep.subr.mxu0 0.0
      %858 = vmatpush1.msra.mxu0 0.0
      %859 = vmatprep.subr.mxu0 0.0
      %860 = vmatpush1.msra.mxu0 0.0
      %861 = vmatprep.subr.mxu0 0.0
      %862 = vmatpush1.msra.mxu0 0.0
      %863 = vmatprep.subr.mxu0 0.0
      %864 = vmatpush1.msra.mxu0 0.0
      %865 = vmatprep.subr.mxu0 0.0
      %866 = vmatpush1.msra.mxu0 0.0
      %867 = vmatprep.subr.mxu0 0.0
      %868 = vmatpush1.msra.mxu0 0.0
      %869 = vmatprep.subr.mxu0 0.0
      %870 = vmatpush1.msra.mxu0 0.0
      %871 = vmatprep.subr.mxu0 0.0
      %872 = vmatpush1.msra.mxu0 0.0
      %873 = vmatprep.subr.mxu0 0.0
      %874 = vmatpush1.msra.mxu0 0.0
      %875 = vmatprep.subr.mxu0 0.0
      %876 = vmatpush1.msra.mxu0 0.0
      %877 = vmatprep.subr.mxu0 0.0
      %878 = vmatpush1.msra.mxu0 0.0
      %879 = vmatprep.subr.mxu0 0.0
      %880 = vmatpush1.msra.mxu0 0.0
      %881 = vmatprep.subr.mxu0 0.0
      %882 = vmatpush1.msra.mxu0 0.0
      %883 = vmatprep.subr.mxu0 0.0
      %884 = vmatpush1.msra.mxu0 0.0
      %885 = vmatprep.subr.mxu0 0.0
      %886 = vmatpush1.msra.mxu0 0.0
      %887 = vmatprep.subr.mxu0 0.0
      %888 = vmatpush1.msra.mxu0 0.0
      %889 = vmatprep.subr.mxu0 0.0
      %890 = vmatpush1.msra.mxu0 0.0
      %891 = vmatprep.subr.mxu0 0.0
      %892 = vmatpush1.msra.mxu0 0.0
      %893 = vmatprep.subr.mxu0 0.0
      %894 = vmatpush1.msra.mxu0 0.0
      %895 = vmatprep.subr.mxu0 0.0
      %896 = vmatpush1.msra.mxu0 0.0
      %897 = vmatprep.subr.mxu0 0.0
      %898 = vmatpush1.msra.mxu0 0.0
      %899 = vmatprep.subr.mxu0 0.0
      %900 = vmatpush1.msra.mxu0 0.0
      %901 = vmatprep.subr.mxu0 0.0
      %902 = vmatpush1.msra.mxu0 0.0
      %903 = vmatprep.subr.mxu0 0.0
      %904 = vmatpush1.msra.mxu0 0.0
      %905 = vmatprep.subr.mxu0 0.0
      %906 = vmatpush1.msra.mxu0 0.0
      %907 = vmatprep.mubr.f32.mxu0 0.0
      %908 = vmatmul.mubr.f32.gmra.mrb[0].mxu0 %v838
      %v909 = vpop.f32.mrb[0].mxu0
      %v910 = vadd.f32 0.0, %v909
      %v911 = vpop.f32.mrb[0].mxu0
      %v912 = vadd.f32 0.0, %v911
      %913 = vmatprep.mubr.f32.mxu0 0.0
      %914 = vmatmul.mubr.f32.gmra.mrb[0].mxu0 %v841
      %v915 = vpop.f32.mrb[0].mxu0
      %v916 = vadd.f32 0.0, %v915
      %v917 = vpop.f32.mrb[0].mxu0
      %v918 = vadd.f32 0.0, %v917
      %919 = vdwg.mxu0
      %v920 = vadd.f32 %v817, %v910
      %v921 = vadd.f32 %v818, %v912
      %v922 = vadd.f32 %v819, %v916
      %v923 = vadd.f32 %v820, %v918
      %924 = vrot.lane.b32.xlu0 %v221, 95
      %v925 = vpop.permute.xlu0 %924
      %v926 = vsel %vm237, %v235, %v925
      %929 = vrot.lane.b32.xlu0 %v220, 63
      %v930 = vpop.permute.xlu0 %929
      %vm932 = vcmask 515072
      %v933 = vsel %vm932, %v925, %v930
      %s934 = scalar_lea.vmem %s1, 112
      %v935 = vld [vmem:[%s934] sm:$0xff]
      %v936 = vld [vmem:[%s934 + $0x8] sm:$0xff]
      %v938 = vsel %vm242, %v935, 0
      %v941 = vsel %vm242, %v936, 0
      %943 = vmatprep.subr.mxu0 %v933
      %944 = vmatpush1.msra.mxu0 %v926
      %945 = vmatprep.subr.mxu0 0.0
      %946 = vmatpush1.msra.mxu0 0.0
      %947 = vmatprep.subr.mxu0 0.0
      %948 = vmatpush1.msra.mxu0 0.0
      %949 = vmatprep.subr.mxu0 0.0
      %950 = vmatpush1.msra.mxu0 0.0
      %951 = vmatprep.subr.mxu0 0.0
      %952 = vmatpush1.msra.mxu0 0.0
      %953 = vmatprep.subr.mxu0 0.0
      %954 = vmatpush1.msra.mxu0 0.0
      %955 = vmatprep.subr.mxu0 0.0
      %956 = vmatpush1.msra.mxu0 0.0
      %957 = vmatprep.subr.mxu0 0.0
      %958 = vmatpush1.msra.mxu0 0.0
      %959 = vmatprep.subr.mxu0 0.0
      %960 = vmatpush1.msra.mxu0 0.0
      %961 = vmatprep.subr.mxu0 0.0
      %962 = vmatpush1.msra.mxu0 0.0
      %963 = vmatprep.subr.mxu0 0.0
      %964 = vmatpush1.msra.mxu0 0.0
      %965 = vmatprep.subr.mxu0 0.0
      %966 = vmatpush1.msra.mxu0 0.0
      %967 = vmatprep.subr.mxu0 0.0
      %968 = vmatpush1.msra.mxu0 0.0
      %969 = vmatprep.subr.mxu0 0.0
      %970 = vmatpush1.msra.mxu0 0.0
      %971 = vmatprep.subr.mxu0 0.0
      %972 = vmatpush1.msra.mxu0 0.0
      %973 = vmatprep.subr.mxu0 0.0
      %974 = vmatpush1.msra.mxu0 0.0
      %975 = vmatprep.subr.mxu0 0.0
      %976 = vmatpush1.msra.mxu0 0.0
      %977 = vmatprep.subr.mxu0 0.0
      %978 = vmatpush1.msra.mxu0 0.0
      %979 = vmatprep.subr.mxu0 0.0
      %980 = vmatpush1.msra.mxu0 0.0
      %981 = vmatprep.subr.mxu0 0.0
      %982 = vmatpush1.msra.mxu0 0.0
      %983 = vmatprep.subr.mxu0 0.0
      %984 = vmatpush1.msra.mxu0 0.0
      %985 = vmatprep.subr.mxu0 0.0
      %986 = vmatpush1.msra.mxu0 0.0
      %987 = vmatprep.subr.mxu0 0.0
      %988 = vmatpush1.msra.mxu0 0.0
      %989 = vmatprep.subr.mxu0 0.0
      %990 = vmatpush1.msra.mxu0 0.0
      %991 = vmatprep.subr.mxu0 0.0
      %992 = vmatpush1.msra.mxu0 0.0
      %993 = vmatprep.subr.mxu0 0.0
      %994 = vmatpush1.msra.mxu0 0.0
      %995 = vmatprep.subr.mxu0 0.0
      %996 = vmatpush1.msra.mxu0 0.0
      %997 = vmatprep.subr.mxu0 0.0
      %998 = vmatpush1.msra.mxu0 0.0
      %999 = vmatprep.subr.mxu0 0.0
      %1000 = vmatpush1.msra.mxu0 0.0
      %1001 = vmatprep.subr.mxu0 0.0
      %1002 = vmatpush1.msra.mxu0 0.0
      %1003 = vmatprep.subr.mxu0 0.0
      %1004 = vmatpush1.msra.mxu0 0.0
      %1005 = vmatprep.subr.mxu0 0.0
      %1006 = vmatpush1.msra.mxu0 0.0
      %1007 = vmatprep.mubr.f32.mxu0 0.0
      %1008 = vmatmul.mubr.f32.gmra.mrb[0].mxu0 %v938
      %v1009 = vpop.f32.mrb[0].mxu0
      %v1010 = vadd.f32 0.0, %v1009
      %v1011 = vpop.f32.mrb[0].mxu0
      %v1012 = vadd.f32 0.0, %v1011
      %1013 = vmatprep.mubr.f32.mxu0 0.0
      %1014 = vmatmul.mubr.f32.gmra.mrb[0].mxu0 %v941
      %v1015 = vpop.f32.mrb[0].mxu0
      %v1016 = vadd.f32 0.0, %v1015
      %v1017 = vpop.f32.mrb[0].mxu0
      %v1018 = vadd.f32 0.0, %v1017
      %1019 = vdwg.mxu0
      %v1020 = vadd.f32 %v920, %v1010
      %v1021 = vadd.f32 %v921, %v1012
      %v1022 = vadd.f32 %v922, %v1016
      %v1023 = vadd.f32 %v923, %v1018
      %1024 = vrot.lane.b32.xlu0 %v221, 94
      %v1025 = vpop.permute.xlu0 %1024
      %v1026 = vsel %vm420, %v418, %v1025
      %1029 = vrot.lane.b32.xlu0 %v220, 62
      %v1030 = vpop.permute.xlu0 %1029
      %vm1032 = vcmask 506880
      %v1033 = vsel %vm1032, %v1025, %v1030
      %s1034 = scalar_lea.vmem %s1, 128
      %v1035 = vld [vmem:[%s1034] sm:$0xff]
      %v1036 = vld [vmem:[%s1034 + $0x8] sm:$0xff]
      %v1038 = vsel %vm242, %v1035, 0
      %v1041 = vsel %vm242, %v1036, 0
      %1043 = vmatprep.subr.mxu0 %v1033
      %1044 = vmatpush1.msra.mxu0 %v1026
      %1045 = vmatprep.subr.mxu0 0.0
      %1046 = vmatpush1.msra.mxu0 0.0
      %1047 = vmatprep.subr.mxu0 0.0
      %1048 = vmatpush1.msra.mxu0 0.0
      %1049 = vmatprep.subr.mxu0 0.0
      %1050 = vmatpush1.msra.mxu0 0.0
      %1051 = vmatprep.subr.mxu0 0.0
      %1052 = vmatpush1.msra.mxu0 0.0
      %1053 = vmatprep.subr.mxu0 0.0
      %1054 = vmatpush1.msra.mxu0 0.0
      %1055 = vmatprep.subr.mxu0 0.0
      %1056 = vmatpush1.msra.mxu0 0.0
      %1057 = vmatprep.subr.mxu0 0.0
      %1058 = vmatpush1.msra.mxu0 0.0
      %1059 = vmatprep.subr.mxu0 0.0
      %1060 = vmatpush1.msra.mxu0 0.0
      %1061 = vmatprep.subr.mxu0 0.0
      %1062 = vmatpush1.msra.mxu0 0.0
      %1063 = vmatprep.subr.mxu0 0.0
      %1064 = vmatpush1.msra.mxu0 0.0
      %1065 = vmatprep.subr.mxu0 0.0
      %1066 = vmatpush1.msra.mxu0 0.0
      %1067 = vmatprep.subr.mxu0 0.0
      %1068 = vmatpush1.msra.mxu0 0.0
      %1069 = vmatprep.subr.mxu0 0.0
      %1070 = vmatpush1.msra.mxu0 0.0
      %1071 = vmatprep.subr.mxu0 0.0
      %1072 = vmatpush1.msra.mxu0 0.0
      %1073 = vmatprep.subr.mxu0 0.0
      %1074 = vmatpush1.msra.mxu0 0.0
      %1075 = vmatprep.subr.mxu0 0.0
      %1076 = vmatpush1.msra.mxu0 0.0
      %1077 = vmatprep.subr.mxu0 0.0
      %1078 = vmatpush1.msra.mxu0 0.0
      %1079 = vmatprep.subr.mxu0 0.0
      %1080 = vmatpush1.msra.mxu0 0.0
      %1081 = vmatprep.subr.mxu0 0.0
      %1082 = vmatpush1.msra.mxu0 0.0
      %1083 = vmatprep.subr.mxu0 0.0
      %1084 = vmatpush1.msra.mxu0 0.0
      %1085 = vmatprep.subr.mxu0 0.0
      %1086 = vmatpush1.msra.mxu0 0.0
      %1087 = vmatprep.subr.mxu0 0.0
      %1088 = vmatpush1.msra.mxu0 0.0
      %1089 = vmatprep.subr.mxu0 0.0
      %1090 = vmatpush1.msra.mxu0 0.0
      %1091 = vmatprep.subr.mxu0 0.0
      %1092 = vmatpush1.msra.mxu0 0.0
      %1093 = vmatprep.subr.mxu0 0.0
      %1094 = vmatpush1.msra.mxu0 0.0
      %1095 = vmatprep.subr.mxu0 0.0
      %1096 = vmatpush1.msra.mxu0 0.0
      %1097 = vmatprep.subr.mxu0 0.0
      %1098 = vmatpush1.msra.mxu0 0.0
      %1099 = vmatprep.subr.mxu0 0.0
      %1100 = vmatpush1.msra.mxu0 0.0
      %1101 = vmatprep.subr.mxu0 0.0
      %1102 = vmatpush1.msra.mxu0 0.0
      %1103 = vmatprep.subr.mxu0 0.0
      %1104 = vmatpush1.msra.mxu0 0.0
      %1105 = vmatprep.subr.mxu0 0.0
      %1106 = vmatpush1.msra.mxu0 0.0
      %1107 = vmatprep.mubr.f32.mxu0 0.0
      %1108 = vmatmul.mubr.f32.gmra.mrb[0].mxu0 %v1038
      %v1109 = vpop.f32.mrb[0].mxu0
      %v1110 = vadd.f32 0.0, %v1109
      %v1111 = vpop.f32.mrb[0].mxu0
      %v1112 = vadd.f32 0.0, %v1111
      %1113 = vmatprep.mubr.f32.mxu0 0.0
      %1114 = vmatmul.mubr.f32.gmra.mrb[0].mxu0 %v1041
      %v1115 = vpop.f32.mrb[0].mxu0
      %v1116 = vadd.f32 0.0, %v1115
      %v1117 = vpop.f32.mrb[0].mxu0
      %v1118 = vadd.f32 0.0, %v1117
      %1119 = vdwg.mxu0
      %v1120 = vadd.f32 %v1020, %v1110
      %v1121 = vadd.f32 %v1021, %v1112
      %v1122 = vadd.f32 %v1022, %v1116
      %v1123 = vadd.f32 %v1023, %v1118
      %1124 = vst [vmem:[%s219] sm:$0xff] %v1120
      %1125 = vst.msk [vmem:[%s219 + $0x8] sm:$0xff] %vm832, %v1121
      %1126 = vst [vmem:[%s219 + $0x10] sm:$0xff] %v1122
      %1127 = vst.msk [vmem:[%s219 + $0x18] sm:$0xff] %vm832, %v1123
      %v1128 = vld [vmem:[%s2] sm:$0x3]
      %v1130 = vlaneseq
      %v1131 = vshrl.u32 %v1130, 7
      %v1132 = vsub.s32 0, %v1131
      %v1133 = vrot.slane %v1128, %v1132
      %v1134 = vlaneseq
      %v1135 = vshrl.u32 %v1134, 7
      %v1136 = vsub.s32 1, %v1135
      %v1137 = vrot.slane %v1128, %v1136
      %v1140 = vmul.f32 %v1120, %v1133
      %v1141 = vmul.f32 %v1121, %v1137
      %v1142 = vmul.f32 %v1122, %v1133
      %v1143 = vmul.f32 %v1123, %v1137
      %v1144 = vsel %vm832, %v1141, 0.0
      %v1145 = vadd.f32 %v1140, %v1144
      %1146 = vadd.xlane.f32.xlu0 %v1145
      %v1147 = vpop.xlane.xlu0 %1146
      %v1148 = vsel %vm832, %v1143, 0.0
      %v1149 = vadd.f32 %v1142, %v1148
      %1150 = vadd.xlane.f32.xlu0 %v1149
      %v1151 = vpop.xlane.xlu0 %1150
      %v1152 = vmul.f32 %v1140, %v1140
      %v1153 = vmul.f32 %v1141, %v1141
      %v1154 = vmul.f32 %v1142, %v1142
      %v1155 = vmul.f32 %v1143, %v1143
      %v1156 = vsel %vm832, %v1153, 0.0
      %v1157 = vadd.f32 %v1152, %v1156
      %1158 = vadd.xlane.f32.xlu0 %v1157
      %v1159 = vpop.xlane.xlu0 %1158
      %v1160 = vsel %vm832, %v1155, 0.0
      %v1161 = vadd.f32 %v1154, %v1160
      %1162 = vadd.xlane.f32.xlu0 %v1161
      %v1163 = vpop.xlane.xlu0 %1162
      %p1164 = scmp.eq.s32.totalorder %s17, 0
      // Predicated region
      $region33: #{layer_forward.6} parent=31 // pred_check
        %p1165 = pneg %p1164
      $region34: #{layer_forward.6} parent=31 // pred_check_branch
        %1167 = sbr.rel (%p1165) target = $region36
      $region35: #{layer_forward.6} parent=31 // pred_region
        %vm1168 = vcmask 7168
        %1169 = vst.msk [vmem:[%s4] sm:$0xff] %vm1168, 0.0
        %1170 = vst.msk [vmem:[%s4 + $0x8] sm:$0xff] %vm1168, 0.0
        %1171 = vst.msk [vmem:[%s5] sm:$0xff] %vm1168, 0.0
        %1172 = vst.msk [vmem:[%s5 + $0x8] sm:$0xff] %vm1168, 0.0
      $region36: #{layer_forward.6} parent=31 // pred_fallthru
        _
      %v1173 = vld [vmem:[%s4] sm:$0xff]
      %v1174 = vld [vmem:[%s4 + $0x8] sm:$0xff]
      %v1175 = vadd.f32 %v1173, %v1147
      %v1176 = vadd.f32 %v1174, %v1151
      %vm1177 = vcmask 7168
      %1178 = vst.msk [vmem:[%s4] sm:$0xff] %vm1177, %v1175
      %1179 = vst.msk [vmem:[%s4 + $0x8] sm:$0xff] %vm1177, %v1176
      %v1180 = vld [vmem:[%s5] sm:$0xff]
      %v1181 = vld [vmem:[%s5 + $0x8] sm:$0xff]
      %v1182 = vadd.f32 %v1180, %v1159
      %v1183 = vadd.f32 %v1181, %v1163
      %1184 = vst.msk [vmem:[%s5] sm:$0xff] %vm1177, %v1182
      %1185 = vst.msk [vmem:[%s5 + $0x8] sm:$0xff] %vm1177, %v1183
      %p1186 = scmp.lt.s32.totalorder %s17, 1
      %s1187 = scalar_select %p1186, %s17, 1
      %s1188 = smul.addr %s1187, 4
      %s1189 = smul.addr %s1188, 8
      %s1190 = scalar_lea.vmem %s3, %s1189
      // Predicated region
      $region37: #{layer_forward.6} parent=31 // pred_check
        %p1191 = pneg %p103
      $region38: #{layer_forward.6} parent=31 // pred_check_branch
        %1193 = sbr.rel (%p1191) target = $region40
      $region39: #{layer_forward.6} parent=31 // pred_region
        _
      $region40: #{layer_forward.6} parent=31 // pred_fallthru
        _
      // Predicated region
      $region41: #{layer_forward.6} parent=31 // pred_check
        %p1194 = pneg %p124
      $region42: #{layer_forward.6} parent=31 // pred_check_branch
        %1196 = sbr.rel (%p1194) target = $region44
      $region43: #{layer_forward.6} parent=31 // pred_region
        _
      $region44: #{layer_forward.6} parent=31 // pred_fallthru
        _
      // Predicated region
      $region45: #{layer_forward.6} parent=31 // pred_check
        %p1197 = pneg %p145
      $region46: #{layer_forward.6} parent=31 // pred_check_branch
        %1199 = sbr.rel (%p1197) target = $region48
      $region47: #{layer_forward.6} parent=31 // pred_region
        _
      $region48: #{layer_forward.6} parent=31 // pred_fallthru
        _
      // Predicated region
      $region49: #{layer_forward.6} parent=31 // pred_check
        %p1200 = pneg %p124
      $region50: #{layer_forward.6} parent=31 // pred_check_branch
        %1202 = sbr.rel (%p1200) target = $region52
      $region51: #{layer_forward.6} parent=31 // pred_region
        _
      $region52: #{layer_forward.6} parent=31 // pred_fallthru
        _
      // Predicated region
      $region53: #{layer_forward.6} parent=31 // pred_check
        %p1203 = pneg %p145
      $region54: #{layer_forward.6} parent=31 // pred_check_branch
        %1205 = sbr.rel (%p1203) target = $region56
      $region55: #{layer_forward.6} parent=31 // pred_region
        _
      $region56: #{layer_forward.6} parent=31 // pred_fallthru
        _
    $region32: #{layer_forward.6} parent=5 // pred_fallthru
      _
    %p1206 = scmp.le.s32.totalorder 2, %s12
    // Predicated region
    $region57: #{layer_forward.6} parent=5 // pred_check
      %p1207 = pneg %p1206
    $region58: #{layer_forward.6} parent=5 // pred_check_branch
      %1209 = sbr.rel (%p1207) target = $region60
    $region59: #{layer_forward.6} parent=5 // pred_region
      %s1210 = ssub.s32 %s12, 2
      // Predicated region
      $region61: #{layer_forward.6} parent=59 // pred_check
        %p1211 = pneg %p109
      $region62: #{layer_forward.6} parent=59 // pred_check_branch
        %1213 = sbr.rel (%p1211) target = $region64
      $region63: #{layer_forward.6} parent=59 // pred_region
        %p1214 = scmp.lt.s32.totalorder %s18, 1
        %s1215 = scalar_select %p1214, %s18, 1
        %s1216 = smul.addr %s1215, 4
        %s1217 = smul.addr %s1216, 8
        %s1218 = scalar_lea.vmem %s3, %s1217
      $region64: #{layer_forward.6} parent=59 // pred_fallthru
        _
    $region60: #{layer_forward.6} parent=5 // pred_fallthru
      _
  $region6: #{layer_forward.6} parent=0 // loop_footer
    %s16 = sadd.s32 1, %s12
  $region7: #{layer_forward.6} parent=0 // loop_footer_branch
    %11 = sbr.rel target = $region3
  $region8: #{layer_forward.6} parent=0 // loop_exit
    _

</llo_original>
